<compile_context>
chip_gen: v7x
topology: tpu7x:2x2x1
jax: 0.10.0
libtpu: 0.0.40
codegen_flags: <defaults>
</compile_context>

<pallas_src>
import jax
import jax.numpy as jnp
import numpy as np
from jax import lax
from jax.experimental import pallas as pl
from jax.experimental.pallas import tpu as pltpu

N_CLASSES = 10
N_OUT_PAD = 128            # lane-dense padded class dim
C1, C2 = 16, 32            # out_1, out_2
H, W = 16, 16              # input spatial size implied by fc1 (out_2 * 4 * 4)
H2, W2 = H // 2, W // 2    # 8, 8  (after pool1)
H3, W3 = H // 4, W // 4    # 4, 4  (after pool2)
K = 5                      # conv kernel size
PAD = 2                    # conv padding
WP = W + 2 * PAD           # 20, padded input width
MAX_TB = 128               # batch tile (multiple of 8); ~10 MB live VMEM at 128


def cnn_kernel(x_ref, w1_ref, b1_ref, w2_ref, b2_ref, wfc_ref, bfc_ref,
               out_ref):
    tb = out_ref.shape[0]

    # ---- conv1 (1 -> C1, 5x5, pad 2): ONE bf16 MXU matmul -------------------
    # x_ref rows are (n, i); its 100 lanes are the kh-stacked padded input rows
    # (built in the wrapper).  Output columns ordered (j, c1): lane-dense 256.
    a1 = jnp.dot(x_ref[...], w1_ref[...], preferred_element_type=jnp.float32)
    a1 = jnp.maximum(a1 + b1_ref[...], 0.0)                    # (tb*16, 256) f32

    # ---- maxpool1 (2x2), lane-dense ------------------------------------------
    # j-direction: shift lanes by one C1 group and max; the pooled value for
    # output column j2 sits at column group j = 2*j2 (odd groups are junk and
    # get zero weights in the conv2 band weight).
    jmax1 = jnp.maximum(a1, jnp.concatenate([a1[:, C1:], a1[:, :C1]], axis=1))
    # i-direction: merge row pairs into lanes and max the two halves.
    jmax1 = jmax1.reshape(tb * H2, 2 * W * C1)                 # (tb*8, 512)
    p1 = jnp.maximum(jmax1[:, :W * C1], jmax1[:, W * C1:])     # (tb*8, 256) f32

    # ---- conv2 (C1 -> C2, 5x5, pad 2): 5 kh-band bf16 matmuls ----------------
    # Height zero-padding is 2 zero rows per sample; kw taps, width padding and
    # the even-j decimation are folded into w2_ref[kh] (256 x 256).
    zrow = jnp.zeros((tb, PAD, W * C1), jnp.float32)
    p1p = jnp.concatenate([zrow, p1.reshape(tb, H2, W * C1), zrow],
                          axis=1).astype(jnp.bfloat16)         # (tb, 12, 256)
    acc2 = jnp.zeros((tb * H2, W2 * C2), jnp.float32)
    for kh in range(K):
        lhs = p1p[:, kh:kh + H2, :].reshape(tb * H2, W * C1)
        acc2 = acc2 + jnp.dot(lhs, w2_ref[kh],
                              preferred_element_type=jnp.float32)
    a2 = jnp.maximum(acc2 + b2_ref[...], 0.0)                  # (tb*8, 256) f32

    # ---- maxpool2 (2x2), lane-dense ------------------------------------------
    jmax2 = jnp.maximum(a2, jnp.concatenate([a2[:, C2:], a2[:, :C2]], axis=1))
    jmax2 = jmax2.reshape(tb * H3, 2 * W2 * C2)                # (tb*4, 512)
    p2 = jnp.maximum(jmax2[:, :W2 * C2], jmax2[:, W2 * C2:])   # (tb*4, 256) f32

    # ---- fc: one bf16 matmul to a lane-dense (128-wide) padded output --------
    # Even-j2 selection and torch's NCHW flatten order live in wfc_ref.
    flat = p2.reshape(tb, H3 * W2 * C2).astype(jnp.bfloat16)   # (tb, 1024)
    out_ref[...] = jnp.dot(flat, wfc_ref[...],
                           preferred_element_type=jnp.float32) + bfc_ref[...]


def prepare_params(params):
    """Torch-convention params -> kernel layouts. Host-side; call ONCE and
    reuse (hoisted out of the per-forward path)."""
    w1_t, b1, w2_t, b2, wfc_t, bfc = params

    # conv1: kh-fused band weight: w1_full[kh*WP + j + kw, j*C1 + c] = w1[c,0,kh,kw]
    w1_np = np.asarray(w1_t, np.float32)
    w1_full = np.zeros((K * WP, W * C1), np.float32)
    for kh in range(K):
        for kw in range(K):
            for j in range(W):
                w1_full[kh * WP + j + kw, j * C1:(j + 1) * C1] = w1_np[:, 0, kh, kw]
    b1t = np.tile(np.asarray(b1, np.float32), W).reshape(1, W * C1)

    # conv2: per-kh band weights over the UNDECIMATED pool1 layout
    # (input col group j in [0,16), valid data at j = 2*j2'):
    #   w2b[kh, 2*(j2+kw-PAD)*C1 + cin, j2*C2 + c2] = w2[c2, cin, kh, kw]
    # rows for odd / out-of-range groups stay zero (width zero padding).
    w2_np = np.asarray(w2_t, np.float32)
    w2b = np.zeros((K, W * C1, W2 * C2), np.float32)
    for kh in range(K):
        for kw in range(K):
            for j2 in range(W2):
                jsrc = j2 + kw - PAD
                if 0 <= jsrc < W2:
                    w2b[kh, 2 * jsrc * C1:(2 * jsrc + 1) * C1,
                        j2 * C2:(j2 + 1) * C2] = w2_np[:, :, kh, kw].T
    b2t = np.tile(np.asarray(b2, np.float32), W2).reshape(1, W2 * C2)

    # fc: torch flattens NCHW (c2, i3, j3); kernel flat layout is
    # (i3, j2 = 2*j3, c2) with junk at odd j2 -> zero rows; classes padded to 128.
    wfc_np = np.asarray(wfc_t, np.float32)                     # (10, 512)
    wfc_full = np.zeros((H3 * W2 * C2, N_OUT_PAD), np.float32)
    for i3 in range(H3):
        for j3 in range(W3):
            for c2 in range(C2):
                row = i3 * (W2 * C2) + (2 * j3) * C2 + c2
                wfc_full[row, :N_CLASSES] = wfc_np[:, c2 * (H3 * W3) + i3 * W3 + j3]
    bfc_pad = np.zeros((1, N_OUT_PAD), np.float32)
    bfc_pad[0, :N_CLASSES] = np.asarray(bfc, np.float32)

    # MXU operands in bf16 (f32 accumulation in-kernel); biases stay f32.
    return (jnp.asarray(w1_full, jnp.bfloat16),
            jnp.asarray(b1t, jnp.float32),
            jnp.asarray(w2b, jnp.bfloat16),
            jnp.asarray(b2t, jnp.float32),
            jnp.asarray(wfc_full, jnp.bfloat16),
            jnp.asarray(bfc_pad, jnp.float32))


@jax.jit
def cnn_forward(x_nchw, prepared):
    w1, b1t, w2b, b2t, wfcp, bfcp = prepared
    n = x_nchw.shape[0]

    # conv1 im2row in the wrapper (tiny; XLA-side): (N*16, K*WP) bf16.
    x = x_nchw[:, 0, :, :].astype(jnp.float32)                 # (N, 16, 16)
    xp = jnp.pad(x, ((0, 0), (PAD, PAD), (PAD, PAD)))          # (N, 20, 20)
    x_rows = jnp.concatenate([xp[:, kh:kh + H, :] for kh in range(K)], axis=-1)
    x_rows = x_rows.reshape(n * H, K * WP).astype(jnp.bfloat16)

    # Batch tiling: multiple of 8, capped at MAX_TB, >=2 grid steps when the
    # batch allows it (v7x megacore), batch padded to a full grid.
    n8 = pl.cdiv(n, 8) * 8
    tb = min(MAX_TB, n8)
    if tb == n8 and n8 >= 16:
        tb = pl.cdiv(n8 // 2, 8) * 8
    n_pad = pl.cdiv(n, tb) * tb
    if n_pad != n:
        x_rows = jnp.pad(x_rows, ((0, (n_pad - n) * H), (0, 0)))
    grid = (n_pad // tb,)

    out = pl.pallas_call(
        cnn_kernel,
        out_shape=jax.ShapeDtypeStruct((n_pad, N_OUT_PAD), jnp.float32),
        grid=grid,
        in_specs=[
            pl.BlockSpec((tb * H, K * WP), lambda i: (i, 0)),
            pl.BlockSpec(w1.shape, lambda i: (0, 0)),
            pl.BlockSpec(b1t.shape, lambda i: (0, 0)),
            pl.BlockSpec(w2b.shape, lambda i: (0, 0, 0)),
            pl.BlockSpec(b2t.shape, lambda i: (0, 0)),
            pl.BlockSpec(wfcp.shape, lambda i: (0, 0)),
            pl.BlockSpec(bfcp.shape, lambda i: (0, 0)),
        ],
        out_specs=pl.BlockSpec((tb, N_OUT_PAD), lambda i: (i, 0)),
        compiler_params=pltpu.CompilerParams(
            dimension_semantics=("parallel",),
            vmem_limit_bytes=32 * 1024 * 1024),
    )(x_rows, w1, b1t, w2b, b2t, wfcp, bfcp)

    return out[:n, :N_CLASSES]


def init_params(key):
    """Deterministic synthetic weights in PyTorch-convention shapes."""
    ks = jax.random.split(key, 6)
    w1 = jax.random.normal(ks[0], (C1, 1, K, K), jnp.float32) * 0.1   # (O,I,KH,KW)
    b1 = jax.random.normal(ks[1], (C1,), jnp.float32) * 0.1
    w2 = jax.random.normal(ks[2], (C2, C1, K, K), jnp.float32) * 0.05
    b2 = jax.random.normal(ks[3], (C2,), jnp.float32) * 0.1
    wfc = jax.random.normal(ks[4], (N_CLASSES, C2 * 4 * 4), jnp.float32) * 0.05
    bfc = jax.random.normal(ks[5], (N_CLASSES,), jnp.float32) * 0.1
    return w1, b1, w2, b2, wfc, bfc


def cnn_reference(x_nchw, params):
    """Pure-JAX f32 reference mirroring the PyTorch forward semantics."""
    w1_t, b1, w2_t, b2, wfc_t, bfc = params
    x = jnp.transpose(x_nchw, (0, 2, 3, 1)).astype(jnp.float32)       # NHWC
    dn = ('NHWC', 'HWIO', 'NHWC')
    w1 = jnp.transpose(w1_t, (2, 3, 1, 0))
    w2 = jnp.transpose(w2_t, (2, 3, 1, 0))
    y = lax.conv_general_dilated(x, w1, (1, 1), [(PAD, PAD), (PAD, PAD)],
                                 dimension_numbers=dn)
    y = jnp.maximum(y + b1, 0.0)
    y = lax.reduce_window(y, -jnp.inf, lax.max, (1, 2, 2, 1), (1, 2, 2, 1),
                          'VALID')
    y = lax.conv_general_dilated(y, w2, (1, 1), [(PAD, PAD), (PAD, PAD)],
                                 dimension_numbers=dn)
    y = jnp.maximum(y + b2, 0.0)
    y = lax.reduce_window(y, -jnp.inf, lax.max, (1, 2, 2, 1), (1, 2, 2, 1),
                          'VALID')
    # PyTorch flattens NCHW order.
    y = jnp.transpose(y, (0, 3, 1, 2)).reshape(y.shape[0], -1)        # (N, 512)
    return y @ wfc_t.T + bfc


if __name__ == "__main__":
    key = jax.random.PRNGKey(0)
    kx, kp = jax.random.split(key)
    x = jax.random.normal(kx, (2, 1, 16, 16), jnp.float32)   # NCHW, in_channels=1
    params = init_params(kp)
    prepared = prepare_params(params)        # one-time host-side weight prep

    out = cnn_forward(x, prepared)
    out = jax.block_until_ready(out)
    assert out.shape == (2, N_CLASSES)

    ref = cnn_reference(x, params)
    # bf16 MXU operands with f32 accumulation vs. a pure-f32 reference.
    np.testing.assert_allclose(np.asarray(out), np.asarray(ref),
                               rtol=3e-2, atol=3e-2)
    print("KERNEL_OK")
</pallas_src>

<mosaic_0001>
module attributes {stable_mosaic.version = 11 : i64} {
  func.func @cnn_kernel(%arg0: i32, %arg1: memref<128x100xbf16, #tpu.memory_space<vmem>>, %arg2: memref<100x256xbf16, #tpu.memory_space<vmem>>, %arg3: memref<1x256xf32, #tpu.memory_space<vmem>>, %arg4: memref<5x256x256xbf16, #tpu.memory_space<vmem>>, %arg5: memref<1x256xf32, #tpu.memory_space<vmem>>, %arg6: memref<1024x128xbf16, #tpu.memory_space<vmem>>, %arg7: memref<1x128xf32, #tpu.memory_space<vmem>>, %arg8: memref<8x128xf32, #tpu.memory_space<vmem>>) attributes {dimension_semantics = [#tpu.dimension_semantics<parallel>], iteration_bounds = array<i64: 1>, scalar_prefetch = 0 : i64, scratch_operands = 0 : i64, tpu.core_type = #tpu.core_type<tc>, window_params = [{transform_indices = @transform_0, window_bounds = array<i64: 128, 100>}, {pipeline_mode = #tpu.pipeline_mode<synchronous>, transform_indices = @transform_1, window_bounds = array<i64: 100, 256>}, {pipeline_mode = #tpu.pipeline_mode<synchronous>, transform_indices = @transform_2, window_bounds = array<i64: 1, 256>}, {pipeline_mode = #tpu.pipeline_mode<synchronous>, transform_indices = @transform_3, window_bounds = array<i64: 5, 256, 256>}, {pipeline_mode = #tpu.pipeline_mode<synchronous>, transform_indices = @transform_4, window_bounds = array<i64: 1, 256>}, {pipeline_mode = #tpu.pipeline_mode<synchronous>, transform_indices = @transform_5, window_bounds = array<i64: 1024, 128>}, {pipeline_mode = #tpu.pipeline_mode<synchronous>, transform_indices = @transform_6, window_bounds = array<i64: 1, 128>}, {transform_indices = @transform_7, window_bounds = array<i64: 8, 128>}]} {
    %c0 = arith.constant 0 : index
    %c0_0 = arith.constant 0 : index
    %0 = vector.load %arg1[%c0, %c0_0] : memref<128x100xbf16, #tpu.memory_space<vmem>>, vector<128x100xbf16>
    %c0_1 = arith.constant 0 : index
    %c0_2 = arith.constant 0 : index
    %1 = vector.load %arg2[%c0_1, %c0_2] : memref<100x256xbf16, #tpu.memory_space<vmem>>, vector<100x256xbf16>
    %cst = arith.constant dense<0.000000e+00> : vector<128x256xf32>
    %2 = tpu.matmul %0, %1, %cst {dimension_numbers = #tpu.dot_dimension_numbers<[1], [0], [0], [1], [0, 0, 1, 1], [], []>} : vector<128x100xbf16>, vector<100x256xbf16>, vector<128x256xf32> -> vector<128x256xf32>
    %c0_3 = arith.constant 0 : index
    %c0_4 = arith.constant 0 : index
    %3 = vector.load %arg3[%c0_3, %c0_4] : memref<1x256xf32, #tpu.memory_space<vmem>>, vector<1x256xf32>
    %4 = vector.broadcast %3 : vector<1x256xf32> to vector<128x256xf32>
    %5 = arith.addf %2, %4 : vector<128x256xf32>
    %cst_5 = arith.constant 0.000000e+00 : f32
    %6 = vector.broadcast %cst_5 : f32 to vector<128x256xf32>
    %7 = arith.maximumf %5, %6 : vector<128x256xf32>
    %8 = vector.extract_strided_slice %7 {offsets = [0, 16], sizes = [128, 240], strides = [1, 1]} : vector<128x256xf32> to vector<128x240xf32>
    %9 = vector.extract_strided_slice %7 {offsets = [0, 0], sizes = [128, 16], strides = [1, 1]} : vector<128x256xf32> to vector<128x16xf32>
    %10 = tpu.concatenate %8, %9 in 1 : vector<128x240xf32>, vector<128x16xf32> -> vector<128x256xf32>
    %11 = arith.maximumf %7, %10 : vector<128x256xf32>
    %12 = vector.shape_cast %11 : vector<128x256xf32> to vector<64x512xf32>
    %13 = vector.extract_strided_slice %12 {offsets = [0, 0], sizes = [64, 256], strides = [1, 1]} : vector<64x512xf32> to vector<64x256xf32>
    %14 = vector.extract_strided_slice %12 {offsets = [0, 256], sizes = [64, 256], strides = [1, 1]} : vector<64x512xf32> to vector<64x256xf32>
    %15 = arith.maximumf %13, %14 : vector<64x256xf32>
    %cst_6 = arith.constant 0.000000e+00 : f32
    %16 = vector.broadcast %cst_6 : f32 to vector<8x2x256xf32>
    %17 = vector.shape_cast %15 : vector<64x256xf32> to vector<8x8x256xf32>
    %18 = tpu.concatenate %16, %17, %16 in 1 : vector<8x2x256xf32>, vector<8x8x256xf32>, vector<8x2x256xf32> -> vector<8x12x256xf32>
    %19 = arith.truncf %18 : vector<8x12x256xf32> to vector<8x12x256xbf16>
    %cst_7 = arith.constant 0.000000e+00 : f32
    %20 = vector.broadcast %cst_7 : f32 to vector<64x256xf32>
    %21 = vector.extract_strided_slice %19 {offsets = [0, 0, 0], sizes = [8, 8, 256], strides = [1, 1, 1]} : vector<8x12x256xbf16> to vector<8x8x256xbf16>
    %22 = vector.shape_cast %21 : vector<8x8x256xbf16> to vector<64x256xbf16>
    %c0_8 = arith.constant 0 : index
    %c0_9 = arith.constant 0 : index
    %c0_10 = arith.constant 0 : index
    %23 = vector.load %arg4[%c0_8, %c0_9, %c0_10] : memref<5x256x256xbf16, #tpu.memory_space<vmem>>, vector<1x256x256xbf16>
    %24 = vector.shape_cast %23 : vector<1x256x256xbf16> to vector<256x256xbf16>
    %cst_11 = arith.constant dense<0.000000e+00> : vector<64x256xf32>
    %25 = tpu.matmul %22, %24, %cst_11 {dimension_numbers = #tpu.dot_dimension_numbers<[1], [0], [0], [1], [0, 0, 1, 1], [], []>} : vector<64x256xbf16>, vector<256x256xbf16>, vector<64x256xf32> -> vector<64x256xf32>
    %26 = arith.addf %20, %25 : vector<64x256xf32>
    %27 = vector.extract_strided_slice %19 {offsets = [0, 1, 0], sizes = [8, 8, 256], strides = [1, 1, 1]} : vector<8x12x256xbf16> to vector<8x8x256xbf16>
    %28 = vector.shape_cast %27 : vector<8x8x256xbf16> to vector<64x256xbf16>
    %c1 = arith.constant 1 : index
    %c0_12 = arith.constant 0 : index
    %c0_13 = arith.constant 0 : index
    %29 = vector.load %arg4[%c1, %c0_12, %c0_13] : memref<5x256x256xbf16, #tpu.memory_space<vmem>>, vector<1x256x256xbf16>
    %30 = vector.shape_cast %29 : vector<1x256x256xbf16> to vector<256x256xbf16>
    %cst_14 = arith.constant dense<0.000000e+00> : vector<64x256xf32>
    %31 = tpu.matmul %28, %30, %cst_14 {dimension_numbers = #tpu.dot_dimension_numbers<[1], [0], [0], [1], [0, 0, 1, 1], [], []>} : vector<64x256xbf16>, vector<256x256xbf16>, vector<64x256xf32> -> vector<64x256xf32>
    %32 = arith.addf %26, %31 : vector<64x256xf32>
    %33 = vector.extract_strided_slice %19 {offsets = [0, 2, 0], sizes = [8, 8, 256], strides = [1, 1, 1]} : vector<8x12x256xbf16> to vector<8x8x256xbf16>
    %34 = vector.shape_cast %33 : vector<8x8x256xbf16> to vector<64x256xbf16>
    %c2 = arith.constant 2 : index
    %c0_15 = arith.constant 0 : index
    %c0_16 = arith.constant 0 : index
    %35 = vector.load %arg4[%c2, %c0_15, %c0_16] : memref<5x256x256xbf16, #tpu.memory_space<vmem>>, vector<1x256x256xbf16>
    %36 = vector.shape_cast %35 : vector<1x256x256xbf16> to vector<256x256xbf16>
    %cst_17 = arith.constant dense<0.000000e+00> : vector<64x256xf32>
    %37 = tpu.matmul %34, %36, %cst_17 {dimension_numbers = #tpu.dot_dimension_numbers<[1], [0], [0], [1], [0, 0, 1, 1], [], []>} : vector<64x256xbf16>, vector<256x256xbf16>, vector<64x256xf32> -> vector<64x256xf32>
    %38 = arith.addf %32, %37 : vector<64x256xf32>
    %39 = vector.extract_strided_slice %19 {offsets = [0, 3, 0], sizes = [8, 8, 256], strides = [1, 1, 1]} : vector<8x12x256xbf16> to vector<8x8x256xbf16>
    %40 = vector.shape_cast %39 : vector<8x8x256xbf16> to vector<64x256xbf16>
    %c3 = arith.constant 3 : index
    %c0_18 = arith.constant 0 : index
    %c0_19 = arith.constant 0 : index
    %41 = vector.load %arg4[%c3, %c0_18, %c0_19] : memref<5x256x256xbf16, #tpu.memory_space<vmem>>, vector<1x256x256xbf16>
    %42 = vector.shape_cast %41 : vector<1x256x256xbf16> to vector<256x256xbf16>
    %cst_20 = arith.constant dense<0.000000e+00> : vector<64x256xf32>
    %43 = tpu.matmul %40, %42, %cst_20 {dimension_numbers = #tpu.dot_dimension_numbers<[1], [0], [0], [1], [0, 0, 1, 1], [], []>} : vector<64x256xbf16>, vector<256x256xbf16>, vector<64x256xf32> -> vector<64x256xf32>
    %44 = arith.addf %38, %43 : vector<64x256xf32>
    %45 = vector.extract_strided_slice %19 {offsets = [0, 4, 0], sizes = [8, 8, 256], strides = [1, 1, 1]} : vector<8x12x256xbf16> to vector<8x8x256xbf16>
    %46 = vector.shape_cast %45 : vector<8x8x256xbf16> to vector<64x256xbf16>
    %c4 = arith.constant 4 : index
    %c0_21 = arith.constant 0 : index
    %c0_22 = arith.constant 0 : index
    %47 = vector.load %arg4[%c4, %c0_21, %c0_22] : memref<5x256x256xbf16, #tpu.memory_space<vmem>>, vector<1x256x256xbf16>
    %48 = vector.shape_cast %47 : vector<1x256x256xbf16> to vector<256x256xbf16>
    %cst_23 = arith.constant dense<0.000000e+00> : vector<64x256xf32>
    %49 = tpu.matmul %46, %48, %cst_23 {dimension_numbers = #tpu.dot_dimension_numbers<[1], [0], [0], [1], [0, 0, 1, 1], [], []>} : vector<64x256xbf16>, vector<256x256xbf16>, vector<64x256xf32> -> vector<64x256xf32>
    %50 = arith.addf %44, %49 : vector<64x256xf32>
    %c0_24 = arith.constant 0 : index
    %c0_25 = arith.constant 0 : index
    %51 = vector.load %arg5[%c0_24, %c0_25] : memref<1x256xf32, #tpu.memory_space<vmem>>, vector<1x256xf32>
    %52 = vector.broadcast %51 : vector<1x256xf32> to vector<64x256xf32>
    %53 = arith.addf %50, %52 : vector<64x256xf32>
    %cst_26 = arith.constant 0.000000e+00 : f32
    %54 = vector.broadcast %cst_26 : f32 to vector<64x256xf32>
    %55 = arith.maximumf %53, %54 : vector<64x256xf32>
    %56 = vector.extract_strided_slice %55 {offsets = [0, 32], sizes = [64, 224], strides = [1, 1]} : vector<64x256xf32> to vector<64x224xf32>
    %57 = vector.extract_strided_slice %55 {offsets = [0, 0], sizes = [64, 32], strides = [1, 1]} : vector<64x256xf32> to vector<64x32xf32>
    %58 = tpu.concatenate %56, %57 in 1 : vector<64x224xf32>, vector<64x32xf32> -> vector<64x256xf32>
    %59 = arith.maximumf %55, %58 : vector<64x256xf32>
    %60 = vector.shape_cast %59 : vector<64x256xf32> to vector<32x512xf32>
    %61 = vector.extract_strided_slice %60 {offsets = [0, 0], sizes = [32, 256], strides = [1, 1]} : vector<32x512xf32> to vector<32x256xf32>
    %62 = vector.extract_strided_slice %60 {offsets = [0, 256], sizes = [32, 256], strides = [1, 1]} : vector<32x512xf32> to vector<32x256xf32>
    %63 = arith.maximumf %61, %62 : vector<32x256xf32>
    %64 = vector.shape_cast %63 : vector<32x256xf32> to vector<8x1024xf32>
    %65 = arith.truncf %64 : vector<8x1024xf32> to vector<8x1024xbf16>
    %c0_27 = arith.constant 0 : index
    %c0_28 = arith.constant 0 : index
    %66 = vector.load %arg6[%c0_27, %c0_28] : memref<1024x128xbf16, #tpu.memory_space<vmem>>, vector<1024x128xbf16>
    %cst_29 = arith.constant dense<0.000000e+00> : vector<8x128xf32>
    %67 = tpu.matmul %65, %66, %cst_29 {dimension_numbers = #tpu.dot_dimension_numbers<[1], [0], [0], [1], [0, 0, 1, 1], [], []>} : vector<8x1024xbf16>, vector<1024x128xbf16>, vector<8x128xf32> -> vector<8x128xf32>
    %c0_30 = arith.constant 0 : index
    %c0_31 = arith.constant 0 : index
    %68 = vector.load %arg7[%c0_30, %c0_31] : memref<1x128xf32, #tpu.memory_space<vmem>>, vector<1x128xf32>
    %69 = vector.broadcast %68 : vector<1x128xf32> to vector<8x128xf32>
    %70 = arith.addf %67, %69 : vector<8x128xf32>
    %c0_32 = arith.constant 0 : index
    %c0_33 = arith.constant 0 : index
    %71 = vector.load %arg8[%c0_32, %c0_33] : memref<8x128xf32, #tpu.memory_space<vmem>>, vector<8x128xf32>
    tpu.vector_store %arg8[%c0_32, %c0_33], %70 {strides = array<i32>} : memref<8x128xf32, #tpu.memory_space<vmem>>, vector<8x128xf32>,
    return
  }
  func.func @transform_0(%arg0: i32) -> (i32, i32) {
    %c0_i32 = arith.constant 0 : i32
    %c0_i32_0 = arith.constant 0 : i32
    return %arg0, %c0_i32 : i32, i32
  }
  func.func @transform_1(%arg0: i32) -> (i32, i32) {
    %c0_i32 = arith.constant 0 : i32
    %c0_i32_0 = arith.constant 0 : i32
    %c0_i32_1 = arith.constant 0 : i32
    return %c0_i32, %c0_i32_0 : i32, i32
  }
  func.func @transform_2(%arg0: i32) -> (i32, i32) {
    %c0_i32 = arith.constant 0 : i32
    %c0_i32_0 = arith.constant 0 : i32
    %c0_i32_1 = arith.constant 0 : i32
    return %c0_i32, %c0_i32_0 : i32, i32
  }
  func.func @transform_3(%arg0: i32) -> (i32, i32, i32) {
    %c0_i32 = arith.constant 0 : i32
    %c0_i32_0 = arith.constant 0 : i32
    %c0_i32_1 = arith.constant 0 : i32
    %c0_i32_2 = arith.constant 0 : i32
    return %c0_i32, %c0_i32_0, %c0_i32_1 : i32, i32, i32
  }
  func.func @transform_4(%arg0: i32) -> (i32, i32) {
    %c0_i32 = arith.constant 0 : i32
    %c0_i32_0 = arith.constant 0 : i32
    %c0_i32_1 = arith.constant 0 : i32
    return %c0_i32, %c0_i32_0 : i32, i32
  }
  func.func @transform_5(%arg0: i32) -> (i32, i32) {
    %c0_i32 = arith.constant 0 : i32
    %c0_i32_0 = arith.constant 0 : i32
    %c0_i32_1 = arith.constant 0 : i32
    return %c0_i32, %c0_i32_0 : i32, i32
  }
  func.func @transform_6(%arg0: i32) -> (i32, i32) {
    %c0_i32 = arith.constant 0 : i32
    %c0_i32_0 = arith.constant 0 : i32
    %c0_i32_1 = arith.constant 0 : i32
    return %c0_i32, %c0_i32_0 : i32, i32
  }
  func.func @transform_7(%arg0: i32) -> (i32, i32) {
    %c0_i32 = arith.constant 0 : i32
    %c0_i32_0 = arith.constant 0 : i32
    return %arg0, %c0_i32 : i32, i32
  }
}

</mosaic_0001>

<llo_original>
// kernel: cnn_forward.1
$region0: #{cnn_forward.1}
  #allocation0 [shape = 'u32[]', space=smem, size = 0x4, offset = 0x4, fixed_abs, tag = 'smem constant byte address 0x4 - core index']
  #allocation1 [shape = 'u32[144,128]{1,0:T(1,128)}', space=vmem, size = 0x12000, scoped, tag = 'internal scratch']
  %s0 = inlined_call_operand.vmem [shape: bf16[128,100], index: 0, kind: input, shape index: {}]
  %s1 = inlined_call_operand.vmem [shape: bf16[100,256], index: 1, kind: input, shape index: {}]
  %s2 = inlined_call_operand.vmem [shape: f32[1,256], index: 2, kind: input, shape index: {}]
  %s3 = inlined_call_operand.hbm [shape: bf16[5,256,256], index: 3, kind: input, shape index: {}]
  %s4 = inlined_call_operand.vmem [shape: f32[1,256], index: 4, kind: input, shape index: {}]
  %s5 = inlined_call_operand.hbm [shape: bf16[1024,128], index: 5, kind: input, shape index: {}]
  %s6 = inlined_call_operand.vmem [shape: f32[1,128], index: 6, kind: input, shape index: {}]
  %s7 = inlined_call_operand.vmem [shape: f32[8,128], index: 7, kind: output, shape index: {}]
  %s8 = sld [smem:[#allocation0]]
  $region46: #{cnn_forward.1} parent=0
    _
  %s10 = ssub.s32 1, %s8
  %s11 = scalar_select 0, %s10, %s8
  $region1: #{cnn_forward.1} parent=0
    #allocation2 [shape = 'u8[655360]{0}', space=vmem, size = 0xa0000, scoped, tag = 'input window, operand 3, single buffered']
    #allocation3 [shape = 's32[1]{0}', space=sflag, size = 0x4, scoped, tag = 'scoped memory for cnn_forward.1']
    #allocation4 [shape = 'u8[262144]{0}', space=vmem, size = 0x40000, scoped, tag = 'input window, operand 5, single buffered']
    #allocation5 [shape = 's32[1]{0}', space=sflag, size = 0x4, scoped, tag = 'scoped memory for cnn_forward.1']
    %12 = vsyncpa [#allocation3], 0
    %13 = vsyncpa [#allocation5], 0
    // Predicated region
    $region2: #{cnn_forward.1} parent=1 // pred_check
      _
    $region3: #{cnn_forward.1} parent=1 // pred_check_branch
      %15 = sbr.rel (0) target = $region5
    $region4: #{cnn_forward.1} parent=1 // pred_region
      _
    $region5: #{cnn_forward.1} parent=1 // pred_fallthru
      _
    // Predicated region
    $region6: #{cnn_forward.1} parent=1 // pred_check
      _
    $region7: #{cnn_forward.1} parent=1 // pred_check_branch
      %17 = sbr.rel (0) target = $region9
    $region8: #{cnn_forward.1} parent=1 // pred_region
      _
    $region9: #{cnn_forward.1} parent=1 // pred_fallthru
      _
    // Predicated region
    $region10: #{cnn_forward.1} parent=1 // pred_check
      _
    $region11: #{cnn_forward.1} parent=1 // pred_check_branch
      %19 = sbr.rel (0) target = $region13
    $region12: #{cnn_forward.1} parent=1 // pred_region
      _
    $region13: #{cnn_forward.1} parent=1 // pred_fallthru
      _
    // Predicated region
    $region14: #{cnn_forward.1} parent=1 // pred_check
      _
    $region15: #{cnn_forward.1} parent=1 // pred_check_branch
      %21 = sbr.rel (0) target = $region17
    $region16: #{cnn_forward.1} parent=1 // pred_region
      %s23 = ssub.s32 20480, 20480
      %24 = vsyncadd [#allocation3], %s23
      %s25 = sshll.u32 [#allocation2], 4
      %s26 = int_to_ptr.vmem [resolvable:$true] %s25
      %31 = dma.hbm_to_vmem [thread:$0]  %s3, 20480, %s26, [#allocation3], 128, 128, 8
    $region17: #{cnn_forward.1} parent=1 // pred_fallthru
      _
    // Predicated region
    $region18: #{cnn_forward.1} parent=1 // pred_check
      _
    $region19: #{cnn_forward.1} parent=1 // pred_check_branch
      %33 = sbr.rel (0) target = $region21
    $region20: #{cnn_forward.1} parent=1 // pred_region
      _
    $region21: #{cnn_forward.1} parent=1 // pred_fallthru
      _
    // Predicated region
    $region22: #{cnn_forward.1} parent=1 // pred_check
      _
    $region23: #{cnn_forward.1} parent=1 // pred_check_branch
      %35 = sbr.rel (0) target = $region25
    $region24: #{cnn_forward.1} parent=1 // pred_region
      %s37 = ssub.s32 8192, 8192
      %38 = vsyncadd [#allocation5], %s37
      %s39 = sshll.u32 [#allocation4], 4
      %s40 = int_to_ptr.vmem [resolvable:$true] %s39
      %45 = dma.hbm_to_vmem [thread:$0]  %s5, 8192, %s40, [#allocation5], 64, 64, 4
    $region25: #{cnn_forward.1} parent=1 // pred_fallthru
      _
    // Predicated region
    $region26: #{cnn_forward.1} parent=1 // pred_check
      _
    $region27: #{cnn_forward.1} parent=1 // pred_check_branch
      %47 = sbr.rel (0) target = $region29
    $region28: #{cnn_forward.1} parent=1 // pred_region
      _
    $region29: #{cnn_forward.1} parent=1 // pred_fallthru
      _
    // Predicated region
    $region30: #{cnn_forward.1} parent=1 // pred_check
      _
    $region31: #{cnn_forward.1} parent=1 // pred_check_branch
      %49 = sbr.rel (0) target = $region33
    $region32: #{cnn_forward.1} parent=1 // pred_region
      %50 = dma.done [#allocation3], 20480
    $region33: #{cnn_forward.1} parent=1 // pred_fallthru
      _
    // Predicated region
    $region34: #{cnn_forward.1} parent=1 // pred_check
      _
    $region35: #{cnn_forward.1} parent=1 // pred_check_branch
      %52 = sbr.rel (0) target = $region37
    $region36: #{cnn_forward.1} parent=1 // pred_region
      %53 = dma.done [#allocation5], 8192
    $region37: #{cnn_forward.1} parent=1 // pred_fallthru
      _
    %v55 = vld [vmem:[%s0] sm:$0xf]
    %v56 = vld [vmem:[%s0 + $0x4] sm:$0xf]
    %v57 = vld [vmem:[%s0 + $0x8] sm:$0xf]
    %v58 = vld [vmem:[%s0 + $0xc] sm:$0xf]
    %v59 = vld [vmem:[%s0 + $0x10] sm:$0xf]
    %v60 = vld [vmem:[%s0 + $0x14] sm:$0xf]
    %v61 = vld [vmem:[%s0 + $0x18] sm:$0xf]
    %v62 = vld [vmem:[%s0 + $0x1c] sm:$0xf]
    %v63 = vld [vmem:[%s0 + $0x20] sm:$0xf]
    %v64 = vld [vmem:[%s0 + $0x24] sm:$0xf]
    %v65 = vld [vmem:[%s0 + $0x28] sm:$0xf]
    %v66 = vld [vmem:[%s0 + $0x2c] sm:$0xf]
    %v67 = vld [vmem:[%s0 + $0x30] sm:$0xf]
    %v68 = vld [vmem:[%s0 + $0x34] sm:$0xf]
    %v69 = vld [vmem:[%s0 + $0x38] sm:$0xf]
    %v70 = vld [vmem:[%s0 + $0x3c] sm:$0xf]
    %v71 = vld [vmem:[%s1] sm:$0xff]
    %v72 = vld [vmem:[%s1 + $0x8] sm:$0xff]
    %v73 = vld [vmem:[%s1 + $0x10] sm:$0xff]
    %v74 = vld [vmem:[%s1 + $0x18] sm:$0xff]
    %v75 = vld [vmem:[%s1 + $0x20] sm:$0xff]
    %v76 = vld [vmem:[%s1 + $0x28] sm:$0xff]
    %v77 = vld [vmem:[%s1 + $0x30] sm:$0xff]
    %v78 = vld [vmem:[%s1 + $0x38] sm:$0xff]
    %v79 = vld [vmem:[%s1 + $0x40] sm:$0xff]
    %v80 = vld [vmem:[%s1 + $0x48] sm:$0xff]
    %v81 = vld [vmem:[%s1 + $0x50] sm:$0xff]
    %v82 = vld [vmem:[%s1 + $0x58] sm:$0xff]
    %v83 = vld [vmem:[%s1 + $0x60] sm:$0x33]
    %v84 = vld [vmem:[%s2] sm:$0x3]
    %v86 = vlaneseq
    %v87 = vshrl.u32 %v86, 7
    %v88 = vsub.s32 0, %v87
    %v89 = vrot.slane %v84, %v88
    %v90 = vlaneseq
    %v91 = vshrl.u32 %v90, 7
    %v92 = vsub.s32 1, %v91
    %v93 = vrot.slane %v84, %v92
    %v112 = vunpack.c.l.b16 %v55
    %v113 = vunpack.c.l.b16 %v56
    %v114 = vunpack.c.l.b16 %v57
    %v115 = vunpack.c.l.b16 %v58
    %v116 = vunpack.c.l.b16 %v59
    %v117 = vunpack.c.l.b16 %v60
    %v118 = vunpack.c.l.b16 %v61
    %v119 = vunpack.c.l.b16 %v62
    %v120 = vunpack.c.l.b16 %v63
    %v121 = vunpack.c.l.b16 %v64
    %v122 = vunpack.c.l.b16 %v65
    %v123 = vunpack.c.l.b16 %v66
    %v124 = vunpack.c.l.b16 %v67
    %v125 = vunpack.c.l.b16 %v68
    %v126 = vunpack.c.l.b16 %v69
    %v127 = vunpack.c.l.b16 %v70
    %v128 = vpack.c.b16 %v113, %v112
    %v129 = vpack.c.b16 %v115, %v114
    %v130 = vpack.c.b16 %v117, %v116
    %v131 = vpack.c.b16 %v119, %v118
    %v132 = vpack.c.b16 %v121, %v120
    %v133 = vpack.c.b16 %v123, %v122
    %v134 = vpack.c.b16 %v125, %v124
    %v135 = vpack.c.b16 %v127, %v126
    %v149 = vunpack.c.l.b16 %v71
    %v150 = vunpack.c.h.b16 %v71
    %v151 = vunpack.c.l.b16 %v72
    %v152 = vunpack.c.h.b16 %v72
    %v153 = vunpack.c.l.b16 %v73
    %v154 = vunpack.c.h.b16 %v73
    %v155 = vunpack.c.l.b16 %v74
    %v156 = vunpack.c.h.b16 %v74
    %v157 = vunpack.c.l.b16 %v75
    %v158 = vunpack.c.h.b16 %v75
    %v159 = vunpack.c.l.b16 %v76
    %v160 = vunpack.c.h.b16 %v76
    %v161 = vunpack.c.l.b16 %v77
    %v162 = vunpack.c.h.b16 %v77
    %v163 = vunpack.c.l.b16 %v78
    %v164 = vunpack.c.h.b16 %v78
    %v165 = vunpack.c.l.b16 %v79
    %v166 = vunpack.c.h.b16 %v79
    %v167 = vunpack.c.l.b16 %v80
    %v168 = vunpack.c.h.b16 %v80
    %v169 = vunpack.c.l.b16 %v81
    %v170 = vunpack.c.h.b16 %v81
    %v171 = vunpack.c.l.b16 %v82
    %v172 = vunpack.c.h.b16 %v82
    %v173 = vunpack.c.l.b16 %v83
    %v174 = vunpack.c.h.b16 %v83
    %v175 = vpack.c.b16 %v151, %v149
    %v176 = vpack.c.b16 %v152, %v150
    %v177 = vpack.c.b16 %v155, %v153
    %v178 = vpack.c.b16 %v156, %v154
    %v179 = vpack.c.b16 %v159, %v157
    %v180 = vpack.c.b16 %v160, %v158
    %v181 = vpack.c.b16 %v163, %v161
    %v182 = vpack.c.b16 %v164, %v162
    %v183 = vpack.c.b16 %v167, %v165
    %v184 = vpack.c.b16 %v168, %v166
    %v185 = vpack.c.b16 %v171, %v169
    %v186 = vpack.c.b16 %v172, %v170
    %v187 = vpack.c.b16 %v173, %v173
    %v188 = vpack.c.b16 %v174, %v174
    %vm201 = vcmask 818176
    %v203 = vsel %vm201, %v128, 0
    %v206 = vsel %vm201, %v129, 0
    %v209 = vsel %vm201, %v130, 0
    %v212 = vsel %vm201, %v131, 0
    %v215 = vsel %vm201, %v132, 0
    %v218 = vsel %vm201, %v133, 0
    %v221 = vsel %vm201, %v134, 0
    %v224 = vsel %vm201, %v135, 0
    %vm226 = vcmask 1041408
    %v228 = vsel %vm226, %v187, 0
    %v231 = vsel %vm226, %v188, 0
    %233 = vmatprep.subr.bf16.mxu0 %v176
    %234 = vmatpush1.bf16.msra.mxu0 %v175
    %235 = vmatprep.subr.bf16.mxu0 %v178
    %236 = vmatpush1.bf16.msra.mxu0 %v177
    %237 = vmatprep.subr.bf16.mxu0 %v180
    %238 = vmatpush1.bf16.msra.mxu0 %v179
    %239 = vmatprep.subr.bf16.mxu0 %v182
    %240 = vmatpush1.bf16.msra.mxu0 %v181
    %241 = vmatprep.subr.bf16.mxu0 %v184
    %242 = vmatpush1.bf16.msra.mxu0 %v183
    %243 = vmatprep.subr.bf16.mxu0 %v186
    %244 = vmatpush1.bf16.msra.mxu0 %v185
    %245 = vmatprep.subr.bf16.mxu0 %v231
    %246 = vmatpush1.bf16.msra.mxu0 %v228
    %247 = vmatprep.subr.bf16.mxu0 0
    %248 = vmatpush1.bf16.msra.mxu0 0
    %249 = vmatprep.subr.bf16.mxu0 0
    %250 = vmatpush1.bf16.msra.mxu0 0
    %251 = vmatprep.subr.bf16.mxu0 0
    %252 = vmatpush1.bf16.msra.mxu0 0
    %253 = vmatprep.subr.bf16.mxu0 0
    %254 = vmatpush1.bf16.msra.mxu0 0
    %255 = vmatprep.subr.bf16.mxu0 0
    %256 = vmatpush1.bf16.msra.mxu0 0
    %257 = vmatprep.subr.bf16.mxu0 0
    %258 = vmatpush1.bf16.msra.mxu0 0
    %259 = vmatprep.subr.bf16.mxu0 0
    %260 = vmatpush1.bf16.msra.mxu0 0
    %261 = vmatprep.subr.bf16.mxu0 0
    %262 = vmatpush1.bf16.msra.mxu0 0
    %263 = vmatprep.subr.bf16.mxu0 0
    %264 = vmatpush1.bf16.msra.mxu0 0
    %265 = vmatprep.mubr.bf16.mxu0 0
    %266 = vmatmul.mubr.bf16.gmra.mrb[0].mxu0 %v203
    %v267 = vpop.f32.mrb[0].mxu0
    %v268 = vadd.f32 %v89, %v267
    %v269 = vpop.f32.mrb[0].mxu0
    %v270 = vadd.f32 %v93, %v269
    %v271 = vpop.f32.mrb[0].mxu0
    %v272 = vadd.f32 %v89, %v271
    %v273 = vpop.f32.mrb[0].mxu0
    %v274 = vadd.f32 %v93, %v273
    %275 = vmatprep.mubr.bf16.mxu0 0
    %276 = vmatmul.mubr.bf16.gmra.mrb[0].mxu0 %v206
    %v277 = vpop.f32.mrb[0].mxu0
    %v278 = vadd.f32 %v89, %v277
    %v279 = vpop.f32.mrb[0].mxu0
    %v280 = vadd.f32 %v93, %v279
    %v281 = vpop.f32.mrb[0].mxu0
    %v282 = vadd.f32 %v89, %v281
    %v283 = vpop.f32.mrb[0].mxu0
    %v284 = vadd.f32 %v93, %v283
    %285 = vmatprep.mubr.bf16.mxu0 0
    %286 = vmatmul.mubr.bf16.gmra.mrb[0].mxu0 %v209
    %v287 = vpop.f32.mrb[0].mxu0
    %v288 = vadd.f32 %v89, %v287
    %v289 = vpop.f32.mrb[0].mxu0
    %v290 = vadd.f32 %v93, %v289
    %v291 = vpop.f32.mrb[0].mxu0
    %v292 = vadd.f32 %v89, %v291
    %v293 = vpop.f32.mrb[0].mxu0
    %v294 = vadd.f32 %v93, %v293
    %295 = vmatprep.mubr.bf16.mxu0 0
    %296 = vmatmul.mubr.bf16.gmra.mrb[0].mxu0 %v212
    %v297 = vpop.f32.mrb[0].mxu0
    %v298 = vadd.f32 %v89, %v297
    %v299 = vpop.f32.mrb[0].mxu0
    %v300 = vadd.f32 %v93, %v299
    %v301 = vpop.f32.mrb[0].mxu0
    %v302 = vadd.f32 %v89, %v301
    %v303 = vpop.f32.mrb[0].mxu0
    %v304 = vadd.f32 %v93, %v303
    %305 = vmatprep.mubr.bf16.mxu0 0
    %306 = vmatmul.mubr.bf16.gmra.mrb[0].mxu0 %v215
    %v307 = vpop.f32.mrb[0].mxu0
    %v308 = vadd.f32 %v89, %v307
    %v309 = vpop.f32.mrb[0].mxu0
    %v310 = vadd.f32 %v93, %v309
    %v311 = vpop.f32.mrb[0].mxu0
    %v312 = vadd.f32 %v89, %v311
    %v313 = vpop.f32.mrb[0].mxu0
    %v314 = vadd.f32 %v93, %v313
    %315 = vmatprep.mubr.bf16.mxu0 0
    %316 = vmatmul.mubr.bf16.gmra.mrb[0].mxu0 %v218
    %v317 = vpop.f32.mrb[0].mxu0
    %v318 = vadd.f32 %v89, %v317
    %v319 = vpop.f32.mrb[0].mxu0
    %v320 = vadd.f32 %v93, %v319
    %v321 = vpop.f32.mrb[0].mxu0
    %v322 = vadd.f32 %v89, %v321
    %v323 = vpop.f32.mrb[0].mxu0
    %v324 = vadd.f32 %v93, %v323
    %325 = vmatprep.mubr.bf16.mxu0 0
    %326 = vmatmul.mubr.bf16.gmra.mrb[0].mxu0 %v221
    %v327 = vpop.f32.mrb[0].mxu0
    %v328 = vadd.f32 %v89, %v327
    %v329 = vpop.f32.mrb[0].mxu0
    %v330 = vadd.f32 %v93, %v329
    %v331 = vpop.f32.mrb[0].mxu0
    %v332 = vadd.f32 %v89, %v331
    %v333 = vpop.f32.mrb[0].mxu0
    %v334 = vadd.f32 %v93, %v333
    %335 = vmatprep.mubr.bf16.mxu0 0
    %336 = vmatmul.mubr.bf16.gmra.mrb[0].mxu0 %v224
    %v337 = vpop.f32.mrb[0].mxu0
    %v338 = vadd.f32 %v89, %v337
    %v339 = vpop.f32.mrb[0].mxu0
    %v340 = vadd.f32 %v93, %v339
    %v341 = vpop.f32.mrb[0].mxu0
    %v342 = vadd.f32 %v89, %v341
    %v343 = vpop.f32.mrb[0].mxu0
    %v344 = vadd.f32 %v93, %v343
    %345 = vdwg.mxu0
    %v346 = vmax.f32 %v268, 0.0
    %v347 = vmax.f32 %v270, 0.0
    %v348 = vmax.f32 %v272, 0.0
    %v349 = vmax.f32 %v274, 0.0
    %v350 = vmax.f32 %v278, 0.0
    %v351 = vmax.f32 %v280, 0.0
    %v352 = vmax.f32 %v282, 0.0
    %v353 = vmax.f32 %v284, 0.0
    %v354 = vmax.f32 %v288, 0.0
    %v355 = vmax.f32 %v290, 0.0
    %v356 = vmax.f32 %v292, 0.0
    %v357 = vmax.f32 %v294, 0.0
    %v358 = vmax.f32 %v298, 0.0
    %v359 = vmax.f32 %v300, 0.0
    %v360 = vmax.f32 %v302, 0.0
    %v361 = vmax.f32 %v304, 0.0
    %v362 = vmax.f32 %v308, 0.0
    %v363 = vmax.f32 %v310, 0.0
    %v364 = vmax.f32 %v312, 0.0
    %v365 = vmax.f32 %v314, 0.0
    %v366 = vmax.f32 %v318, 0.0
    %v367 = vmax.f32 %v320, 0.0
    %v368 = vmax.f32 %v322, 0.0
    %v369 = vmax.f32 %v324, 0.0
    %v370 = vmax.f32 %v328, 0.0
    %v371 = vmax.f32 %v330, 0.0
    %v372 = vmax.f32 %v332, 0.0
    %v373 = vmax.f32 %v334, 0.0
    %v374 = vmax.f32 %v338, 0.0
    %v375 = vmax.f32 %v340, 0.0
    %v376 = vmax.f32 %v342, 0.0
    %v377 = vmax.f32 %v344, 0.0
    %410 = vrot.lane.b32.xlu0 %v346, 112
    %v411 = vpop.permute.xlu0 %410
    %412 = vrot.lane.b32.xlu0 %v347, 112
    %v413 = vpop.permute.xlu0 %412
    %414 = vrot.lane.b32.xlu0 %v348, 112
    %v415 = vpop.permute.xlu0 %414
    %416 = vrot.lane.b32.xlu0 %v349, 112
    %v417 = vpop.permute.xlu0 %416
    %418 = vrot.lane.b32.xlu0 %v350, 112
    %v419 = vpop.permute.xlu0 %418
    %420 = vrot.lane.b32.xlu0 %v351, 112
    %v421 = vpop.permute.xlu0 %420
    %422 = vrot.lane.b32.xlu0 %v352, 112
    %v423 = vpop.permute.xlu0 %422
    %424 = vrot.lane.b32.xlu0 %v353, 112
    %v425 = vpop.permute.xlu0 %424
    %426 = vrot.lane.b32.xlu0 %v354, 112
    %v427 = vpop.permute.xlu0 %426
    %428 = vrot.lane.b32.xlu0 %v355, 112
    %v429 = vpop.permute.xlu0 %428
    %430 = vrot.lane.b32.xlu0 %v356, 112
    %v431 = vpop.permute.xlu0 %430
    %432 = vrot.lane.b32.xlu0 %v357, 112
    %v433 = vpop.permute.xlu0 %432
    %434 = vrot.lane.b32.xlu0 %v358, 112
    %v435 = vpop.permute.xlu0 %434
    %436 = vrot.lane.b32.xlu0 %v359, 112
    %v437 = vpop.permute.xlu0 %436
    %438 = vrot.lane.b32.xlu0 %v360, 112
    %v439 = vpop.permute.xlu0 %438
    %440 = vrot.lane.b32.xlu0 %v361, 112
    %v441 = vpop.permute.xlu0 %440
    %442 = vrot.lane.b32.xlu0 %v362, 112
    %v443 = vpop.permute.xlu0 %442
    %444 = vrot.lane.b32.xlu0 %v363, 112
    %v445 = vpop.permute.xlu0 %444
    %446 = vrot.lane.b32.xlu0 %v364, 112
    %v447 = vpop.permute.xlu0 %446
    %448 = vrot.lane.b32.xlu0 %v365, 112
    %v449 = vpop.permute.xlu0 %448
    %450 = vrot.lane.b32.xlu0 %v366, 112
    %v451 = vpop.permute.xlu0 %450
    %452 = vrot.lane.b32.xlu0 %v367, 112
    %v453 = vpop.permute.xlu0 %452
    %454 = vrot.lane.b32.xlu0 %v368, 112
    %v455 = vpop.permute.xlu0 %454
    %456 = vrot.lane.b32.xlu0 %v369, 112
    %v457 = vpop.permute.xlu0 %456
    %458 = vrot.lane.b32.xlu0 %v370, 112
    %v459 = vpop.permute.xlu0 %458
    %460 = vrot.lane.b32.xlu0 %v371, 112
    %v461 = vpop.permute.xlu0 %460
    %462 = vrot.lane.b32.xlu0 %v372, 112
    %v463 = vpop.permute.xlu0 %462
    %464 = vrot.lane.b32.xlu0 %v373, 112
    %v465 = vpop.permute.xlu0 %464
    %466 = vrot.lane.b32.xlu0 %v374, 112
    %v467 = vpop.permute.xlu0 %466
    %468 = vrot.lane.b32.xlu0 %v375, 112
    %v469 = vpop.permute.xlu0 %468
    %470 = vrot.lane.b32.xlu0 %v376, 112
    %v471 = vpop.permute.xlu0 %470
    %472 = vrot.lane.b32.xlu0 %v377, 112
    %v473 = vpop.permute.xlu0 %472
    %vm474 = vcmask 916480
    %v475 = vsel %vm474, %v411, %v413
    %v476 = vsel %vm474, %v415, %v417
    %v477 = vsel %vm474, %v419, %v421
    %v478 = vsel %vm474, %v423, %v425
    %v479 = vsel %vm474, %v427, %v429
    %v480 = vsel %vm474, %v431, %v433
    %v481 = vsel %vm474, %v435, %v437
    %v482 = vsel %vm474, %v439, %v441
    %v483 = vsel %vm474, %v443, %v445
    %v484 = vsel %vm474, %v447, %v449
    %v485 = vsel %vm474, %v451, %v453
    %v486 = vsel %vm474, %v455, %v457
    %v487 = vsel %vm474, %v459, %v461
    %v488 = vsel %vm474, %v463, %v465
    %v489 = vsel %vm474, %v467, %v469
    %v490 = vsel %vm474, %v471, %v473
    %v539 = vsel %vm474, %v413, %v411
    %v540 = vsel %vm474, %v417, %v415
    %v541 = vsel %vm474, %v421, %v419
    %v542 = vsel %vm474, %v425, %v423
    %v543 = vsel %vm474, %v429, %v427
    %v544 = vsel %vm474, %v433, %v431
    %v545 = vsel %vm474, %v437, %v435
    %v546 = vsel %vm474, %v441, %v439
    %v547 = vsel %vm474, %v445, %v443
    %v548 = vsel %vm474, %v449, %v447
    %v549 = vsel %vm474, %v453, %v451
    %v550 = vsel %vm474, %v457, %v455
    %v551 = vsel %vm474, %v461, %v459
    %v552 = vsel %vm474, %v465, %v463
    %v553 = vsel %vm474, %v469, %v467
    %v554 = vsel %vm474, %v473, %v471
    %v555 = vmax.f32 %v346, %v475
    %v556 = vmax.f32 %v347, %v539
    %v557 = vmax.f32 %v348, %v476
    %v558 = vmax.f32 %v349, %v540
    %v559 = vmax.f32 %v350, %v477
    %v560 = vmax.f32 %v351, %v541
    %v561 = vmax.f32 %v352, %v478
    %v562 = vmax.f32 %v353, %v542
    %v563 = vmax.f32 %v354, %v479
    %v564 = vmax.f32 %v355, %v543
    %v565 = vmax.f32 %v356, %v480
    %v566 = vmax.f32 %v357, %v544
    %v567 = vmax.f32 %v358, %v481
    %v568 = vmax.f32 %v359, %v545
    %v569 = vmax.f32 %v360, %v482
    %v570 = vmax.f32 %v361, %v546
    %v571 = vmax.f32 %v362, %v483
    %v572 = vmax.f32 %v363, %v547
    %v573 = vmax.f32 %v364, %v484
    %v574 = vmax.f32 %v365, %v548
    %v575 = vmax.f32 %v366, %v485
    %v576 = vmax.f32 %v367, %v549
    %v577 = vmax.f32 %v368, %v486
    %v578 = vmax.f32 %v369, %v550
    %v579 = vmax.f32 %v370, %v487
    %v580 = vmax.f32 %v371, %v551
    %v581 = vmax.f32 %v372, %v488
    %v582 = vmax.f32 %v373, %v552
    %v583 = vmax.f32 %v374, %v489
    %v584 = vmax.f32 %v375, %v553
    %v585 = vmax.f32 %v376, %v490
    %v586 = vmax.f32 %v377, %v554
    %v619 = vcombine.low %v555, %v556
    %v620 = vcombine.high %v555, %v556
    %v621 = vcombine.low %v557, %v558
    %v622 = vcombine.high %v557, %v558
    %v623 = vcombine.low %v559, %v560
    %v624 = vcombine.high %v559, %v560
    %v625 = vcombine.low %v561, %v562
    %v626 = vcombine.high %v561, %v562
    %v627 = vcombine.low %v563, %v564
    %v628 = vcombine.high %v563, %v564
    %v629 = vcombine.low %v565, %v566
    %v630 = vcombine.high %v565, %v566
    %v631 = vcombine.low %v567, %v568
    %v632 = vcombine.high %v567, %v568
    %v633 = vcombine.low %v569, %v570
    %v634 = vcombine.high %v569, %v570
    %v635 = vcombine.low %v571, %v572
    %v636 = vcombine.high %v571, %v572
    %v637 = vcombine.low %v573, %v574
    %v638 = vcombine.high %v573, %v574
    %v639 = vcombine.low %v575, %v576
    %v640 = vcombine.high %v575, %v576
    %v641 = vcombine.low %v577, %v578
    %v642 = vcombine.high %v577, %v578
    %v643 = vcombine.low %v579, %v580
    %v644 = vcombine.high %v579, %v580
    %v645 = vcombine.low %v581, %v582
    %v646 = vcombine.high %v581, %v582
    %v647 = vcombine.low %v583, %v584
    %v648 = vcombine.high %v583, %v584
    %v649 = vcombine.low %v585, %v586
    %v650 = vcombine.high %v585, %v586
    %v684 = vunpack.c.l.s4 1966171168
    %v685 = vunpack.c.0.s8 %v684
    %v686 = vlaneseq
    %v687 = vshrl.u32 %v686, 7
    %v688 = vsub.s32 %v685, %v687
    %v689 = vrot.slane %v619, %v688
    %v691 = vunpack.c.l.s4 1966171168
    %v692 = vunpack.c.0.s8 %v691
    %v693 = vlaneseq
    %v694 = vshrl.u32 %v693, 7
    %v695 = vsub.s32 %v692, %v694
    %v696 = vrot.slane %v620, %v695
    %v698 = vunpack.c.l.s4 1966171168
    %v699 = vunpack.c.0.s8 %v698
    %v700 = vlaneseq
    %v701 = vshrl.u32 %v700, 7
    %v702 = vsub.s32 %v699, %v701
    %v703 = vrot.slane %v621, %v702
    %v705 = vunpack.c.l.s4 1966171168
    %v706 = vunpack.c.0.s8 %v705
    %v707 = vlaneseq
    %v708 = vshrl.u32 %v707, 7
    %v709 = vsub.s32 %v706, %v708
    %v710 = vrot.slane %v622, %v709
    %v712 = vunpack.c.l.s4 1966171168
    %v713 = vunpack.c.0.s8 %v712
    %v714 = vlaneseq
    %v715 = vshrl.u32 %v714, 7
    %v716 = vsub.s32 %v713, %v715
    %v717 = vrot.slane %v623, %v716
    %v719 = vunpack.c.l.s4 1966171168
    %v720 = vunpack.c.0.s8 %v719
    %v721 = vlaneseq
    %v722 = vshrl.u32 %v721, 7
    %v723 = vsub.s32 %v720, %v722
    %v724 = vrot.slane %v624, %v723
    %v726 = vunpack.c.l.s4 1966171168
    %v727 = vunpack.c.0.s8 %v726
    %v728 = vlaneseq
    %v729 = vshrl.u32 %v728, 7
    %v730 = vsub.s32 %v727, %v729
    %v731 = vrot.slane %v625, %v730
    %v733 = vunpack.c.l.s4 1966171168
    %v734 = vunpack.c.0.s8 %v733
    %v735 = vlaneseq
    %v736 = vshrl.u32 %v735, 7
    %v737 = vsub.s32 %v734, %v736
    %v738 = vrot.slane %v626, %v737
    %v740 = vunpack.c.l.s4 1966171168
    %v741 = vunpack.c.0.s8 %v740
    %v742 = vlaneseq
    %v743 = vshrl.u32 %v742, 7
    %v744 = vsub.s32 %v741, %v743
    %v745 = vrot.slane %v627, %v744
    %v747 = vunpack.c.l.s4 1966171168
    %v748 = vunpack.c.0.s8 %v747
    %v749 = vlaneseq
    %v750 = vshrl.u32 %v749, 7
    %v751 = vsub.s32 %v748, %v750
    %v752 = vrot.slane %v628, %v751
    %v754 = vunpack.c.l.s4 1966171168
    %v755 = vunpack.c.0.s8 %v754
    %v756 = vlaneseq
    %v757 = vshrl.u32 %v756, 7
    %v758 = vsub.s32 %v755, %v757
    %v759 = vrot.slane %v629, %v758
    %v761 = vunpack.c.l.s4 1966171168
    %v762 = vunpack.c.0.s8 %v761
    %v763 = vlaneseq
    %v764 = vshrl.u32 %v763, 7
    %v765 = vsub.s32 %v762, %v764
    %v766 = vrot.slane %v630, %v765
    %v768 = vunpack.c.l.s4 1966171168
    %v769 = vunpack.c.0.s8 %v768
    %v770 = vlaneseq
    %v771 = vshrl.u32 %v770, 7
    %v772 = vsub.s32 %v769, %v771
    %v773 = vrot.slane %v631, %v772
    %v775 = vunpack.c.l.s4 1966171168
    %v776 = vunpack.c.0.s8 %v775
    %v777 = vlaneseq
    %v778 = vshrl.u32 %v777, 7
    %v779 = vsub.s32 %v776, %v778
    %v780 = vrot.slane %v632, %v779
    %v782 = vunpack.c.l.s4 1966171168
    %v783 = vunpack.c.0.s8 %v782
    %v784 = vlaneseq
    %v785 = vshrl.u32 %v784, 7
    %v786 = vsub.s32 %v783, %v785
    %v787 = vrot.slane %v633, %v786
    %v789 = vunpack.c.l.s4 1966171168
    %v790 = vunpack.c.0.s8 %v789
    %v791 = vlaneseq
    %v792 = vshrl.u32 %v791, 7
    %v793 = vsub.s32 %v790, %v792
    %v794 = vrot.slane %v634, %v793
    %v796 = vunpack.c.l.s4 1966171168
    %v797 = vunpack.c.0.s8 %v796
    %v798 = vlaneseq
    %v799 = vshrl.u32 %v798, 7
    %v800 = vsub.s32 %v797, %v799
    %v801 = vrot.slane %v635, %v800
    %v803 = vunpack.c.l.s4 1966171168
    %v804 = vunpack.c.0.s8 %v803
    %v805 = vlaneseq
    %v806 = vshrl.u32 %v805, 7
    %v807 = vsub.s32 %v804, %v806
    %v808 = vrot.slane %v636, %v807
    %v810 = vunpack.c.l.s4 1966171168
    %v811 = vunpack.c.0.s8 %v810
    %v812 = vlaneseq
    %v813 = vshrl.u32 %v812, 7
    %v814 = vsub.s32 %v811, %v813
    %v815 = vrot.slane %v637, %v814
    %v817 = vunpack.c.l.s4 1966171168
    %v818 = vunpack.c.0.s8 %v817
    %v819 = vlaneseq
    %v820 = vshrl.u32 %v819, 7
    %v821 = vsub.s32 %v818, %v820
    %v822 = vrot.slane %v638, %v821
    %v824 = vunpack.c.l.s4 1966171168
    %v825 = vunpack.c.0.s8 %v824
    %v826 = vlaneseq
    %v827 = vshrl.u32 %v826, 7
    %v828 = vsub.s32 %v825, %v827
    %v829 = vrot.slane %v639, %v828
    %v831 = vunpack.c.l.s4 1966171168
    %v832 = vunpack.c.0.s8 %v831
    %v833 = vlaneseq
    %v834 = vshrl.u32 %v833, 7
    %v835 = vsub.s32 %v832, %v834
    %v836 = vrot.slane %v640, %v835
    %v838 = vunpack.c.l.s4 1966171168
    %v839 = vunpack.c.0.s8 %v838
    %v840 = vlaneseq
    %v841 = vshrl.u32 %v840, 7
    %v842 = vsub.s32 %v839, %v841
    %v843 = vrot.slane %v641, %v842
    %v845 = vunpack.c.l.s4 1966171168
    %v846 = vunpack.c.0.s8 %v845
    %v847 = vlaneseq
    %v848 = vshrl.u32 %v847, 7
    %v849 = vsub.s32 %v846, %v848
    %v850 = vrot.slane %v642, %v849
    %v852 = vunpack.c.l.s4 1966171168
    %v853 = vunpack.c.0.s8 %v852
    %v854 = vlaneseq
    %v855 = vshrl.u32 %v854, 7
    %v856 = vsub.s32 %v853, %v855
    %v857 = vrot.slane %v643, %v856
    %v859 = vunpack.c.l.s4 1966171168
    %v860 = vunpack.c.0.s8 %v859
    %v861 = vlaneseq
    %v862 = vshrl.u32 %v861, 7
    %v863 = vsub.s32 %v860, %v862
    %v864 = vrot.slane %v644, %v863
    %v866 = vunpack.c.l.s4 1966171168
    %v867 = vunpack.c.0.s8 %v866
    %v868 = vlaneseq
    %v869 = vshrl.u32 %v868, 7
    %v870 = vsub.s32 %v867, %v869
    %v871 = vrot.slane %v645, %v870
    %v873 = vunpack.c.l.s4 1966171168
    %v874 = vunpack.c.0.s8 %v873
    %v875 = vlaneseq
    %v876 = vshrl.u32 %v875, 7
    %v877 = vsub.s32 %v874, %v876
    %v878 = vrot.slane %v646, %v877
    %v880 = vunpack.c.l.s4 1966171168
    %v881 = vunpack.c.0.s8 %v880
    %v882 = vlaneseq
    %v883 = vshrl.u32 %v882, 7
    %v884 = vsub.s32 %v881, %v883
    %v885 = vrot.slane %v647, %v884
    %v887 = vunpack.c.l.s4 1966171168
    %v888 = vunpack.c.0.s8 %v887
    %v889 = vlaneseq
    %v890 = vshrl.u32 %v889, 7
    %v891 = vsub.s32 %v888, %v890
    %v892 = vrot.slane %v648, %v891
    %v894 = vunpack.c.l.s4 1966171168
    %v895 = vunpack.c.0.s8 %v894
    %v896 = vlaneseq
    %v897 = vshrl.u32 %v896, 7
    %v898 = vsub.s32 %v895, %v897
    %v899 = vrot.slane %v649, %v898
    %v901 = vunpack.c.l.s4 1966171168
    %v902 = vunpack.c.0.s8 %v901
    %v903 = vlaneseq
    %v904 = vshrl.u32 %v903, 7
    %v905 = vsub.s32 %v902, %v904
    %v906 = vrot.slane %v650, %v905
    %v939 = vrot.slane %v689, 4
    %v940 = vrot.slane %v696, 4
    %v941 = vrot.slane %v703, 4
    %v942 = vrot.slane %v710, 4
    %v943 = vrot.slane %v717, 4
    %v944 = vrot.slane %v724, 4
    %v945 = vrot.slane %v731, 4
    %v946 = vrot.slane %v738, 4
    %v947 = vrot.slane %v745, 4
    %v948 = vrot.slane %v752, 4
    %v949 = vrot.slane %v759, 4
    %v950 = vrot.slane %v766, 4
    %v951 = vrot.slane %v773, 4
    %v952 = vrot.slane %v780, 4
    %v953 = vrot.slane %v787, 4
    %v954 = vrot.slane %v794, 4
    %v955 = vrot.slane %v801, 4
    %v956 = vrot.slane %v808, 4
    %v957 = vrot.slane %v815, 4
    %v958 = vrot.slane %v822, 4
    %v959 = vrot.slane %v829, 4
    %v960 = vrot.slane %v836, 4
    %v961 = vrot.slane %v843, 4
    %v962 = vrot.slane %v850, 4
    %v963 = vrot.slane %v857, 4
    %v964 = vrot.slane %v864, 4
    %v965 = vrot.slane %v871, 4
    %v966 = vrot.slane %v878, 4
    %v967 = vrot.slane %v885, 4
    %v968 = vrot.slane %v892, 4
    %v969 = vrot.slane %v899, 4
    %v970 = vrot.slane %v906, 4
    %v1003 = vmax.f32 %v689, %v939
    %v1004 = vmax.f32 %v696, %v940
    %v1005 = vmax.f32 %v703, %v941
    %v1006 = vmax.f32 %v710, %v942
    %v1007 = vmax.f32 %v717, %v943
    %v1008 = vmax.f32 %v724, %v944
    %v1009 = vmax.f32 %v731, %v945
    %v1010 = vmax.f32 %v738, %v946
    %v1011 = vmax.f32 %v745, %v947
    %v1012 = vmax.f32 %v752, %v948
    %v1013 = vmax.f32 %v759, %v949
    %v1014 = vmax.f32 %v766, %v950
    %v1015 = vmax.f32 %v773, %v951
    %v1016 = vmax.f32 %v780, %v952
    %v1017 = vmax.f32 %v787, %v953
    %v1018 = vmax.f32 %v794, %v954
    %v1019 = vmax.f32 %v801, %v955
    %v1020 = vmax.f32 %v808, %v956
    %v1021 = vmax.f32 %v815, %v957
    %v1022 = vmax.f32 %v822, %v958
    %v1023 = vmax.f32 %v829, %v959
    %v1024 = vmax.f32 %v836, %v960
    %v1025 = vmax.f32 %v843, %v961
    %v1026 = vmax.f32 %v850, %v962
    %v1027 = vmax.f32 %v857, %v963
    %v1028 = vmax.f32 %v864, %v964
    %v1029 = vmax.f32 %v871, %v965
    %v1030 = vmax.f32 %v878, %v966
    %v1031 = vmax.f32 %v885, %v967
    %v1032 = vmax.f32 %v892, %v968
    %v1033 = vmax.f32 %v899, %v969
    %v1034 = vmax.f32 %v906, %v970
    %v1067 = vcombine.low %v1003, %v1003
    %v1068 = vcombine.low %v1004, %v1005
    %v1070 = vunpack.c.l.s4 1983009808
    %v1071 = vunpack.c.0.s8 %v1070
    %v1072 = vlaneseq
    %v1073 = vshrl.u32 %v1072, 7
    %v1074 = vsub.s32 %v1071, %v1073
    %v1075 = vrot.slane %v1067, %v1074
    %v1077 = vunpack.c.l.s4 1983009808
    %v1078 = vunpack.c.0.s8 %v1077
    %v1079 = vlaneseq
    %v1080 = vshrl.u32 %v1079, 7
    %v1081 = vsub.s32 %v1078, %v1080
    %v1082 = vrot.slane %v1068, %v1081
    %v1083 = vcombine.low %v1075, %v1082
    %v1084 = vcombine.high %v1075, %v1082
    %v1086 = vunpack.c.l.s4 1983009808
    %v1087 = vunpack.c.0.s8 %v1086
    %v1088 = vlaneseq
    %v1089 = vshrl.u32 %v1088, 7
    %v1090 = vsub.s32 %v1087, %v1089
    %v1091 = vrot.slane %v1006, %v1090
    %v1092 = vcombine.high %v1091, %v1091
    %v1093 = vcombine.low %v1007, %v1007
    %v1094 = vcombine.low %v1008, %v1009
    %v1096 = vunpack.c.l.s4 1983009808
    %v1097 = vunpack.c.0.s8 %v1096
    %v1098 = vlaneseq
    %v1099 = vshrl.u32 %v1098, 7
    %v1100 = vsub.s32 %v1097, %v1099
    %v1101 = vrot.slane %v1093, %v1100
    %v1103 = vunpack.c.l.s4 1983009808
    %v1104 = vunpack.c.0.s8 %v1103
    %v1105 = vlaneseq
    %v1106 = vshrl.u32 %v1105, 7
    %v1107 = vsub.s32 %v1104, %v1106
    %v1108 = vrot.slane %v1094, %v1107
    %v1109 = vcombine.low %v1101, %v1108
    %v1110 = vcombine.high %v1101, %v1108
    %v1112 = vunpack.c.l.s4 1983009808
    %v1113 = vunpack.c.0.s8 %v1112
    %v1114 = vlaneseq
    %v1115 = vshrl.u32 %v1114, 7
    %v1116 = vsub.s32 %v1113, %v1115
    %v1117 = vrot.slane %v1010, %v1116
    %v1118 = vcombine.high %v1117, %v1117
    %v1119 = vcombine.low %v1011, %v1011
    %v1120 = vcombine.low %v1012, %v1013
    %v1122 = vunpack.c.l.s4 1983009808
    %v1123 = vunpack.c.0.s8 %v1122
    %v1124 = vlaneseq
    %v1125 = vshrl.u32 %v1124, 7
    %v1126 = vsub.s32 %v1123, %v1125
    %v1127 = vrot.slane %v1119, %v1126
    %v1129 = vunpack.c.l.s4 1983009808
    %v1130 = vunpack.c.0.s8 %v1129
    %v1131 = vlaneseq
    %v1132 = vshrl.u32 %v1131, 7
    %v1133 = vsub.s32 %v1130, %v1132
    %v1134 = vrot.slane %v1120, %v1133
    %v1135 = vcombine.low %v1127, %v1134
    %v1136 = vcombine.high %v1127, %v1134
    %v1138 = vunpack.c.l.s4 1983009808
    %v1139 = vunpack.c.0.s8 %v1138
    %v1140 = vlaneseq
    %v1141 = vshrl.u32 %v1140, 7
    %v1142 = vsub.s32 %v1139, %v1141
    %v1143 = vrot.slane %v1014, %v1142
    %v1144 = vcombine.high %v1143, %v1143
    %v1145 = vcombine.low %v1015, %v1015
    %v1146 = vcombine.low %v1016, %v1017
    %v1148 = vunpack.c.l.s4 1983009808
    %v1149 = vunpack.c.0.s8 %v1148
    %v1150 = vlaneseq
    %v1151 = vshrl.u32 %v1150, 7
    %v1152 = vsub.s32 %v1149, %v1151
    %v1153 = vrot.slane %v1145, %v1152
    %v1155 = vunpack.c.l.s4 1983009808
    %v1156 = vunpack.c.0.s8 %v1155
    %v1157 = vlaneseq
    %v1158 = vshrl.u32 %v1157, 7
    %v1159 = vsub.s32 %v1156, %v1158
    %v1160 = vrot.slane %v1146, %v1159
    %v1161 = vcombine.low %v1153, %v1160
    %v1162 = vcombine.high %v1153, %v1160
    %v1164 = vunpack.c.l.s4 1983009808
    %v1165 = vunpack.c.0.s8 %v1164
    %v1166 = vlaneseq
    %v1167 = vshrl.u32 %v1166, 7
    %v1168 = vsub.s32 %v1165, %v1167
    %v1169 = vrot.slane %v1018, %v1168
    %v1170 = vcombine.high %v1169, %v1169
    %v1171 = vcombine.low %v1019, %v1019
    %v1172 = vcombine.low %v1020, %v1021
    %v1174 = vunpack.c.l.s4 1983009808
    %v1175 = vunpack.c.0.s8 %v1174
    %v1176 = vlaneseq
    %v1177 = vshrl.u32 %v1176, 7
    %v1178 = vsub.s32 %v1175, %v1177
    %v1179 = vrot.slane %v1171, %v1178
    %v1181 = vunpack.c.l.s4 1983009808
    %v1182 = vunpack.c.0.s8 %v1181
    %v1183 = vlaneseq
    %v1184 = vshrl.u32 %v1183, 7
    %v1185 = vsub.s32 %v1182, %v1184
    %v1186 = vrot.slane %v1172, %v1185
    %v1187 = vcombine.low %v1179, %v1186
    %v1188 = vcombine.high %v1179, %v1186
    %v1190 = vunpack.c.l.s4 1983009808
    %v1191 = vunpack.c.0.s8 %v1190
    %v1192 = vlaneseq
    %v1193 = vshrl.u32 %v1192, 7
    %v1194 = vsub.s32 %v1191, %v1193
    %v1195 = vrot.slane %v1022, %v1194
    %v1196 = vcombine.high %v1195, %v1195
    %v1197 = vcombine.low %v1023, %v1023
    %v1198 = vcombine.low %v1024, %v1025
    %v1200 = vunpack.c.l.s4 1983009808
    %v1201 = vunpack.c.0.s8 %v1200
    %v1202 = vlaneseq
    %v1203 = vshrl.u32 %v1202, 7
    %v1204 = vsub.s32 %v1201, %v1203
    %v1205 = vrot.slane %v1197, %v1204
    %v1207 = vunpack.c.l.s4 1983009808
    %v1208 = vunpack.c.0.s8 %v1207
    %v1209 = vlaneseq
    %v1210 = vshrl.u32 %v1209, 7
    %v1211 = vsub.s32 %v1208, %v1210
    %v1212 = vrot.slane %v1198, %v1211
    %v1213 = vcombine.low %v1205, %v1212
    %v1214 = vcombine.high %v1205, %v1212
    %v1216 = vunpack.c.l.s4 1983009808
    %v1217 = vunpack.c.0.s8 %v1216
    %v1218 = vlaneseq
    %v1219 = vshrl.u32 %v1218, 7
    %v1220 = vsub.s32 %v1217, %v1219
    %v1221 = vrot.slane %v1026, %v1220
    %v1222 = vcombine.high %v1221, %v1221
    %v1223 = vcombine.low %v1027, %v1027
    %v1224 = vcombine.low %v1028, %v1029
    %v1226 = vunpack.c.l.s4 1983009808
    %v1227 = vunpack.c.0.s8 %v1226
    %v1228 = vlaneseq
    %v1229 = vshrl.u32 %v1228, 7
    %v1230 = vsub.s32 %v1227, %v1229
    %v1231 = vrot.slane %v1223, %v1230
    %v1233 = vunpack.c.l.s4 1983009808
    %v1234 = vunpack.c.0.s8 %v1233
    %v1235 = vlaneseq
    %v1236 = vshrl.u32 %v1235, 7
    %v1237 = vsub.s32 %v1234, %v1236
    %v1238 = vrot.slane %v1224, %v1237
    %v1239 = vcombine.low %v1231, %v1238
    %v1240 = vcombine.high %v1231, %v1238
    %v1242 = vunpack.c.l.s4 1983009808
    %v1243 = vunpack.c.0.s8 %v1242
    %v1244 = vlaneseq
    %v1245 = vshrl.u32 %v1244, 7
    %v1246 = vsub.s32 %v1243, %v1245
    %v1247 = vrot.slane %v1030, %v1246
    %v1248 = vcombine.high %v1247, %v1247
    %v1249 = vcombine.low %v1031, %v1031
    %v1250 = vcombine.low %v1032, %v1033
    %v1252 = vunpack.c.l.s4 1983009808
    %v1253 = vunpack.c.0.s8 %v1252
    %v1254 = vlaneseq
    %v1255 = vshrl.u32 %v1254, 7
    %v1256 = vsub.s32 %v1253, %v1255
    %v1257 = vrot.slane %v1249, %v1256
    %v1259 = vunpack.c.l.s4 1983009808
    %v1260 = vunpack.c.0.s8 %v1259
    %v1261 = vlaneseq
    %v1262 = vshrl.u32 %v1261, 7
    %v1263 = vsub.s32 %v1260, %v1262
    %v1264 = vrot.slane %v1250, %v1263
    %v1265 = vcombine.low %v1257, %v1264
    %v1266 = vcombine.high %v1257, %v1264
    %v1268 = vunpack.c.l.s4 1983009808
    %v1269 = vunpack.c.0.s8 %v1268
    %v1270 = vlaneseq
    %v1271 = vshrl.u32 %v1270, 7
    %v1272 = vsub.s32 %v1269, %v1271
    %v1273 = vrot.slane %v1034, %v1272
    %v1274 = vcombine.high %v1273, %v1273
    %v1307 = vsel %vm226, 0.0, %v1083
    %v1308 = vsel %vm226, 0.0, %v1084
    %v1309 = vsel %vm226, 0.0, %v1109
    %v1310 = vsel %vm226, 0.0, %v1110
    %v1311 = vsel %vm226, 0.0, %v1135
    %v1312 = vsel %vm226, 0.0, %v1136
    %v1313 = vsel %vm226, 0.0, %v1161
    %v1314 = vsel %vm226, 0.0, %v1162
    %v1315 = vsel %vm226, 0.0, %v1187
    %v1316 = vsel %vm226, 0.0, %v1188
    %v1317 = vsel %vm226, 0.0, %v1213
    %v1318 = vsel %vm226, 0.0, %v1214
    %v1319 = vsel %vm226, 0.0, %v1239
    %v1320 = vsel %vm226, 0.0, %v1240
    %v1321 = vsel %vm226, 0.0, %v1265
    %v1322 = vsel %vm226, 0.0, %v1266
    %v1323 = vsel %vm226, %v1091, 0.0
    %v1324 = vsel %vm226, %v1092, 0.0
    %v1325 = vsel %vm226, %v1117, 0.0
    %v1326 = vsel %vm226, %v1118, 0.0
    %v1327 = vsel %vm226, %v1143, 0.0
    %v1328 = vsel %vm226, %v1144, 0.0
    %v1329 = vsel %vm226, %v1169, 0.0
    %v1330 = vsel %vm226, %v1170, 0.0
    %v1331 = vsel %vm226, %v1195, 0.0
    %v1332 = vsel %vm226, %v1196, 0.0
    %v1333 = vsel %vm226, %v1221, 0.0
    %v1334 = vsel %vm226, %v1222, 0.0
    %v1335 = vsel %vm226, %v1247, 0.0
    %v1336 = vsel %vm226, %v1248, 0.0
    %v1337 = vsel %vm226, %v1273, 0.0
    %v1338 = vsel %vm226, %v1274, 0.0
    %v1339 = vpack.c.bf16 %v1323, %v1307
    %v1340 = vpack.c.bf16 %v1324, %v1308
    %v1341 = vpack.c.bf16 %v1325, %v1309
    %v1342 = vpack.c.bf16 %v1326, %v1310
    %v1343 = vpack.c.bf16 %v1327, %v1311
    %v1344 = vpack.c.bf16 %v1328, %v1312
    %v1345 = vpack.c.bf16 %v1329, %v1313
    %v1346 = vpack.c.bf16 %v1330, %v1314
    %v1347 = vpack.c.bf16 %v1331, %v1315
    %v1348 = vpack.c.bf16 %v1332, %v1316
    %v1349 = vpack.c.bf16 %v1333, %v1317
    %v1350 = vpack.c.bf16 %v1334, %v1318
    %v1351 = vpack.c.bf16 %v1335, %v1319
    %v1352 = vpack.c.bf16 %v1336, %v1320
    %v1353 = vpack.c.bf16 %v1337, %v1321
    %v1354 = vpack.c.bf16 %v1338, %v1322
    %v1371 = vunpack.c.l.b16 %v1339
    %v1372 = vunpack.c.l.b16 %v1340
    %v1373 = vunpack.c.l.b16 %v1341
    %v1374 = vunpack.c.l.b16 %v1342
    %v1375 = vunpack.c.l.b16 %v1343
    %v1376 = vunpack.c.l.b16 %v1344
    %v1377 = vunpack.c.l.b16 %v1345
    %v1378 = vunpack.c.l.b16 %v1346
    %v1379 = vunpack.c.l.b16 %v1347
    %v1380 = vunpack.c.l.b16 %v1348
    %v1381 = vunpack.c.l.b16 %v1349
    %v1382 = vunpack.c.l.b16 %v1350
    %v1383 = vunpack.c.l.b16 %v1351
    %v1384 = vunpack.c.l.b16 %v1352
    %v1385 = vunpack.c.l.b16 %v1353
    %v1386 = vunpack.c.l.b16 %v1354
    %v1387 = vld [vmem:[#allocation2] sm:$0xff]
    %v1388 = vld [vmem:[#allocation2 + $0x8] sm:$0xff]
    %v1389 = vld [vmem:[#allocation2 + $0x10] sm:$0xff]
    %v1390 = vld [vmem:[#allocation2 + $0x18] sm:$0xff]
    %v1391 = vld [vmem:[#allocation2 + $0x20] sm:$0xff]
    %v1392 = vld [vmem:[#allocation2 + $0x28] sm:$0xff]
    %v1393 = vld [vmem:[#allocation2 + $0x30] sm:$0xff]
    %v1394 = vld [vmem:[#allocation2 + $0x38] sm:$0xff]
    %v1395 = vld [vmem:[#allocation2 + $0x40] sm:$0xff]
    %v1396 = vld [vmem:[#allocation2 + $0x48] sm:$0xff]
    %v1397 = vld [vmem:[#allocation2 + $0x50] sm:$0xff]
    %v1398 = vld [vmem:[#allocation2 + $0x58] sm:$0xff]
    %v1399 = vld [vmem:[#allocation2 + $0x60] sm:$0xff]
    %v1400 = vld [vmem:[#allocation2 + $0x68] sm:$0xff]
    %v1401 = vld [vmem:[#allocation2 + $0x70] sm:$0xff]
    %v1402 = vld [vmem:[#allocation2 + $0x78] sm:$0xff]
    %v1403 = vld [vmem:[#allocation2 + $0x80] sm:$0xff]
    %v1404 = vld [vmem:[#allocation2 + $0x88] sm:$0xff]
    %v1405 = vld [vmem:[#allocation2 + $0x90] sm:$0xff]
    %v1406 = vld [vmem:[#allocation2 + $0x98] sm:$0xff]
    %v1407 = vld [vmem:[#allocation2 + $0xa0] sm:$0xff]
    %v1408 = vld [vmem:[#allocation2 + $0xa8] sm:$0xff]
    %v1409 = vld [vmem:[#allocation2 + $0xb0] sm:$0xff]
    %v1410 = vld [vmem:[#allocation2 + $0xb8] sm:$0xff]
    %v1411 = vld [vmem:[#allocation2 + $0xc0] sm:$0xff]
    %v1412 = vld [vmem:[#allocation2 + $0xc8] sm:$0xff]
    %v1413 = vld [vmem:[#allocation2 + $0xd0] sm:$0xff]
    %v1414 = vld [vmem:[#allocation2 + $0xd8] sm:$0xff]
    %v1415 = vld [vmem:[#allocation2 + $0xe0] sm:$0xff]
    %v1416 = vld [vmem:[#allocation2 + $0xe8] sm:$0xff]
    %v1417 = vld [vmem:[#allocation2 + $0xf0] sm:$0xff]
    %v1418 = vld [vmem:[#allocation2 + $0xf8] sm:$0xff]
    %v1419 = vunpack.c.h.b16 %v1339
    %v1420 = vunpack.c.h.b16 %v1340
    %v1421 = vunpack.c.h.b16 %v1341
    %v1422 = vunpack.c.h.b16 %v1342
    %v1423 = vunpack.c.h.b16 %v1343
    %v1424 = vunpack.c.h.b16 %v1344
    %v1425 = vunpack.c.h.b16 %v1345
    %v1426 = vunpack.c.h.b16 %v1346
    %v1427 = vunpack.c.h.b16 %v1347
    %v1428 = vunpack.c.h.b16 %v1348
    %v1429 = vunpack.c.h.b16 %v1349
    %v1430 = vunpack.c.h.b16 %v1350
    %v1431 = vunpack.c.h.b16 %v1351
    %v1432 = vunpack.c.h.b16 %v1352
    %v1433 = vunpack.c.h.b16 %v1353
    %v1434 = vunpack.c.h.b16 %v1354
    %v1435 = vpack.c.b16 %v1372, %v1371
    %v1436 = vpack.c.b16 %v1420, %v1419
    %v1437 = vpack.c.b16 %v1374, %v1373
    %v1438 = vpack.c.b16 %v1422, %v1421
    %v1439 = vpack.c.b16 %v1376, %v1375
    %v1440 = vpack.c.b16 %v1424, %v1423
    %v1441 = vpack.c.b16 %v1378, %v1377
    %v1442 = vpack.c.b16 %v1426, %v1425
    %v1443 = vpack.c.b16 %v1380, %v1379
    %v1444 = vpack.c.b16 %v1428, %v1427
    %v1445 = vpack.c.b16 %v1382, %v1381
    %v1446 = vpack.c.b16 %v1430, %v1429
    %v1447 = vpack.c.b16 %v1384, %v1383
    %v1448 = vpack.c.b16 %v1432, %v1431
    %v1449 = vpack.c.b16 %v1386, %v1385
    %v1450 = vpack.c.b16 %v1434, %v1433
    %vm1451 = vsmask.f32 3328
    %vm1452 = vsmask.f32 7440
    %vm1453 = vmor %vm1451, %vm1452
    %v1455 = vshrl.u32 %v1435, 16
    %v1457 = vrot.slane %v1455, 4
    %v1458 = vshll.u32 %v1435, 16
    %v1460 = vrot.slane %v1458, 5
    %v1461 = vor.u32 %v1457, %v1460
    %v1462 = vrot.slane %v1461, 4
    %v1464 = vshll.u32 %v1436, 16
    %v1466 = vrot.slane %v1464, 5
    %v1467 = vsel %vm1453, %v1462, %v1466
    %v1469 = vshrl.u32 %v1437, 16
    %v1471 = vrot.slane %v1469, 4
    %v1472 = vshll.u32 %v1437, 16
    %v1474 = vrot.slane %v1472, 5
    %v1475 = vor.u32 %v1471, %v1474
    %v1476 = vrot.slane %v1475, 4
    %v1478 = vshll.u32 %v1438, 16
    %v1480 = vrot.slane %v1478, 5
    %v1481 = vsel %vm1453, %v1476, %v1480
    %v1483 = vshrl.u32 %v1439, 16
    %v1485 = vrot.slane %v1483, 4
    %v1486 = vshll.u32 %v1439, 16
    %v1488 = vrot.slane %v1486, 5
    %v1489 = vor.u32 %v1485, %v1488
    %v1490 = vrot.slane %v1489, 4
    %v1492 = vshll.u32 %v1440, 16
    %v1494 = vrot.slane %v1492, 5
    %v1495 = vsel %vm1453, %v1490, %v1494
    %v1497 = vshrl.u32 %v1441, 16
    %v1499 = vrot.slane %v1497, 4
    %v1500 = vshll.u32 %v1441, 16
    %v1502 = vrot.slane %v1500, 5
    %v1503 = vor.u32 %v1499, %v1502
    %v1504 = vrot.slane %v1503, 4
    %v1506 = vshll.u32 %v1442, 16
    %v1508 = vrot.slane %v1506, 5
    %v1509 = vsel %vm1453, %v1504, %v1508
    %v1511 = vshrl.u32 %v1443, 16
    %v1513 = vrot.slane %v1511, 4
    %v1514 = vshll.u32 %v1443, 16
    %v1516 = vrot.slane %v1514, 5
    %v1517 = vor.u32 %v1513, %v1516
    %v1518 = vrot.slane %v1517, 4
    %v1520 = vshll.u32 %v1444, 16
    %v1522 = vrot.slane %v1520, 5
    %v1523 = vsel %vm1453, %v1518, %v1522
    %v1525 = vshrl.u32 %v1445, 16
    %v1527 = vrot.slane %v1525, 4
    %v1528 = vshll.u32 %v1445, 16
    %v1530 = vrot.slane %v1528, 5
    %v1531 = vor.u32 %v1527, %v1530
    %v1532 = vrot.slane %v1531, 4
    %v1534 = vshll.u32 %v1446, 16
    %v1536 = vrot.slane %v1534, 5
    %v1537 = vsel %vm1453, %v1532, %v1536
    %v1539 = vshrl.u32 %v1447, 16
    %v1541 = vrot.slane %v1539, 4
    %v1542 = vshll.u32 %v1447, 16
    %v1544 = vrot.slane %v1542, 5
    %v1545 = vor.u32 %v1541, %v1544
    %v1546 = vrot.slane %v1545, 4
    %v1548 = vshll.u32 %v1448, 16
    %v1550 = vrot.slane %v1548, 5
    %v1551 = vsel %vm1453, %v1546, %v1550
    %v1553 = vshrl.u32 %v1449, 16
    %v1555 = vrot.slane %v1553, 4
    %v1556 = vshll.u32 %v1449, 16
    %v1558 = vrot.slane %v1556, 5
    %v1559 = vor.u32 %v1555, %v1558
    %v1560 = vrot.slane %v1559, 4
    %v1562 = vshll.u32 %v1450, 16
    %v1564 = vrot.slane %v1562, 5
    %v1565 = vsel %vm1453, %v1560, %v1564
    %s1566 = scalar_lea.vmem [#allocation2], 256
    %v1567 = vld [vmem:[%s1566] sm:$0xff]
    %v1568 = vld [vmem:[%s1566 + $0x8] sm:$0xff]
    %v1569 = vld [vmem:[%s1566 + $0x10] sm:$0xff]
    %v1570 = vld [vmem:[%s1566 + $0x18] sm:$0xff]
    %v1571 = vld [vmem:[%s1566 + $0x20] sm:$0xff]
    %v1572 = vld [vmem:[%s1566 + $0x28] sm:$0xff]
    %v1573 = vld [vmem:[%s1566 + $0x30] sm:$0xff]
    %v1574 = vld [vmem:[%s1566 + $0x38] sm:$0xff]
    %v1575 = vld [vmem:[%s1566 + $0x40] sm:$0xff]
    %v1576 = vld [vmem:[%s1566 + $0x48] sm:$0xff]
    %v1577 = vld [vmem:[%s1566 + $0x50] sm:$0xff]
    %v1578 = vld [vmem:[%s1566 + $0x58] sm:$0xff]
    %v1579 = vld [vmem:[%s1566 + $0x60] sm:$0xff]
    %v1580 = vld [vmem:[%s1566 + $0x68] sm:$0xff]
    %v1581 = vld [vmem:[%s1566 + $0x70] sm:$0xff]
    %v1582 = vld [vmem:[%s1566 + $0x78] sm:$0xff]
    %v1583 = vld [vmem:[%s1566 + $0x80] sm:$0xff]
    %v1584 = vld [vmem:[%s1566 + $0x88] sm:$0xff]
    %v1585 = vld [vmem:[%s1566 + $0x90] sm:$0xff]
    %v1586 = vld [vmem:[%s1566 + $0x98] sm:$0xff]
    %v1587 = vld [vmem:[%s1566 + $0xa0] sm:$0xff]
    %v1588 = vld [vmem:[%s1566 + $0xa8] sm:$0xff]
    %v1589 = vld [vmem:[%s1566 + $0xb0] sm:$0xff]
    %v1590 = vld [vmem:[%s1566 + $0xb8] sm:$0xff]
    %v1591 = vld [vmem:[%s1566 + $0xc0] sm:$0xff]
    %v1592 = vld [vmem:[%s1566 + $0xc8] sm:$0xff]
    %v1593 = vld [vmem:[%s1566 + $0xd0] sm:$0xff]
    %v1594 = vld [vmem:[%s1566 + $0xd8] sm:$0xff]
    %v1595 = vld [vmem:[%s1566 + $0xe0] sm:$0xff]
    %v1596 = vld [vmem:[%s1566 + $0xe8] sm:$0xff]
    %v1597 = vld [vmem:[%s1566 + $0xf0] sm:$0xff]
    %v1598 = vld [vmem:[%s1566 + $0xf8] sm:$0xff]
    %v1599 = vunpack.c.l.b16 %v1467
    %v1600 = vunpack.c.h.b16 %v1467
    %v1601 = vunpack.c.l.b16 %v1481
    %v1602 = vunpack.c.h.b16 %v1481
    %v1603 = vunpack.c.l.b16 %v1495
    %v1604 = vunpack.c.h.b16 %v1495
    %v1605 = vunpack.c.l.b16 %v1509
    %v1606 = vunpack.c.h.b16 %v1509
    %v1607 = vunpack.c.l.b16 %v1523
    %v1608 = vunpack.c.h.b16 %v1523
    %v1609 = vunpack.c.l.b16 %v1537
    %v1610 = vunpack.c.h.b16 %v1537
    %v1611 = vunpack.c.l.b16 %v1551
    %v1612 = vunpack.c.h.b16 %v1551
    %v1613 = vunpack.c.l.b16 %v1565
    %v1614 = vunpack.c.h.b16 %v1565
    %v1615 = vpack.c.b16 %v1601, %v1599
    %v1616 = vpack.c.b16 %v1602, %v1600
    %v1617 = vpack.c.b16 %v1605, %v1603
    %v1618 = vpack.c.b16 %v1606, %v1604
    %v1619 = vpack.c.b16 %v1609, %v1607
    %v1620 = vpack.c.b16 %v1610, %v1608
    %v1621 = vpack.c.b16 %v1613, %v1611
    %v1622 = vpack.c.b16 %v1614, %v1612
    %v1663 = vunpack.c.l.b16 %v1567
    %v1664 = vunpack.c.h.b16 %v1567
    %v1665 = vunpack.c.l.b16 %v1568
    %v1666 = vunpack.c.h.b16 %v1568
    %v1667 = vunpack.c.l.b16 %v1569
    %v1668 = vunpack.c.h.b16 %v1569
    %v1669 = vunpack.c.l.b16 %v1570
    %v1670 = vunpack.c.h.b16 %v1570
    %v1671 = vunpack.c.l.b16 %v1571
    %v1672 = vunpack.c.h.b16 %v1571
    %v1673 = vunpack.c.l.b16 %v1572
    %v1674 = vunpack.c.h.b16 %v1572
    %v1675 = vunpack.c.l.b16 %v1573
    %v1676 = vunpack.c.h.b16 %v1573
    %v1677 = vunpack.c.l.b16 %v1574
    %v1678 = vunpack.c.h.b16 %v1574
    %v1679 = vunpack.c.l.b16 %v1575
    %v1680 = vunpack.c.h.b16 %v1575
    %v1681 = vunpack.c.l.b16 %v1576
    %v1682 = vunpack.c.h.b16 %v1576
    %v1683 = vunpack.c.l.b16 %v1577
    %v1684 = vunpack.c.h.b16 %v1577
    %v1685 = vunpack.c.l.b16 %v1578
    %v1686 = vunpack.c.h.b16 %v1578
    %v1687 = vunpack.c.l.b16 %v1579
    %v1688 = vunpack.c.h.b16 %v1579
    %v1689 = vunpack.c.l.b16 %v1580
    %v1690 = vunpack.c.h.b16 %v1580
    %v1691 = vunpack.c.l.b16 %v1581
    %v1692 = vunpack.c.h.b16 %v1581
    %v1693 = vunpack.c.l.b16 %v1582
    %v1694 = vunpack.c.h.b16 %v1582
    %v1695 = vunpack.c.l.b16 %v1583
    %v1696 = vunpack.c.h.b16 %v1583
    %v1697 = vunpack.c.l.b16 %v1584
    %v1698 = vunpack.c.h.b16 %v1584
    %v1699 = vunpack.c.l.b16 %v1585
    %v1700 = vunpack.c.h.b16 %v1585
    %v1701 = vunpack.c.l.b16 %v1586
    %v1702 = vunpack.c.h.b16 %v1586
    %v1703 = vunpack.c.l.b16 %v1587
    %v1704 = vunpack.c.h.b16 %v1587
    %v1705 = vunpack.c.l.b16 %v1588
    %v1706 = vunpack.c.h.b16 %v1588
    %v1707 = vunpack.c.l.b16 %v1589
    %v1708 = vunpack.c.h.b16 %v1589
    %v1709 = vunpack.c.l.b16 %v1590
    %v1710 = vunpack.c.h.b16 %v1590
    %v1711 = vunpack.c.l.b16 %v1591
    %v1712 = vunpack.c.h.b16 %v1591
    %v1713 = vunpack.c.l.b16 %v1592
    %v1714 = vunpack.c.h.b16 %v1592
    %v1715 = vunpack.c.l.b16 %v1593
    %v1716 = vunpack.c.h.b16 %v1593
    %v1717 = vunpack.c.l.b16 %v1594
    %v1718 = vunpack.c.h.b16 %v1594
    %v1719 = vunpack.c.l.b16 %v1595
    %v1720 = vunpack.c.h.b16 %v1595
    %v1721 = vunpack.c.l.b16 %v1596
    %v1722 = vunpack.c.h.b16 %v1596
    %v1723 = vunpack.c.l.b16 %v1597
    %v1724 = vunpack.c.h.b16 %v1597
    %v1725 = vunpack.c.l.b16 %v1598
    %v1726 = vunpack.c.h.b16 %v1598
    %v1727 = vpack.c.b16 %v1665, %v1663
    %v1728 = vpack.c.b16 %v1666, %v1664
    %v1729 = vpack.c.b16 %v1669, %v1667
    %v1730 = vpack.c.b16 %v1670, %v1668
    %v1731 = vpack.c.b16 %v1673, %v1671
    %v1732 = vpack.c.b16 %v1674, %v1672
    %v1733 = vpack.c.b16 %v1677, %v1675
    %v1734 = vpack.c.b16 %v1678, %v1676
    %v1735 = vpack.c.b16 %v1681, %v1679
    %v1736 = vpack.c.b16 %v1682, %v1680
    %v1737 = vpack.c.b16 %v1685, %v1683
    %v1738 = vpack.c.b16 %v1686, %v1684
    %v1739 = vpack.c.b16 %v1689, %v1687
    %v1740 = vpack.c.b16 %v1690, %v1688
    %v1741 = vpack.c.b16 %v1693, %v1691
    %v1742 = vpack.c.b16 %v1694, %v1692
    %v1743 = vpack.c.b16 %v1697, %v1695
    %v1744 = vpack.c.b16 %v1698, %v1696
    %v1745 = vpack.c.b16 %v1701, %v1699
    %v1746 = vpack.c.b16 %v1702, %v1700
    %v1747 = vpack.c.b16 %v1705, %v1703
    %v1748 = vpack.c.b16 %v1706, %v1704
    %v1749 = vpack.c.b16 %v1709, %v1707
    %v1750 = vpack.c.b16 %v1710, %v1708
    %v1751 = vpack.c.b16 %v1713, %v1711
    %v1752 = vpack.c.b16 %v1714, %v1712
    %v1753 = vpack.c.b16 %v1717, %v1715
    %v1754 = vpack.c.b16 %v1718, %v1716
    %v1755 = vpack.c.b16 %v1721, %v1719
    %v1756 = vpack.c.b16 %v1722, %v1720
    %v1757 = vpack.c.b16 %v1725, %v1723
    %v1758 = vpack.c.b16 %v1726, %v1724
    %1791 = vmatprep.subr.bf16.mxu0 %v1728
    %1792 = vmatpush1.bf16.msra.mxu0 %v1727
    %1793 = vmatprep.subr.bf16.mxu0 %v1730
    %1794 = vmatpush1.bf16.msra.mxu0 %v1729
    %1795 = vmatprep.subr.bf16.mxu0 %v1732
    %1796 = vmatpush1.bf16.msra.mxu0 %v1731
    %1797 = vmatprep.subr.bf16.mxu0 %v1734
    %1798 = vmatpush1.bf16.msra.mxu0 %v1733
    %1799 = vmatprep.subr.bf16.mxu0 %v1736
    %1800 = vmatpush1.bf16.msra.mxu0 %v1735
    %1801 = vmatprep.subr.bf16.mxu0 %v1738
    %1802 = vmatpush1.bf16.msra.mxu0 %v1737
    %1803 = vmatprep.subr.bf16.mxu0 %v1740
    %1804 = vmatpush1.bf16.msra.mxu0 %v1739
    %1805 = vmatprep.subr.bf16.mxu0 %v1742
    %1806 = vmatpush1.bf16.msra.mxu0 %v1741
    %1807 = vmatprep.subr.bf16.mxu0 %v1744
    %1808 = vmatpush1.bf16.msra.mxu0 %v1743
    %1809 = vmatprep.subr.bf16.mxu0 %v1746
    %1810 = vmatpush1.bf16.msra.mxu0 %v1745
    %1811 = vmatprep.subr.bf16.mxu0 %v1748
    %1812 = vmatpush1.bf16.msra.mxu0 %v1747
    %1813 = vmatprep.subr.bf16.mxu0 %v1750
    %1814 = vmatpush1.bf16.msra.mxu0 %v1749
    %1815 = vmatprep.subr.bf16.mxu0 %v1752
    %1816 = vmatpush1.bf16.msra.mxu0 %v1751
    %1817 = vmatprep.subr.bf16.mxu0 %v1754
    %1818 = vmatpush1.bf16.msra.mxu0 %v1753
    %1819 = vmatprep.subr.bf16.mxu0 %v1756
    %1820 = vmatpush1.bf16.msra.mxu0 %v1755
    %1821 = vmatprep.subr.bf16.mxu0 %v1758
    %1822 = vmatpush1.bf16.msra.mxu0 %v1757
    %1823 = vmatprep.mubr.bf16.mxu0 %v1616
    %1824 = vmatmul.mubr.bf16.gmra.mrb[0].mxu0 %v1615
    %v1825 = vpop.f32.mrb[0].mxu0
    %v1826 = vadd.f32 0.0, %v1825
    %v1827 = vpop.f32.mrb[0].mxu0
    %v1828 = vadd.f32 0.0, %v1827
    %v1829 = vpop.f32.mrb[0].mxu0
    %v1830 = vadd.f32 0.0, %v1829
    %v1831 = vpop.f32.mrb[0].mxu0
    %v1832 = vadd.f32 0.0, %v1831
    %1833 = vmatprep.mubr.bf16.mxu0 %v1618
    %1834 = vmatmul.mubr.bf16.gmra.mrb[0].mxu0 %v1617
    %v1835 = vpop.f32.mrb[0].mxu0
    %v1836 = vadd.f32 0.0, %v1835
    %v1837 = vpop.f32.mrb[0].mxu0
    %v1838 = vadd.f32 0.0, %v1837
    %v1839 = vpop.f32.mrb[0].mxu0
    %v1840 = vadd.f32 0.0, %v1839
    %v1841 = vpop.f32.mrb[0].mxu0
    %v1842 = vadd.f32 0.0, %v1841
    %1843 = vmatprep.mubr.bf16.mxu0 %v1620
    %1844 = vmatmul.mubr.bf16.gmra.mrb[0].mxu0 %v1619
    %v1845 = vpop.f32.mrb[0].mxu0
    %v1846 = vadd.f32 0.0, %v1845
    %v1847 = vpop.f32.mrb[0].mxu0
    %v1848 = vadd.f32 0.0, %v1847
    %v1849 = vpop.f32.mrb[0].mxu0
    %v1850 = vadd.f32 0.0, %v1849
    %v1851 = vpop.f32.mrb[0].mxu0
    %v1852 = vadd.f32 0.0, %v1851
    %1853 = vmatprep.mubr.bf16.mxu0 %v1622
    %1854 = vmatmul.mubr.bf16.gmra.mrb[0].mxu0 %v1621
    %v1855 = vpop.f32.mrb[0].mxu0
    %v1856 = vadd.f32 0.0, %v1855
    %v1857 = vpop.f32.mrb[0].mxu0
    %v1858 = vadd.f32 0.0, %v1857
    %v1859 = vpop.f32.mrb[0].mxu0
    %v1860 = vadd.f32 0.0, %v1859
    %v1861 = vpop.f32.mrb[0].mxu0
    %v1862 = vadd.f32 0.0, %v1861
    %1863 = vdwg.mxu0
    %v1864 = vpack.c.b16 %v1373, %v1371
    %v1865 = vpack.c.b16 %v1374, %v1372
    %v1866 = vpack.c.b16 %v1377, %v1375
    %v1867 = vpack.c.b16 %v1378, %v1376
    %v1868 = vpack.c.b16 %v1381, %v1379
    %v1869 = vpack.c.b16 %v1382, %v1380
    %v1870 = vpack.c.b16 %v1385, %v1383
    %v1871 = vpack.c.b16 %v1386, %v1384
    %v1912 = vunpack.c.l.b16 %v1387
    %v1913 = vunpack.c.h.b16 %v1387
    %v1914 = vunpack.c.l.b16 %v1388
    %v1915 = vunpack.c.h.b16 %v1388
    %v1916 = vunpack.c.l.b16 %v1389
    %v1917 = vunpack.c.h.b16 %v1389
    %v1918 = vunpack.c.l.b16 %v1390
    %v1919 = vunpack.c.h.b16 %v1390
    %v1920 = vunpack.c.l.b16 %v1391
    %v1921 = vunpack.c.h.b16 %v1391
    %v1922 = vunpack.c.l.b16 %v1392
    %v1923 = vunpack.c.h.b16 %v1392
    %v1924 = vunpack.c.l.b16 %v1393
    %v1925 = vunpack.c.h.b16 %v1393
    %v1926 = vunpack.c.l.b16 %v1394
    %v1927 = vunpack.c.h.b16 %v1394
    %v1928 = vunpack.c.l.b16 %v1395
    %v1929 = vunpack.c.h.b16 %v1395
    %v1930 = vunpack.c.l.b16 %v1396
    %v1931 = vunpack.c.h.b16 %v1396
    %v1932 = vunpack.c.l.b16 %v1397
    %v1933 = vunpack.c.h.b16 %v1397
    %v1934 = vunpack.c.l.b16 %v1398
    %v1935 = vunpack.c.h.b16 %v1398
    %v1936 = vunpack.c.l.b16 %v1399
    %v1937 = vunpack.c.h.b16 %v1399
    %v1938 = vunpack.c.l.b16 %v1400
    %v1939 = vunpack.c.h.b16 %v1400
    %v1940 = vunpack.c.l.b16 %v1401
    %v1941 = vunpack.c.h.b16 %v1401
    %v1942 = vunpack.c.l.b16 %v1402
    %v1943 = vunpack.c.h.b16 %v1402
    %v1944 = vunpack.c.l.b16 %v1403
    %v1945 = vunpack.c.h.b16 %v1403
    %v1946 = vunpack.c.l.b16 %v1404
    %v1947 = vunpack.c.h.b16 %v1404
    %v1948 = vunpack.c.l.b16 %v1405
    %v1949 = vunpack.c.h.b16 %v1405
    %v1950 = vunpack.c.l.b16 %v1406
    %v1951 = vunpack.c.h.b16 %v1406
    %v1952 = vunpack.c.l.b16 %v1407
    %v1953 = vunpack.c.h.b16 %v1407
    %v1954 = vunpack.c.l.b16 %v1408
    %v1955 = vunpack.c.h.b16 %v1408
    %v1956 = vunpack.c.l.b16 %v1409
    %v1957 = vunpack.c.h.b16 %v1409
    %v1958 = vunpack.c.l.b16 %v1410
    %v1959 = vunpack.c.h.b16 %v1410
    %v1960 = vunpack.c.l.b16 %v1411
    %v1961 = vunpack.c.h.b16 %v1411
    %v1962 = vunpack.c.l.b16 %v1412
    %v1963 = vunpack.c.h.b16 %v1412
    %v1964 = vunpack.c.l.b16 %v1413
    %v1965 = vunpack.c.h.b16 %v1413
    %v1966 = vunpack.c.l.b16 %v1414
    %v1967 = vunpack.c.h.b16 %v1414
    %v1968 = vunpack.c.l.b16 %v1415
    %v1969 = vunpack.c.h.b16 %v1415
    %v1970 = vunpack.c.l.b16 %v1416
    %v1971 = vunpack.c.h.b16 %v1416
    %v1972 = vunpack.c.l.b16 %v1417
    %v1973 = vunpack.c.h.b16 %v1417
    %v1974 = vunpack.c.l.b16 %v1418
    %v1975 = vunpack.c.h.b16 %v1418
    %v1976 = vpack.c.b16 %v1914, %v1912
    %v1977 = vpack.c.b16 %v1915, %v1913
    %v1978 = vpack.c.b16 %v1918, %v1916
    %v1979 = vpack.c.b16 %v1919, %v1917
    %v1980 = vpack.c.b16 %v1922, %v1920
    %v1981 = vpack.c.b16 %v1923, %v1921
    %v1982 = vpack.c.b16 %v1926, %v1924
    %v1983 = vpack.c.b16 %v1927, %v1925
    %v1984 = vpack.c.b16 %v1930, %v1928
    %v1985 = vpack.c.b16 %v1931, %v1929
    %v1986 = vpack.c.b16 %v1934, %v1932
    %v1987 = vpack.c.b16 %v1935, %v1933
    %v1988 = vpack.c.b16 %v1938, %v1936
    %v1989 = vpack.c.b16 %v1939, %v1937
    %v1990 = vpack.c.b16 %v1942, %v1940
    %v1991 = vpack.c.b16 %v1943, %v1941
    %v1992 = vpack.c.b16 %v1946, %v1944
    %v1993 = vpack.c.b16 %v1947, %v1945
    %v1994 = vpack.c.b16 %v1950, %v1948
    %v1995 = vpack.c.b16 %v1951, %v1949
    %v1996 = vpack.c.b16 %v1954, %v1952
    %v1997 = vpack.c.b16 %v1955, %v1953
    %v1998 = vpack.c.b16 %v1958, %v1956
    %v1999 = vpack.c.b16 %v1959, %v1957
    %v2000 = vpack.c.b16 %v1962, %v1960
    %v2001 = vpack.c.b16 %v1963, %v1961
    %v2002 = vpack.c.b16 %v1966, %v1964
    %v2003 = vpack.c.b16 %v1967, %v1965
    %v2004 = vpack.c.b16 %v1970, %v1968
    %v2005 = vpack.c.b16 %v1971, %v1969
    %v2006 = vpack.c.b16 %v1974, %v1972
    %v2007 = vpack.c.b16 %v1975, %v1973
    %2040 = vmatprep.subr.bf16.mxu0 %v1977
    %2041 = vmatpush1.bf16.msra.mxu0 %v1976
    %2042 = vmatprep.subr.bf16.mxu0 %v1979
    %2043 = vmatpush1.bf16.msra.mxu0 %v1978
    %2044 = vmatprep.subr.bf16.mxu0 %v1981
    %2045 = vmatpush1.bf16.msra.mxu0 %v1980
    %2046 = vmatprep.subr.bf16.mxu0 %v1983
    %2047 = vmatpush1.bf16.msra.mxu0 %v1982
    %2048 = vmatprep.subr.bf16.mxu0 %v1985
    %2049 = vmatpush1.bf16.msra.mxu0 %v1984
    %2050 = vmatprep.subr.bf16.mxu0 %v1987
    %2051 = vmatpush1.bf16.msra.mxu0 %v1986
    %2052 = vmatprep.subr.bf16.mxu0 %v1989
    %2053 = vmatpush1.bf16.msra.mxu0 %v1988
    %2054 = vmatprep.subr.bf16.mxu0 %v1991
    %2055 = vmatpush1.bf16.msra.mxu0 %v1990
    %2056 = vmatprep.subr.bf16.mxu0 %v1993
    %2057 = vmatpush1.bf16.msra.mxu0 %v1992
    %2058 = vmatprep.subr.bf16.mxu0 %v1995
    %2059 = vmatpush1.bf16.msra.mxu0 %v1994
    %2060 = vmatprep.subr.bf16.mxu0 %v1997
    %2061 = vmatpush1.bf16.msra.mxu0 %v1996
    %2062 = vmatprep.subr.bf16.mxu0 %v1999
    %2063 = vmatpush1.bf16.msra.mxu0 %v1998
    %2064 = vmatprep.subr.bf16.mxu0 %v2001
    %2065 = vmatpush1.bf16.msra.mxu0 %v2000
    %2066 = vmatprep.subr.bf16.mxu0 %v2003
    %2067 = vmatpush1.bf16.msra.mxu0 %v2002
    %2068 = vmatprep.subr.bf16.mxu0 %v2005
    %2069 = vmatpush1.bf16.msra.mxu0 %v2004
    %2070 = vmatprep.subr.bf16.mxu0 %v2007
    %2071 = vmatpush1.bf16.msra.mxu0 %v2006
    %2072 = vmatprep.mubr.bf16.mxu0 %v1865
    %2073 = vmatmul.mubr.bf16.gmra.mrb[0].mxu0 %v1864
    %v2074 = vpop.f32.mrb[0].mxu0
    %v2075 = vadd.f32 %v1826, %v2074
    %v2076 = vpop.f32.mrb[0].mxu0
    %v2077 = vadd.f32 %v1828, %v2076
    %v2078 = vpop.f32.mrb[0].mxu0
    %v2079 = vadd.f32 %v1830, %v2078
    %v2080 = vpop.f32.mrb[0].mxu0
    %v2081 = vadd.f32 %v1832, %v2080
    %2082 = vmatprep.mubr.bf16.mxu0 %v1867
    %2083 = vmatmul.mubr.bf16.gmra.mrb[0].mxu0 %v1866
    %v2084 = vpop.f32.mrb[0].mxu0
    %v2085 = vadd.f32 %v1836, %v2084
    %v2086 = vpop.f32.mrb[0].mxu0
    %v2087 = vadd.f32 %v1838, %v2086
    %v2088 = vpop.f32.mrb[0].mxu0
    %v2089 = vadd.f32 %v1840, %v2088
    %v2090 = vpop.f32.mrb[0].mxu0
    %v2091 = vadd.f32 %v1842, %v2090
    %2092 = vmatprep.mubr.bf16.mxu0 %v1869
    %2093 = vmatmul.mubr.bf16.gmra.mrb[0].mxu0 %v1868
    %v2094 = vpop.f32.mrb[0].mxu0
    %v2095 = vadd.f32 %v1846, %v2094
    %v2096 = vpop.f32.mrb[0].mxu0
    %v2097 = vadd.f32 %v1848, %v2096
    %v2098 = vpop.f32.mrb[0].mxu0
    %v2099 = vadd.f32 %v1850, %v2098
    %v2100 = vpop.f32.mrb[0].mxu0
    %v2101 = vadd.f32 %v1852, %v2100
    %2102 = vmatprep.mubr.bf16.mxu0 %v1871
    %2103 = vmatmul.mubr.bf16.gmra.mrb[0].mxu0 %v1870
    %v2104 = vpop.f32.mrb[0].mxu0
    %v2105 = vadd.f32 %v1856, %v2104
    %v2106 = vpop.f32.mrb[0].mxu0
    %v2107 = vadd.f32 %v1858, %v2106
    %v2108 = vpop.f32.mrb[0].mxu0
    %v2109 = vadd.f32 %v1860, %v2108
    %v2110 = vpop.f32.mrb[0].mxu0
    %v2111 = vadd.f32 %v1862, %v2110
    %2112 = vdwg.mxu0
    %vm2113 = vcmask 1042432
    %vm2114 = vcmask 1046532
    %vm2115 = vmor %vm2113, %vm2114
    %v2116 = vrot.slane %v1435, 5
    %v2117 = vrot.slane %v2116, 4
    %v2118 = vrot.slane %v1436, 5
    %v2119 = vsel %vm2115, %v2117, %v2118
    %v2120 = vrot.slane %v1437, 5
    %v2121 = vrot.slane %v2120, 4
    %v2122 = vrot.slane %v1438, 5
    %v2123 = vsel %vm2115, %v2121, %v2122
    %v2124 = vrot.slane %v1439, 5
    %v2125 = vrot.slane %v2124, 4
    %v2126 = vrot.slane %v1440, 5
    %v2127 = vsel %vm2115, %v2125, %v2126
    %v2128 = vrot.slane %v1441, 5
    %v2129 = vrot.slane %v2128, 4
    %v2130 = vrot.slane %v1442, 5
    %v2131 = vsel %vm2115, %v2129, %v2130
    %v2132 = vrot.slane %v1443, 5
    %v2133 = vrot.slane %v2132, 4
    %v2134 = vrot.slane %v1444, 5
    %v2135 = vsel %vm2115, %v2133, %v2134
    %v2136 = vrot.slane %v1445, 5
    %v2137 = vrot.slane %v2136, 4
    %v2138 = vrot.slane %v1446, 5
    %v2139 = vsel %vm2115, %v2137, %v2138
    %v2140 = vrot.slane %v1447, 5
    %v2141 = vrot.slane %v2140, 4
    %v2142 = vrot.slane %v1448, 5
    %v2143 = vsel %vm2115, %v2141, %v2142
    %v2144 = vrot.slane %v1449, 5
    %v2145 = vrot.slane %v2144, 4
    %v2146 = vrot.slane %v1450, 5
    %v2147 = vsel %vm2115, %v2145, %v2146
    %s2148 = scalar_lea.vmem [#allocation2], 512
    %v2149 = vld [vmem:[%s2148] sm:$0xff]
    %v2150 = vld [vmem:[%s2148 + $0x8] sm:$0xff]
    %v2151 = vld [vmem:[%s2148 + $0x10] sm:$0xff]
    %v2152 = vld [vmem:[%s2148 + $0x18] sm:$0xff]
    %v2153 = vld [vmem:[%s2148 + $0x20] sm:$0xff]
    %v2154 = vld [vmem:[%s2148 + $0x28] sm:$0xff]
    %v2155 = vld [vmem:[%s2148 + $0x30] sm:$0xff]
    %v2156 = vld [vmem:[%s2148 + $0x38] sm:$0xff]
    %v2157 = vld [vmem:[%s2148 + $0x40] sm:$0xff]
    %v2158 = vld [vmem:[%s2148 + $0x48] sm:$0xff]
    %v2159 = vld [vmem:[%s2148 + $0x50] sm:$0xff]
    %v2160 = vld [vmem:[%s2148 + $0x58] sm:$0xff]
    %v2161 = vld [vmem:[%s2148 + $0x60] sm:$0xff]
    %v2162 = vld [vmem:[%s2148 + $0x68] sm:$0xff]
    %v2163 = vld [vmem:[%s2148 + $0x70] sm:$0xff]
    %v2164 = vld [vmem:[%s2148 + $0x78] sm:$0xff]
    %v2165 = vld [vmem:[%s2148 + $0x80] sm:$0xff]
    %v2166 = vld [vmem:[%s2148 + $0x88] sm:$0xff]
    %v2167 = vld [vmem:[%s2148 + $0x90] sm:$0xff]
    %v2168 = vld [vmem:[%s2148 + $0x98] sm:$0xff]
    %v2169 = vld [vmem:[%s2148 + $0xa0] sm:$0xff]
    %v2170 = vld [vmem:[%s2148 + $0xa8] sm:$0xff]
    %v2171 = vld [vmem:[%s2148 + $0xb0] sm:$0xff]
    %v2172 = vld [vmem:[%s2148 + $0xb8] sm:$0xff]
    %v2173 = vld [vmem:[%s2148 + $0xc0] sm:$0xff]
    %v2174 = vld [vmem:[%s2148 + $0xc8] sm:$0xff]
    %v2175 = vld [vmem:[%s2148 + $0xd0] sm:$0xff]
    %v2176 = vld [vmem:[%s2148 + $0xd8] sm:$0xff]
    %v2177 = vld [vmem:[%s2148 + $0xe0] sm:$0xff]
    %v2178 = vld [vmem:[%s2148 + $0xe8] sm:$0xff]
    %v2179 = vld [vmem:[%s2148 + $0xf0] sm:$0xff]
    %v2180 = vld [vmem:[%s2148 + $0xf8] sm:$0xff]
    %v2181 = vunpack.c.l.b16 %v2119
    %v2182 = vunpack.c.h.b16 %v2119
    %v2183 = vunpack.c.l.b16 %v2123
    %v2184 = vunpack.c.h.b16 %v2123
    %v2185 = vunpack.c.l.b16 %v2127
    %v2186 = vunpack.c.h.b16 %v2127
    %v2187 = vunpack.c.l.b16 %v2131
    %v2188 = vunpack.c.h.b16 %v2131
    %v2189 = vunpack.c.l.b16 %v2135
    %v2190 = vunpack.c.h.b16 %v2135
    %v2191 = vunpack.c.l.b16 %v2139
    %v2192 = vunpack.c.h.b16 %v2139
    %v2193 = vunpack.c.l.b16 %v2143
    %v2194 = vunpack.c.h.b16 %v2143
    %v2195 = vunpack.c.l.b16 %v2147
    %v2196 = vunpack.c.h.b16 %v2147
    %v2197 = vpack.c.b16 %v2183, %v2181
    %v2198 = vpack.c.b16 %v2184, %v2182
    %v2199 = vpack.c.b16 %v2187, %v2185
    %v2200 = vpack.c.b16 %v2188, %v2186
    %v2201 = vpack.c.b16 %v2191, %v2189
    %v2202 = vpack.c.b16 %v2192, %v2190
    %v2203 = vpack.c.b16 %v2195, %v2193
    %v2204 = vpack.c.b16 %v2196, %v2194
    %v2245 = vunpack.c.l.b16 %v2149
    %v2246 = vunpack.c.h.b16 %v2149
    %v2247 = vunpack.c.l.b16 %v2150
    %v2248 = vunpack.c.h.b16 %v2150
    %v2249 = vunpack.c.l.b16 %v2151
    %v2250 = vunpack.c.h.b16 %v2151
    %v2251 = vunpack.c.l.b16 %v2152
    %v2252 = vunpack.c.h.b16 %v2152
    %v2253 = vunpack.c.l.b16 %v2153
    %v2254 = vunpack.c.h.b16 %v2153
    %v2255 = vunpack.c.l.b16 %v2154
    %v2256 = vunpack.c.h.b16 %v2154
    %v2257 = vunpack.c.l.b16 %v2155
    %v2258 = vunpack.c.h.b16 %v2155
    %v2259 = vunpack.c.l.b16 %v2156
    %v2260 = vunpack.c.h.b16 %v2156
    %v2261 = vunpack.c.l.b16 %v2157
    %v2262 = vunpack.c.h.b16 %v2157
    %v2263 = vunpack.c.l.b16 %v2158
    %v2264 = vunpack.c.h.b16 %v2158
    %v2265 = vunpack.c.l.b16 %v2159
    %v2266 = vunpack.c.h.b16 %v2159
    %v2267 = vunpack.c.l.b16 %v2160
    %v2268 = vunpack.c.h.b16 %v2160
    %v2269 = vunpack.c.l.b16 %v2161
    %v2270 = vunpack.c.h.b16 %v2161
    %v2271 = vunpack.c.l.b16 %v2162
    %v2272 = vunpack.c.h.b16 %v2162
    %v2273 = vunpack.c.l.b16 %v2163
    %v2274 = vunpack.c.h.b16 %v2163
    %v2275 = vunpack.c.l.b16 %v2164
    %v2276 = vunpack.c.h.b16 %v2164
    %v2277 = vunpack.c.l.b16 %v2165
    %v2278 = vunpack.c.h.b16 %v2165
    %v2279 = vunpack.c.l.b16 %v2166
    %v2280 = vunpack.c.h.b16 %v2166
    %v2281 = vunpack.c.l.b16 %v2167
    %v2282 = vunpack.c.h.b16 %v2167
    %v2283 = vunpack.c.l.b16 %v2168
    %v2284 = vunpack.c.h.b16 %v2168
    %v2285 = vunpack.c.l.b16 %v2169
    %v2286 = vunpack.c.h.b16 %v2169
    %v2287 = vunpack.c.l.b16 %v2170
    %v2288 = vunpack.c.h.b16 %v2170
    %v2289 = vunpack.c.l.b16 %v2171
    %v2290 = vunpack.c.h.b16 %v2171
    %v2291 = vunpack.c.l.b16 %v2172
    %v2292 = vunpack.c.h.b16 %v2172
    %v2293 = vunpack.c.l.b16 %v2173
    %v2294 = vunpack.c.h.b16 %v2173
    %v2295 = vunpack.c.l.b16 %v2174
    %v2296 = vunpack.c.h.b16 %v2174
    %v2297 = vunpack.c.l.b16 %v2175
    %v2298 = vunpack.c.h.b16 %v2175
    %v2299 = vunpack.c.l.b16 %v2176
    %v2300 = vunpack.c.h.b16 %v2176
    %v2301 = vunpack.c.l.b16 %v2177
    %v2302 = vunpack.c.h.b16 %v2177
    %v2303 = vunpack.c.l.b16 %v2178
    %v2304 = vunpack.c.h.b16 %v2178
    %v2305 = vunpack.c.l.b16 %v2179
    %v2306 = vunpack.c.h.b16 %v2179
    %v2307 = vunpack.c.l.b16 %v2180
    %v2308 = vunpack.c.h.b16 %v2180
    %v2309 = vpack.c.b16 %v2247, %v2245
    %v2310 = vpack.c.b16 %v2248, %v2246
    %v2311 = vpack.c.b16 %v2251, %v2249
    %v2312 = vpack.c.b16 %v2252, %v2250
    %v2313 = vpack.c.b16 %v2255, %v2253
    %v2314 = vpack.c.b16 %v2256, %v2254
    %v2315 = vpack.c.b16 %v2259, %v2257
    %v2316 = vpack.c.b16 %v2260, %v2258
    %v2317 = vpack.c.b16 %v2263, %v2261
    %v2318 = vpack.c.b16 %v2264, %v2262
    %v2319 = vpack.c.b16 %v2267, %v2265
    %v2320 = vpack.c.b16 %v2268, %v2266
    %v2321 = vpack.c.b16 %v2271, %v2269
    %v2322 = vpack.c.b16 %v2272, %v2270
    %v2323 = vpack.c.b16 %v2275, %v2273
    %v2324 = vpack.c.b16 %v2276, %v2274
    %v2325 = vpack.c.b16 %v2279, %v2277
    %v2326 = vpack.c.b16 %v2280, %v2278
    %v2327 = vpack.c.b16 %v2283, %v2281
    %v2328 = vpack.c.b16 %v2284, %v2282
    %v2329 = vpack.c.b16 %v2287, %v2285
    %v2330 = vpack.c.b16 %v2288, %v2286
    %v2331 = vpack.c.b16 %v2291, %v2289
    %v2332 = vpack.c.b16 %v2292, %v2290
    %v2333 = vpack.c.b16 %v2295, %v2293
    %v2334 = vpack.c.b16 %v2296, %v2294
    %v2335 = vpack.c.b16 %v2299, %v2297
    %v2336 = vpack.c.b16 %v2300, %v2298
    %v2337 = vpack.c.b16 %v2303, %v2301
    %v2338 = vpack.c.b16 %v2304, %v2302
    %v2339 = vpack.c.b16 %v2307, %v2305
    %v2340 = vpack.c.b16 %v2308, %v2306
    %2373 = vmatprep.subr.bf16.mxu0 %v2310
    %2374 = vmatpush1.bf16.msra.mxu0 %v2309
    %2375 = vmatprep.subr.bf16.mxu0 %v2312
    %2376 = vmatpush1.bf16.msra.mxu0 %v2311
    %2377 = vmatprep.subr.bf16.mxu0 %v2314
    %2378 = vmatpush1.bf16.msra.mxu0 %v2313
    %2379 = vmatprep.subr.bf16.mxu0 %v2316
    %2380 = vmatpush1.bf16.msra.mxu0 %v2315
    %2381 = vmatprep.subr.bf16.mxu0 %v2318
    %2382 = vmatpush1.bf16.msra.mxu0 %v2317
    %2383 = vmatprep.subr.bf16.mxu0 %v2320
    %2384 = vmatpush1.bf16.msra.mxu0 %v2319
    %2385 = vmatprep.subr.bf16.mxu0 %v2322
    %2386 = vmatpush1.bf16.msra.mxu0 %v2321
    %2387 = vmatprep.subr.bf16.mxu0 %v2324
    %2388 = vmatpush1.bf16.msra.mxu0 %v2323
    %2389 = vmatprep.subr.bf16.mxu0 %v2326
    %2390 = vmatpush1.bf16.msra.mxu0 %v2325
    %2391 = vmatprep.subr.bf16.mxu0 %v2328
    %2392 = vmatpush1.bf16.msra.mxu0 %v2327
    %2393 = vmatprep.subr.bf16.mxu0 %v2330
    %2394 = vmatpush1.bf16.msra.mxu0 %v2329
    %2395 = vmatprep.subr.bf16.mxu0 %v2332
    %2396 = vmatpush1.bf16.msra.mxu0 %v2331
    %2397 = vmatprep.subr.bf16.mxu0 %v2334
    %2398 = vmatpush1.bf16.msra.mxu0 %v2333
    %2399 = vmatprep.subr.bf16.mxu0 %v2336
    %2400 = vmatpush1.bf16.msra.mxu0 %v2335
    %2401 = vmatprep.subr.bf16.mxu0 %v2338
    %2402 = vmatpush1.bf16.msra.mxu0 %v2337
    %2403 = vmatprep.subr.bf16.mxu0 %v2340
    %2404 = vmatpush1.bf16.msra.mxu0 %v2339
    %2405 = vmatprep.mubr.bf16.mxu0 %v2198
    %2406 = vmatmul.mubr.bf16.gmra.mrb[0].mxu0 %v2197
    %v2407 = vpop.f32.mrb[0].mxu0
    %v2408 = vadd.f32 0.0, %v2407
    %v2409 = vpop.f32.mrb[0].mxu0
    %v2410 = vadd.f32 0.0, %v2409
    %v2411 = vpop.f32.mrb[0].mxu0
    %v2412 = vadd.f32 0.0, %v2411
    %v2413 = vpop.f32.mrb[0].mxu0
    %v2414 = vadd.f32 0.0, %v2413
    %2415 = vmatprep.mubr.bf16.mxu0 %v2200
    %2416 = vmatmul.mubr.bf16.gmra.mrb[0].mxu0 %v2199
    %v2417 = vpop.f32.mrb[0].mxu0
    %v2418 = vadd.f32 0.0, %v2417
    %v2419 = vpop.f32.mrb[0].mxu0
    %v2420 = vadd.f32 0.0, %v2419
    %v2421 = vpop.f32.mrb[0].mxu0
    %v2422 = vadd.f32 0.0, %v2421
    %v2423 = vpop.f32.mrb[0].mxu0
    %v2424 = vadd.f32 0.0, %v2423
    %2425 = vmatprep.mubr.bf16.mxu0 %v2202
    %2426 = vmatmul.mubr.bf16.gmra.mrb[0].mxu0 %v2201
    %v2427 = vpop.f32.mrb[0].mxu0
    %v2428 = vadd.f32 0.0, %v2427
    %v2429 = vpop.f32.mrb[0].mxu0
    %v2430 = vadd.f32 0.0, %v2429
    %v2431 = vpop.f32.mrb[0].mxu0
    %v2432 = vadd.f32 0.0, %v2431
    %v2433 = vpop.f32.mrb[0].mxu0
    %v2434 = vadd.f32 0.0, %v2433
    %2435 = vmatprep.mubr.bf16.mxu0 %v2204
    %2436 = vmatmul.mubr.bf16.gmra.mrb[0].mxu0 %v2203
    %v2437 = vpop.f32.mrb[0].mxu0
    %v2438 = vadd.f32 0.0, %v2437
    %v2439 = vpop.f32.mrb[0].mxu0
    %v2440 = vadd.f32 0.0, %v2439
    %v2441 = vpop.f32.mrb[0].mxu0
    %v2442 = vadd.f32 0.0, %v2441
    %v2443 = vpop.f32.mrb[0].mxu0
    %v2444 = vadd.f32 0.0, %v2443
    %2445 = vdwg.mxu0
    %v2446 = vadd.f32 %v2075, %v2408
    %v2447 = vadd.f32 %v2077, %v2410
    %v2448 = vadd.f32 %v2079, %v2412
    %v2449 = vadd.f32 %v2081, %v2414
    %v2450 = vadd.f32 %v2085, %v2418
    %v2451 = vadd.f32 %v2087, %v2420
    %v2452 = vadd.f32 %v2089, %v2422
    %v2453 = vadd.f32 %v2091, %v2424
    %v2454 = vadd.f32 %v2095, %v2428
    %v2455 = vadd.f32 %v2097, %v2430
    %v2456 = vadd.f32 %v2099, %v2432
    %v2457 = vadd.f32 %v2101, %v2434
    %v2458 = vadd.f32 %v2105, %v2438
    %v2459 = vadd.f32 %v2107, %v2440
    %v2460 = vadd.f32 %v2109, %v2442
    %v2461 = vadd.f32 %v2111, %v2444
    %vm2462 = vsmask.f32 2304
    %vm2463 = vsmask.f32 6416
    %vm2464 = vmor %vm2462, %vm2463
    %v2465 = vrot.slane %v1455, 5
    %v2466 = vrot.slane %v1458, 6
    %v2467 = vor.u32 %v2465, %v2466
    %v2468 = vrot.slane %v2467, 4
    %v2469 = vshrl.u32 %v1436, 16
    %v2471 = vrot.slane %v2469, 5
    %v2472 = vrot.slane %v1464, 6
    %v2473 = vor.u32 %v2471, %v2472
    %v2474 = vsel %vm2464, %v2468, %v2473
    %v2475 = vrot.slane %v1469, 5
    %v2476 = vrot.slane %v1472, 6
    %v2477 = vor.u32 %v2475, %v2476
    %v2478 = vrot.slane %v2477, 4
    %v2479 = vshrl.u32 %v1438, 16
    %v2481 = vrot.slane %v2479, 5
    %v2482 = vrot.slane %v1478, 6
    %v2483 = vor.u32 %v2481, %v2482
    %v2484 = vsel %vm2464, %v2478, %v2483
    %v2485 = vrot.slane %v1483, 5
    %v2486 = vrot.slane %v1486, 6
    %v2487 = vor.u32 %v2485, %v2486
    %v2488 = vrot.slane %v2487, 4
    %v2489 = vshrl.u32 %v1440, 16
    %v2491 = vrot.slane %v2489, 5
    %v2492 = vrot.slane %v1492, 6
    %v2493 = vor.u32 %v2491, %v2492
    %v2494 = vsel %vm2464, %v2488, %v2493
    %v2495 = vrot.slane %v1497, 5
    %v2496 = vrot.slane %v1500, 6
    %v2497 = vor.u32 %v2495, %v2496
    %v2498 = vrot.slane %v2497, 4
    %v2499 = vshrl.u32 %v1442, 16
    %v2501 = vrot.slane %v2499, 5
    %v2502 = vrot.slane %v1506, 6
    %v2503 = vor.u32 %v2501, %v2502
    %v2504 = vsel %vm2464, %v2498, %v2503
    %v2505 = vrot.slane %v1511, 5
    %v2506 = vrot.slane %v1514, 6
    %v2507 = vor.u32 %v2505, %v2506
    %v2508 = vrot.slane %v2507, 4
    %v2509 = vshrl.u32 %v1444, 16
    %v2511 = vrot.slane %v2509, 5
    %v2512 = vrot.slane %v1520, 6
    %v2513 = vor.u32 %v2511, %v2512
    %v2514 = vsel %vm2464, %v2508, %v2513
    %v2515 = vrot.slane %v1525, 5
    %v2516 = vrot.slane %v1528, 6
    %v2517 = vor.u32 %v2515, %v2516
    %v2518 = vrot.slane %v2517, 4
    %v2519 = vshrl.u32 %v1446, 16
    %v2521 = vrot.slane %v2519, 5
    %v2522 = vrot.slane %v1534, 6
    %v2523 = vor.u32 %v2521, %v2522
    %v2524 = vsel %vm2464, %v2518, %v2523
    %v2525 = vrot.slane %v1539, 5
    %v2526 = vrot.slane %v1542, 6
    %v2527 = vor.u32 %v2525, %v2526
    %v2528 = vrot.slane %v2527, 4
    %v2529 = vshrl.u32 %v1448, 16
    %v2531 = vrot.slane %v2529, 5
    %v2532 = vrot.slane %v1548, 6
    %v2533 = vor.u32 %v2531, %v2532
    %v2534 = vsel %vm2464, %v2528, %v2533
    %v2535 = vrot.slane %v1553, 5
    %v2536 = vrot.slane %v1556, 6
    %v2537 = vor.u32 %v2535, %v2536
    %v2538 = vrot.slane %v2537, 4
    %v2539 = vshrl.u32 %v1450, 16
    %v2541 = vrot.slane %v2539, 5
    %v2542 = vrot.slane %v1562, 6
    %v2543 = vor.u32 %v2541, %v2542
    %v2544 = vsel %vm2464, %v2538, %v2543
    %s2545 = scalar_lea.vmem [#allocation2], 768
    %v2546 = vld [vmem:[%s2545] sm:$0xff]
    %v2547 = vld [vmem:[%s2545 + $0x8] sm:$0xff]
    %v2548 = vld [vmem:[%s2545 + $0x10] sm:$0xff]
    %v2549 = vld [vmem:[%s2545 + $0x18] sm:$0xff]
    %v2550 = vld [vmem:[%s2545 + $0x20] sm:$0xff]
    %v2551 = vld [vmem:[%s2545 + $0x28] sm:$0xff]
    %v2552 = vld [vmem:[%s2545 + $0x30] sm:$0xff]
    %v2553 = vld [vmem:[%s2545 + $0x38] sm:$0xff]
    %v2554 = vld [vmem:[%s2545 + $0x40] sm:$0xff]
    %v2555 = vld [vmem:[%s2545 + $0x48] sm:$0xff]
    %v2556 = vld [vmem:[%s2545 + $0x50] sm:$0xff]
    %v2557 = vld [vmem:[%s2545 + $0x58] sm:$0xff]
    %v2558 = vld [vmem:[%s2545 + $0x60] sm:$0xff]
    %v2559 = vld [vmem:[%s2545 + $0x68] sm:$0xff]
    %v2560 = vld [vmem:[%s2545 + $0x70] sm:$0xff]
    %v2561 = vld [vmem:[%s2545 + $0x78] sm:$0xff]
    %v2562 = vld [vmem:[%s2545 + $0x80] sm:$0xff]
    %v2563 = vld [vmem:[%s2545 + $0x88] sm:$0xff]
    %v2564 = vld [vmem:[%s2545 + $0x90] sm:$0xff]
    %v2565 = vld [vmem:[%s2545 + $0x98] sm:$0xff]
    %v2566 = vld [vmem:[%s2545 + $0xa0] sm:$0xff]
    %v2567 = vld [vmem:[%s2545 + $0xa8] sm:$0xff]
    %v2568 = vld [vmem:[%s2545 + $0xb0] sm:$0xff]
    %v2569 = vld [vmem:[%s2545 + $0xb8] sm:$0xff]
    %v2570 = vld [vmem:[%s2545 + $0xc0] sm:$0xff]
    %v2571 = vld [vmem:[%s2545 + $0xc8] sm:$0xff]
    %v2572 = vld [vmem:[%s2545 + $0xd0] sm:$0xff]
    %v2573 = vld [vmem:[%s2545 + $0xd8] sm:$0xff]
    %v2574 = vld [vmem:[%s2545 + $0xe0] sm:$0xff]
    %v2575 = vld [vmem:[%s2545 + $0xe8] sm:$0xff]
    %v2576 = vld [vmem:[%s2545 + $0xf0] sm:$0xff]
    %v2577 = vld [vmem:[%s2545 + $0xf8] sm:$0xff]
    %v2578 = vunpack.c.l.b16 %v2474
    %v2579 = vunpack.c.h.b16 %v2474
    %v2580 = vunpack.c.l.b16 %v2484
    %v2581 = vunpack.c.h.b16 %v2484
    %v2582 = vunpack.c.l.b16 %v2494
    %v2583 = vunpack.c.h.b16 %v2494
    %v2584 = vunpack.c.l.b16 %v2504
    %v2585 = vunpack.c.h.b16 %v2504
    %v2586 = vunpack.c.l.b16 %v2514
    %v2587 = vunpack.c.h.b16 %v2514
    %v2588 = vunpack.c.l.b16 %v2524
    %v2589 = vunpack.c.h.b16 %v2524
    %v2590 = vunpack.c.l.b16 %v2534
    %v2591 = vunpack.c.h.b16 %v2534
    %v2592 = vunpack.c.l.b16 %v2544
    %v2593 = vunpack.c.h.b16 %v2544
    %v2594 = vpack.c.b16 %v2580, %v2578
    %v2595 = vpack.c.b16 %v2581, %v2579
    %v2596 = vpack.c.b16 %v2584, %v2582
    %v2597 = vpack.c.b16 %v2585, %v2583
    %v2598 = vpack.c.b16 %v2588, %v2586
    %v2599 = vpack.c.b16 %v2589, %v2587
    %v2600 = vpack.c.b16 %v2592, %v2590
    %v2601 = vpack.c.b16 %v2593, %v2591
    %v2642 = vunpack.c.l.b16 %v2546
    %v2643 = vunpack.c.h.b16 %v2546
    %v2644 = vunpack.c.l.b16 %v2547
    %v2645 = vunpack.c.h.b16 %v2547
    %v2646 = vunpack.c.l.b16 %v2548
    %v2647 = vunpack.c.h.b16 %v2548
    %v2648 = vunpack.c.l.b16 %v2549
    %v2649 = vunpack.c.h.b16 %v2549
    %v2650 = vunpack.c.l.b16 %v2550
    %v2651 = vunpack.c.h.b16 %v2550
    %v2652 = vunpack.c.l.b16 %v2551
    %v2653 = vunpack.c.h.b16 %v2551
    %v2654 = vunpack.c.l.b16 %v2552
    %v2655 = vunpack.c.h.b16 %v2552
    %v2656 = vunpack.c.l.b16 %v2553
    %v2657 = vunpack.c.h.b16 %v2553
    %v2658 = vunpack.c.l.b16 %v2554
    %v2659 = vunpack.c.h.b16 %v2554
    %v2660 = vunpack.c.l.b16 %v2555
    %v2661 = vunpack.c.h.b16 %v2555
    %v2662 = vunpack.c.l.b16 %v2556
    %v2663 = vunpack.c.h.b16 %v2556
    %v2664 = vunpack.c.l.b16 %v2557
    %v2665 = vunpack.c.h.b16 %v2557
    %v2666 = vunpack.c.l.b16 %v2558
    %v2667 = vunpack.c.h.b16 %v2558
    %v2668 = vunpack.c.l.b16 %v2559
    %v2669 = vunpack.c.h.b16 %v2559
    %v2670 = vunpack.c.l.b16 %v2560
    %v2671 = vunpack.c.h.b16 %v2560
    %v2672 = vunpack.c.l.b16 %v2561
    %v2673 = vunpack.c.h.b16 %v2561
    %v2674 = vunpack.c.l.b16 %v2562
    %v2675 = vunpack.c.h.b16 %v2562
    %v2676 = vunpack.c.l.b16 %v2563
    %v2677 = vunpack.c.h.b16 %v2563
    %v2678 = vunpack.c.l.b16 %v2564
    %v2679 = vunpack.c.h.b16 %v2564
    %v2680 = vunpack.c.l.b16 %v2565
    %v2681 = vunpack.c.h.b16 %v2565
    %v2682 = vunpack.c.l.b16 %v2566
    %v2683 = vunpack.c.h.b16 %v2566
    %v2684 = vunpack.c.l.b16 %v2567
    %v2685 = vunpack.c.h.b16 %v2567
    %v2686 = vunpack.c.l.b16 %v2568
    %v2687 = vunpack.c.h.b16 %v2568
    %v2688 = vunpack.c.l.b16 %v2569
    %v2689 = vunpack.c.h.b16 %v2569
    %v2690 = vunpack.c.l.b16 %v2570
    %v2691 = vunpack.c.h.b16 %v2570
    %v2692 = vunpack.c.l.b16 %v2571
    %v2693 = vunpack.c.h.b16 %v2571
    %v2694 = vunpack.c.l.b16 %v2572
    %v2695 = vunpack.c.h.b16 %v2572
    %v2696 = vunpack.c.l.b16 %v2573
    %v2697 = vunpack.c.h.b16 %v2573
    %v2698 = vunpack.c.l.b16 %v2574
    %v2699 = vunpack.c.h.b16 %v2574
    %v2700 = vunpack.c.l.b16 %v2575
    %v2701 = vunpack.c.h.b16 %v2575
    %v2702 = vunpack.c.l.b16 %v2576
    %v2703 = vunpack.c.h.b16 %v2576
    %v2704 = vunpack.c.l.b16 %v2577
    %v2705 = vunpack.c.h.b16 %v2577
    %v2706 = vpack.c.b16 %v2644, %v2642
    %v2707 = vpack.c.b16 %v2645, %v2643
    %v2708 = vpack.c.b16 %v2648, %v2646
    %v2709 = vpack.c.b16 %v2649, %v2647
    %v2710 = vpack.c.b16 %v2652, %v2650
    %v2711 = vpack.c.b16 %v2653, %v2651
    %v2712 = vpack.c.b16 %v2656, %v2654
    %v2713 = vpack.c.b16 %v2657, %v2655
    %v2714 = vpack.c.b16 %v2660, %v2658
    %v2715 = vpack.c.b16 %v2661, %v2659
    %v2716 = vpack.c.b16 %v2664, %v2662
    %v2717 = vpack.c.b16 %v2665, %v2663
    %v2718 = vpack.c.b16 %v2668, %v2666
    %v2719 = vpack.c.b16 %v2669, %v2667
    %v2720 = vpack.c.b16 %v2672, %v2670
    %v2721 = vpack.c.b16 %v2673, %v2671
    %v2722 = vpack.c.b16 %v2676, %v2674
    %v2723 = vpack.c.b16 %v2677, %v2675
    %v2724 = vpack.c.b16 %v2680, %v2678
    %v2725 = vpack.c.b16 %v2681, %v2679
    %v2726 = vpack.c.b16 %v2684, %v2682
    %v2727 = vpack.c.b16 %v2685, %v2683
    %v2728 = vpack.c.b16 %v2688, %v2686
    %v2729 = vpack.c.b16 %v2689, %v2687
    %v2730 = vpack.c.b16 %v2692, %v2690
    %v2731 = vpack.c.b16 %v2693, %v2691
    %v2732 = vpack.c.b16 %v2696, %v2694
    %v2733 = vpack.c.b16 %v2697, %v2695
    %v2734 = vpack.c.b16 %v2700, %v2698
    %v2735 = vpack.c.b16 %v2701, %v2699
    %v2736 = vpack.c.b16 %v2704, %v2702
    %v2737 = vpack.c.b16 %v2705, %v2703
    %2770 = vmatprep.subr.bf16.mxu0 %v2707
    %2771 = vmatpush1.bf16.msra.mxu0 %v2706
    %2772 = vmatprep.subr.bf16.mxu0 %v2709
    %2773 = vmatpush1.bf16.msra.mxu0 %v2708
    %2774 = vmatprep.subr.bf16.mxu0 %v2711
    %2775 = vmatpush1.bf16.msra.mxu0 %v2710
    %2776 = vmatprep.subr.bf16.mxu0 %v2713
    %2777 = vmatpush1.bf16.msra.mxu0 %v2712
    %2778 = vmatprep.subr.bf16.mxu0 %v2715
    %2779 = vmatpush1.bf16.msra.mxu0 %v2714
    %2780 = vmatprep.subr.bf16.mxu0 %v2717
    %2781 = vmatpush1.bf16.msra.mxu0 %v2716
    %2782 = vmatprep.subr.bf16.mxu0 %v2719
    %2783 = vmatpush1.bf16.msra.mxu0 %v2718
    %2784 = vmatprep.subr.bf16.mxu0 %v2721
    %2785 = vmatpush1.bf16.msra.mxu0 %v2720
    %2786 = vmatprep.subr.bf16.mxu0 %v2723
    %2787 = vmatpush1.bf16.msra.mxu0 %v2722
    %2788 = vmatprep.subr.bf16.mxu0 %v2725
    %2789 = vmatpush1.bf16.msra.mxu0 %v2724
    %2790 = vmatprep.subr.bf16.mxu0 %v2727
    %2791 = vmatpush1.bf16.msra.mxu0 %v2726
    %2792 = vmatprep.subr.bf16.mxu0 %v2729
    %2793 = vmatpush1.bf16.msra.mxu0 %v2728
    %2794 = vmatprep.subr.bf16.mxu0 %v2731
    %2795 = vmatpush1.bf16.msra.mxu0 %v2730
    %2796 = vmatprep.subr.bf16.mxu0 %v2733
    %2797 = vmatpush1.bf16.msra.mxu0 %v2732
    %2798 = vmatprep.subr.bf16.mxu0 %v2735
    %2799 = vmatpush1.bf16.msra.mxu0 %v2734
    %2800 = vmatprep.subr.bf16.mxu0 %v2737
    %2801 = vmatpush1.bf16.msra.mxu0 %v2736
    %2802 = vmatprep.mubr.bf16.mxu0 %v2595
    %2803 = vmatmul.mubr.bf16.gmra.mrb[0].mxu0 %v2594
    %v2804 = vpop.f32.mrb[0].mxu0
    %v2805 = vadd.f32 0.0, %v2804
    %v2806 = vpop.f32.mrb[0].mxu0
    %v2807 = vadd.f32 0.0, %v2806
    %v2808 = vpop.f32.mrb[0].mxu0
    %v2809 = vadd.f32 0.0, %v2808
    %v2810 = vpop.f32.mrb[0].mxu0
    %v2811 = vadd.f32 0.0, %v2810
    %2812 = vmatprep.mubr.bf16.mxu0 %v2597
    %2813 = vmatmul.mubr.bf16.gmra.mrb[0].mxu0 %v2596
    %v2814 = vpop.f32.mrb[0].mxu0
    %v2815 = vadd.f32 0.0, %v2814
    %v2816 = vpop.f32.mrb[0].mxu0
    %v2817 = vadd.f32 0.0, %v2816
    %v2818 = vpop.f32.mrb[0].mxu0
    %v2819 = vadd.f32 0.0, %v2818
    %v2820 = vpop.f32.mrb[0].mxu0
    %v2821 = vadd.f32 0.0, %v2820
    %2822 = vmatprep.mubr.bf16.mxu0 %v2599
    %2823 = vmatmul.mubr.bf16.gmra.mrb[0].mxu0 %v2598
    %v2824 = vpop.f32.mrb[0].mxu0
    %v2825 = vadd.f32 0.0, %v2824
    %v2826 = vpop.f32.mrb[0].mxu0
    %v2827 = vadd.f32 0.0, %v2826
    %v2828 = vpop.f32.mrb[0].mxu0
    %v2829 = vadd.f32 0.0, %v2828
    %v2830 = vpop.f32.mrb[0].mxu0
    %v2831 = vadd.f32 0.0, %v2830
    %2832 = vmatprep.mubr.bf16.mxu0 %v2601
    %2833 = vmatmul.mubr.bf16.gmra.mrb[0].mxu0 %v2600
    %v2834 = vpop.f32.mrb[0].mxu0
    %v2835 = vadd.f32 0.0, %v2834
    %v2836 = vpop.f32.mrb[0].mxu0
    %v2837 = vadd.f32 0.0, %v2836
    %v2838 = vpop.f32.mrb[0].mxu0
    %v2839 = vadd.f32 0.0, %v2838
    %v2840 = vpop.f32.mrb[0].mxu0
    %v2841 = vadd.f32 0.0, %v2840
    %2842 = vdwg.mxu0
    %v2843 = vadd.f32 %v2446, %v2805
    %v2844 = vadd.f32 %v2447, %v2807
    %v2845 = vadd.f32 %v2448, %v2809
    %v2846 = vadd.f32 %v2449, %v2811
    %v2847 = vadd.f32 %v2450, %v2815
    %v2848 = vadd.f32 %v2451, %v2817
    %v2849 = vadd.f32 %v2452, %v2819
    %v2850 = vadd.f32 %v2453, %v2821
    %v2851 = vadd.f32 %v2454, %v2825
    %v2852 = vadd.f32 %v2455, %v2827
    %v2853 = vadd.f32 %v2456, %v2829
    %v2854 = vadd.f32 %v2457, %v2831
    %v2855 = vadd.f32 %v2458, %v2835
    %v2856 = vadd.f32 %v2459, %v2837
    %v2857 = vadd.f32 %v2460, %v2839
    %v2858 = vadd.f32 %v2461, %v2841
    %vm2859 = vcmask 1041408
    %vm2860 = vcmask 1045508
    %vm2861 = vmor %vm2859, %vm2860
    %v2862 = vrot.slane %v1435, 6
    %v2863 = vrot.slane %v2862, 4
    %v2864 = vrot.slane %v1436, 6
    %v2865 = vsel %vm2861, %v2863, %v2864
    %v2866 = vrot.slane %v1437, 6
    %v2867 = vrot.slane %v2866, 4
    %v2868 = vrot.slane %v1438, 6
    %v2869 = vsel %vm2861, %v2867, %v2868
    %v2870 = vrot.slane %v1439, 6
    %v2871 = vrot.slane %v2870, 4
    %v2872 = vrot.slane %v1440, 6
    %v2873 = vsel %vm2861, %v2871, %v2872
    %v2874 = vrot.slane %v1441, 6
    %v2875 = vrot.slane %v2874, 4
    %v2876 = vrot.slane %v1442, 6
    %v2877 = vsel %vm2861, %v2875, %v2876
    %v2878 = vrot.slane %v1443, 6
    %v2879 = vrot.slane %v2878, 4
    %v2880 = vrot.slane %v1444, 6
    %v2881 = vsel %vm2861, %v2879, %v2880
    %v2882 = vrot.slane %v1445, 6
    %v2883 = vrot.slane %v2882, 4
    %v2884 = vrot.slane %v1446, 6
    %v2885 = vsel %vm2861, %v2883, %v2884
    %v2886 = vrot.slane %v1447, 6
    %v2887 = vrot.slane %v2886, 4
    %v2888 = vrot.slane %v1448, 6
    %v2889 = vsel %vm2861, %v2887, %v2888
    %v2890 = vrot.slane %v1449, 6
    %v2891 = vrot.slane %v2890, 4
    %v2892 = vrot.slane %v1450, 6
    %v2893 = vsel %vm2861, %v2891, %v2892
    %s2894 = scalar_lea.vmem [#allocation2], 1024
    %v2895 = vld [vmem:[%s2894] sm:$0xff]
    %v2896 = vld [vmem:[%s2894 + $0x8] sm:$0xff]
    %v2897 = vld [vmem:[%s2894 + $0x10] sm:$0xff]
    %v2898 = vld [vmem:[%s2894 + $0x18] sm:$0xff]
    %v2899 = vld [vmem:[%s2894 + $0x20] sm:$0xff]
    %v2900 = vld [vmem:[%s2894 + $0x28] sm:$0xff]
    %v2901 = vld [vmem:[%s2894 + $0x30] sm:$0xff]
    %v2902 = vld [vmem:[%s2894 + $0x38] sm:$0xff]
    %v2903 = vld [vmem:[%s2894 + $0x40] sm:$0xff]
    %v2904 = vld [vmem:[%s2894 + $0x48] sm:$0xff]
    %v2905 = vld [vmem:[%s2894 + $0x50] sm:$0xff]
    %v2906 = vld [vmem:[%s2894 + $0x58] sm:$0xff]
    %v2907 = vld [vmem:[%s2894 + $0x60] sm:$0xff]
    %v2908 = vld [vmem:[%s2894 + $0x68] sm:$0xff]
    %v2909 = vld [vmem:[%s2894 + $0x70] sm:$0xff]
    %v2910 = vld [vmem:[%s2894 + $0x78] sm:$0xff]
    %v2911 = vld [vmem:[%s2894 + $0x80] sm:$0xff]
    %v2912 = vld [vmem:[%s2894 + $0x88] sm:$0xff]
    %v2913 = vld [vmem:[%s2894 + $0x90] sm:$0xff]
    %v2914 = vld [vmem:[%s2894 + $0x98] sm:$0xff]
    %v2915 = vld [vmem:[%s2894 + $0xa0] sm:$0xff]
    %v2916 = vld [vmem:[%s2894 + $0xa8] sm:$0xff]
    %v2917 = vld [vmem:[%s2894 + $0xb0] sm:$0xff]
    %v2918 = vld [vmem:[%s2894 + $0xb8] sm:$0xff]
    %v2919 = vld [vmem:[%s2894 + $0xc0] sm:$0xff]
    %v2920 = vld [vmem:[%s2894 + $0xc8] sm:$0xff]
    %v2921 = vld [vmem:[%s2894 + $0xd0] sm:$0xff]
    %v2922 = vld [vmem:[%s2894 + $0xd8] sm:$0xff]
    %v2923 = vld [vmem:[%s2894 + $0xe0] sm:$0xff]
    %v2924 = vld [vmem:[%s2894 + $0xe8] sm:$0xff]
    %v2925 = vld [vmem:[%s2894 + $0xf0] sm:$0xff]
    %v2926 = vld [vmem:[%s2894 + $0xf8] sm:$0xff]
    %v2927 = vunpack.c.l.b16 %v2865
    %v2928 = vunpack.c.h.b16 %v2865
    %v2929 = vunpack.c.l.b16 %v2869
    %v2930 = vunpack.c.h.b16 %v2869
    %v2931 = vunpack.c.l.b16 %v2873
    %v2932 = vunpack.c.h.b16 %v2873
    %v2933 = vunpack.c.l.b16 %v2877
    %v2934 = vunpack.c.h.b16 %v2877
    %v2935 = vunpack.c.l.b16 %v2881
    %v2936 = vunpack.c.h.b16 %v2881
    %v2937 = vunpack.c.l.b16 %v2885
    %v2938 = vunpack.c.h.b16 %v2885
    %v2939 = vunpack.c.l.b16 %v2889
    %v2940 = vunpack.c.h.b16 %v2889
    %v2941 = vunpack.c.l.b16 %v2893
    %v2942 = vunpack.c.h.b16 %v2893
    %v2943 = vpack.c.b16 %v2929, %v2927
    %v2944 = vpack.c.b16 %v2930, %v2928
    %v2945 = vpack.c.b16 %v2933, %v2931
    %v2946 = vpack.c.b16 %v2934, %v2932
    %v2947 = vpack.c.b16 %v2937, %v2935
    %v2948 = vpack.c.b16 %v2938, %v2936
    %v2949 = vpack.c.b16 %v2941, %v2939
    %v2950 = vpack.c.b16 %v2942, %v2940
    %v2991 = vunpack.c.l.b16 %v2895
    %v2992 = vunpack.c.h.b16 %v2895
    %v2993 = vunpack.c.l.b16 %v2896
    %v2994 = vunpack.c.h.b16 %v2896
    %v2995 = vunpack.c.l.b16 %v2897
    %v2996 = vunpack.c.h.b16 %v2897
    %v2997 = vunpack.c.l.b16 %v2898
    %v2998 = vunpack.c.h.b16 %v2898
    %v2999 = vunpack.c.l.b16 %v2899
    %v3000 = vunpack.c.h.b16 %v2899
    %v3001 = vunpack.c.l.b16 %v2900
    %v3002 = vunpack.c.h.b16 %v2900
    %v3003 = vunpack.c.l.b16 %v2901
    %v3004 = vunpack.c.h.b16 %v2901
    %v3005 = vunpack.c.l.b16 %v2902
    %v3006 = vunpack.c.h.b16 %v2902
    %v3007 = vunpack.c.l.b16 %v2903
    %v3008 = vunpack.c.h.b16 %v2903
    %v3009 = vunpack.c.l.b16 %v2904
    %v3010 = vunpack.c.h.b16 %v2904
    %v3011 = vunpack.c.l.b16 %v2905
    %v3012 = vunpack.c.h.b16 %v2905
    %v3013 = vunpack.c.l.b16 %v2906
    %v3014 = vunpack.c.h.b16 %v2906
    %v3015 = vunpack.c.l.b16 %v2907
    %v3016 = vunpack.c.h.b16 %v2907
    %v3017 = vunpack.c.l.b16 %v2908
    %v3018 = vunpack.c.h.b16 %v2908
    %v3019 = vunpack.c.l.b16 %v2909
    %v3020 = vunpack.c.h.b16 %v2909
    %v3021 = vunpack.c.l.b16 %v2910
    %v3022 = vunpack.c.h.b16 %v2910
    %v3023 = vunpack.c.l.b16 %v2911
    %v3024 = vunpack.c.h.b16 %v2911
    %v3025 = vunpack.c.l.b16 %v2912
    %v3026 = vunpack.c.h.b16 %v2912
    %v3027 = vunpack.c.l.b16 %v2913
    %v3028 = vunpack.c.h.b16 %v2913
    %v3029 = vunpack.c.l.b16 %v2914
    %v3030 = vunpack.c.h.b16 %v2914
    %v3031 = vunpack.c.l.b16 %v2915
    %v3032 = vunpack.c.h.b16 %v2915
    %v3033 = vunpack.c.l.b16 %v2916
    %v3034 = vunpack.c.h.b16 %v2916
    %v3035 = vunpack.c.l.b16 %v2917
    %v3036 = vunpack.c.h.b16 %v2917
    %v3037 = vunpack.c.l.b16 %v2918
    %v3038 = vunpack.c.h.b16 %v2918
    %v3039 = vunpack.c.l.b16 %v2919
    %v3040 = vunpack.c.h.b16 %v2919
    %v3041 = vunpack.c.l.b16 %v2920
    %v3042 = vunpack.c.h.b16 %v2920
    %v3043 = vunpack.c.l.b16 %v2921
    %v3044 = vunpack.c.h.b16 %v2921
    %v3045 = vunpack.c.l.b16 %v2922
    %v3046 = vunpack.c.h.b16 %v2922
    %v3047 = vunpack.c.l.b16 %v2923
    %v3048 = vunpack.c.h.b16 %v2923
    %v3049 = vunpack.c.l.b16 %v2924
    %v3050 = vunpack.c.h.b16 %v2924
    %v3051 = vunpack.c.l.b16 %v2925
    %v3052 = vunpack.c.h.b16 %v2925
    %v3053 = vunpack.c.l.b16 %v2926
    %v3054 = vunpack.c.h.b16 %v2926
    %v3055 = vpack.c.b16 %v2993, %v2991
    %v3056 = vpack.c.b16 %v2994, %v2992
    %v3057 = vpack.c.b16 %v2997, %v2995
    %v3058 = vpack.c.b16 %v2998, %v2996
    %v3059 = vpack.c.b16 %v3001, %v2999
    %v3060 = vpack.c.b16 %v3002, %v3000
    %v3061 = vpack.c.b16 %v3005, %v3003
    %v3062 = vpack.c.b16 %v3006, %v3004
    %v3063 = vpack.c.b16 %v3009, %v3007
    %v3064 = vpack.c.b16 %v3010, %v3008
    %v3065 = vpack.c.b16 %v3013, %v3011
    %v3066 = vpack.c.b16 %v3014, %v3012
    %v3067 = vpack.c.b16 %v3017, %v3015
    %v3068 = vpack.c.b16 %v3018, %v3016
    %v3069 = vpack.c.b16 %v3021, %v3019
    %v3070 = vpack.c.b16 %v3022, %v3020
    %v3071 = vpack.c.b16 %v3025, %v3023
    %v3072 = vpack.c.b16 %v3026, %v3024
    %v3073 = vpack.c.b16 %v3029, %v3027
    %v3074 = vpack.c.b16 %v3030, %v3028
    %v3075 = vpack.c.b16 %v3033, %v3031
    %v3076 = vpack.c.b16 %v3034, %v3032
    %v3077 = vpack.c.b16 %v3037, %v3035
    %v3078 = vpack.c.b16 %v3038, %v3036
    %v3079 = vpack.c.b16 %v3041, %v3039
    %v3080 = vpack.c.b16 %v3042, %v3040
    %v3081 = vpack.c.b16 %v3045, %v3043
    %v3082 = vpack.c.b16 %v3046, %v3044
    %v3083 = vpack.c.b16 %v3049, %v3047
    %v3084 = vpack.c.b16 %v3050, %v3048
    %v3085 = vpack.c.b16 %v3053, %v3051
    %v3086 = vpack.c.b16 %v3054, %v3052
    %3119 = vmatprep.subr.bf16.mxu0 %v3056
    %3120 = vmatpush1.bf16.msra.mxu0 %v3055
    %3121 = vmatprep.subr.bf16.mxu0 %v3058
    %3122 = vmatpush1.bf16.msra.mxu0 %v3057
    %3123 = vmatprep.subr.bf16.mxu0 %v3060
    %3124 = vmatpush1.bf16.msra.mxu0 %v3059
    %3125 = vmatprep.subr.bf16.mxu0 %v3062
    %3126 = vmatpush1.bf16.msra.mxu0 %v3061
    %3127 = vmatprep.subr.bf16.mxu0 %v3064
    %3128 = vmatpush1.bf16.msra.mxu0 %v3063
    %3129 = vmatprep.subr.bf16.mxu0 %v3066
    %3130 = vmatpush1.bf16.msra.mxu0 %v3065
    %3131 = vmatprep.subr.bf16.mxu0 %v3068
    %3132 = vmatpush1.bf16.msra.mxu0 %v3067
    %3133 = vmatprep.subr.bf16.mxu0 %v3070
    %3134 = vmatpush1.bf16.msra.mxu0 %v3069
    %3135 = vmatprep.subr.bf16.mxu0 %v3072
    %3136 = vmatpush1.bf16.msra.mxu0 %v3071
    %3137 = vmatprep.subr.bf16.mxu0 %v3074
    %3138 = vmatpush1.bf16.msra.mxu0 %v3073
    %3139 = vmatprep.subr.bf16.mxu0 %v3076
    %3140 = vmatpush1.bf16.msra.mxu0 %v3075
    %3141 = vmatprep.subr.bf16.mxu0 %v3078
    %3142 = vmatpush1.bf16.msra.mxu0 %v3077
    %3143 = vmatprep.subr.bf16.mxu0 %v3080
    %3144 = vmatpush1.bf16.msra.mxu0 %v3079
    %3145 = vmatprep.subr.bf16.mxu0 %v3082
    %3146 = vmatpush1.bf16.msra.mxu0 %v3081
    %3147 = vmatprep.subr.bf16.mxu0 %v3084
    %3148 = vmatpush1.bf16.msra.mxu0 %v3083
    %3149 = vmatprep.subr.bf16.mxu0 %v3086
    %3150 = vmatpush1.bf16.msra.mxu0 %v3085
    %3151 = vmatprep.mubr.bf16.mxu0 %v2944
    %3152 = vmatmul.mubr.bf16.gmra.mrb[0].mxu0 %v2943
    %v3153 = vpop.f32.mrb[0].mxu0
    %v3154 = vadd.f32 0.0, %v3153
    %v3155 = vpop.f32.mrb[0].mxu0
    %v3156 = vadd.f32 0.0, %v3155
    %v3157 = vpop.f32.mrb[0].mxu0
    %v3158 = vadd.f32 0.0, %v3157
    %v3159 = vpop.f32.mrb[0].mxu0
    %v3160 = vadd.f32 0.0, %v3159
    %3161 = vmatprep.mubr.bf16.mxu0 %v2946
    %3162 = vmatmul.mubr.bf16.gmra.mrb[0].mxu0 %v2945
    %v3163 = vpop.f32.mrb[0].mxu0
    %v3164 = vadd.f32 0.0, %v3163
    %v3165 = vpop.f32.mrb[0].mxu0
    %v3166 = vadd.f32 0.0, %v3165
    %v3167 = vpop.f32.mrb[0].mxu0
    %v3168 = vadd.f32 0.0, %v3167
    %v3169 = vpop.f32.mrb[0].mxu0
    %v3170 = vadd.f32 0.0, %v3169
    %3171 = vmatprep.mubr.bf16.mxu0 %v2948
    %3172 = vmatmul.mubr.bf16.gmra.mrb[0].mxu0 %v2947
    %v3173 = vpop.f32.mrb[0].mxu0
    %v3174 = vadd.f32 0.0, %v3173
    %v3175 = vpop.f32.mrb[0].mxu0
    %v3176 = vadd.f32 0.0, %v3175
    %v3177 = vpop.f32.mrb[0].mxu0
    %v3178 = vadd.f32 0.0, %v3177
    %v3179 = vpop.f32.mrb[0].mxu0
    %v3180 = vadd.f32 0.0, %v3179
    %3181 = vmatprep.mubr.bf16.mxu0 %v2950
    %3182 = vmatmul.mubr.bf16.gmra.mrb[0].mxu0 %v2949
    %v3183 = vpop.f32.mrb[0].mxu0
    %v3184 = vadd.f32 0.0, %v3183
    %v3185 = vpop.f32.mrb[0].mxu0
    %v3186 = vadd.f32 0.0, %v3185
    %v3187 = vpop.f32.mrb[0].mxu0
    %v3188 = vadd.f32 0.0, %v3187
    %v3189 = vpop.f32.mrb[0].mxu0
    %v3190 = vadd.f32 0.0, %v3189
    %3191 = vdwg.mxu0
    %v3192 = vadd.f32 %v2843, %v3154
    %v3193 = vadd.f32 %v2844, %v3156
    %v3194 = vadd.f32 %v2845, %v3158
    %v3195 = vadd.f32 %v2846, %v3160
    %v3196 = vadd.f32 %v2847, %v3164
    %v3197 = vadd.f32 %v2848, %v3166
    %v3198 = vadd.f32 %v2849, %v3168
    %v3199 = vadd.f32 %v2850, %v3170
    %v3200 = vadd.f32 %v2851, %v3174
    %v3201 = vadd.f32 %v2852, %v3176
    %v3202 = vadd.f32 %v2853, %v3178
    %v3203 = vadd.f32 %v2854, %v3180
    %v3204 = vadd.f32 %v2855, %v3184
    %v3205 = vadd.f32 %v2856, %v3186
    %v3206 = vadd.f32 %v2857, %v3188
    %v3207 = vadd.f32 %v2858, %v3190
    %v3208 = vld [vmem:[%s4] sm:$0x3]
    %v3210 = vlaneseq
    %v3211 = vshrl.u32 %v3210, 7
    %v3212 = vsub.s32 0, %v3211
    %v3213 = vrot.slane %v3208, %v3212
    %v3214 = vlaneseq
    %v3215 = vshrl.u32 %v3214, 7
    %v3216 = vsub.s32 1, %v3215
    %v3217 = vrot.slane %v3208, %v3216
    %v3220 = vadd.f32 %v3192, %v3213
    %v3221 = vadd.f32 %v3193, %v3217
    %v3222 = vadd.f32 %v3194, %v3213
    %v3223 = vadd.f32 %v3195, %v3217
    %v3224 = vadd.f32 %v3196, %v3213
    %v3225 = vadd.f32 %v3197, %v3217
    %v3226 = vadd.f32 %v3198, %v3213
    %v3227 = vadd.f32 %v3199, %v3217
    %v3228 = vadd.f32 %v3200, %v3213
    %v3229 = vadd.f32 %v3201, %v3217
    %v3230 = vadd.f32 %v3202, %v3213
    %v3231 = vadd.f32 %v3203, %v3217
    %v3232 = vadd.f32 %v3204, %v3213
    %v3233 = vadd.f32 %v3205, %v3217
    %v3234 = vadd.f32 %v3206, %v3213
    %v3235 = vadd.f32 %v3207, %v3217
    %v3236 = vmax.f32 %v3220, 0.0
    %v3237 = vmax.f32 %v3221, 0.0
    %v3238 = vmax.f32 %v3222, 0.0
    %v3239 = vmax.f32 %v3223, 0.0
    %v3240 = vmax.f32 %v3224, 0.0
    %v3241 = vmax.f32 %v3225, 0.0
    %v3242 = vmax.f32 %v3226, 0.0
    %v3243 = vmax.f32 %v3227, 0.0
    %v3244 = vmax.f32 %v3228, 0.0
    %v3245 = vmax.f32 %v3229, 0.0
    %v3246 = vmax.f32 %v3230, 0.0
    %v3247 = vmax.f32 %v3231, 0.0
    %v3248 = vmax.f32 %v3232, 0.0
    %v3249 = vmax.f32 %v3233, 0.0
    %v3250 = vmax.f32 %v3234, 0.0
    %v3251 = vmax.f32 %v3235, 0.0
    %3268 = vrot.lane.b32.xlu0 %v3236, 96
    %v3269 = vpop.permute.xlu0 %3268
    %3270 = vrot.lane.b32.xlu0 %v3237, 96
    %v3271 = vpop.permute.xlu0 %3270
    %3272 = vrot.lane.b32.xlu0 %v3238, 96
    %v3273 = vpop.permute.xlu0 %3272
    %3274 = vrot.lane.b32.xlu0 %v3239, 96
    %v3275 = vpop.permute.xlu0 %3274
    %3276 = vrot.lane.b32.xlu0 %v3240, 96
    %v3277 = vpop.permute.xlu0 %3276
    %3278 = vrot.lane.b32.xlu0 %v3241, 96
    %v3279 = vpop.permute.xlu0 %3278
    %3280 = vrot.lane.b32.xlu0 %v3242, 96
    %v3281 = vpop.permute.xlu0 %3280
    %3282 = vrot.lane.b32.xlu0 %v3243, 96
    %v3283 = vpop.permute.xlu0 %3282
    %3284 = vrot.lane.b32.xlu0 %v3244, 96
    %v3285 = vpop.permute.xlu0 %3284
    %3286 = vrot.lane.b32.xlu0 %v3245, 96
    %v3287 = vpop.permute.xlu0 %3286
    %3288 = vrot.lane.b32.xlu0 %v3246, 96
    %v3289 = vpop.permute.xlu0 %3288
    %3290 = vrot.lane.b32.xlu0 %v3247, 96
    %v3291 = vpop.permute.xlu0 %3290
    %3292 = vrot.lane.b32.xlu0 %v3248, 96
    %v3293 = vpop.permute.xlu0 %3292
    %3294 = vrot.lane.b32.xlu0 %v3249, 96
    %v3295 = vpop.permute.xlu0 %3294
    %3296 = vrot.lane.b32.xlu0 %v3250, 96
    %v3297 = vpop.permute.xlu0 %3296
    %3298 = vrot.lane.b32.xlu0 %v3251, 96
    %v3299 = vpop.permute.xlu0 %3298
    %vm3300 = vcmask 785408
    %v3301 = vsel %vm3300, %v3269, %v3271
    %v3302 = vsel %vm3300, %v3273, %v3275
    %v3303 = vsel %vm3300, %v3277, %v3279
    %v3304 = vsel %vm3300, %v3281, %v3283
    %v3305 = vsel %vm3300, %v3285, %v3287
    %v3306 = vsel %vm3300, %v3289, %v3291
    %v3307 = vsel %vm3300, %v3293, %v3295
    %v3308 = vsel %vm3300, %v3297, %v3299
    %v3333 = vsel %vm3300, %v3271, %v3269
    %v3334 = vsel %vm3300, %v3275, %v3273
    %v3335 = vsel %vm3300, %v3279, %v3277
    %v3336 = vsel %vm3300, %v3283, %v3281
    %v3337 = vsel %vm3300, %v3287, %v3285
    %v3338 = vsel %vm3300, %v3291, %v3289
    %v3339 = vsel %vm3300, %v3295, %v3293
    %v3340 = vsel %vm3300, %v3299, %v3297
    %v3341 = vmax.f32 %v3236, %v3301
    %v3342 = vmax.f32 %v3237, %v3333
    %v3343 = vmax.f32 %v3238, %v3302
    %v3344 = vmax.f32 %v3239, %v3334
    %v3345 = vmax.f32 %v3240, %v3303
    %v3346 = vmax.f32 %v3241, %v3335
    %v3347 = vmax.f32 %v3242, %v3304
    %v3348 = vmax.f32 %v3243, %v3336
    %v3349 = vmax.f32 %v3244, %v3305
    %v3350 = vmax.f32 %v3245, %v3337
    %v3351 = vmax.f32 %v3246, %v3306
    %v3352 = vmax.f32 %v3247, %v3338
    %v3353 = vmax.f32 %v3248, %v3307
    %v3354 = vmax.f32 %v3249, %v3339
    %v3355 = vmax.f32 %v3250, %v3308
    %v3356 = vmax.f32 %v3251, %v3340
    %v3373 = vcombine.low %v3341, %v3342
    %v3374 = vcombine.high %v3341, %v3342
    %v3375 = vcombine.low %v3343, %v3344
    %v3376 = vcombine.high %v3343, %v3344
    %v3377 = vcombine.low %v3345, %v3346
    %v3378 = vcombine.high %v3345, %v3346
    %v3379 = vcombine.low %v3347, %v3348
    %v3380 = vcombine.high %v3347, %v3348
    %v3381 = vcombine.low %v3349, %v3350
    %v3382 = vcombine.high %v3349, %v3350
    %v3383 = vcombine.low %v3351, %v3352
    %v3384 = vcombine.high %v3351, %v3352
    %v3385 = vcombine.low %v3353, %v3354
    %v3386 = vcombine.high %v3353, %v3354
    %v3387 = vcombine.low %v3355, %v3356
    %v3388 = vcombine.high %v3355, %v3356
    %v3406 = vunpack.c.l.s4 1966171168
    %v3407 = vunpack.c.0.s8 %v3406
    %v3408 = vlaneseq
    %v3409 = vshrl.u32 %v3408, 7
    %v3410 = vsub.s32 %v3407, %v3409
    %v3411 = vrot.slane %v3373, %v3410
    %v3413 = vunpack.c.l.s4 1966171168
    %v3414 = vunpack.c.0.s8 %v3413
    %v3415 = vlaneseq
    %v3416 = vshrl.u32 %v3415, 7
    %v3417 = vsub.s32 %v3414, %v3416
    %v3418 = vrot.slane %v3374, %v3417
    %v3420 = vunpack.c.l.s4 1966171168
    %v3421 = vunpack.c.0.s8 %v3420
    %v3422 = vlaneseq
    %v3423 = vshrl.u32 %v3422, 7
    %v3424 = vsub.s32 %v3421, %v3423
    %v3425 = vrot.slane %v3375, %v3424
    %v3427 = vunpack.c.l.s4 1966171168
    %v3428 = vunpack.c.0.s8 %v3427
    %v3429 = vlaneseq
    %v3430 = vshrl.u32 %v3429, 7
    %v3431 = vsub.s32 %v3428, %v3430
    %v3432 = vrot.slane %v3376, %v3431
    %v3434 = vunpack.c.l.s4 1966171168
    %v3435 = vunpack.c.0.s8 %v3434
    %v3436 = vlaneseq
    %v3437 = vshrl.u32 %v3436, 7
    %v3438 = vsub.s32 %v3435, %v3437
    %v3439 = vrot.slane %v3377, %v3438
    %v3441 = vunpack.c.l.s4 1966171168
    %v3442 = vunpack.c.0.s8 %v3441
    %v3443 = vlaneseq
    %v3444 = vshrl.u32 %v3443, 7
    %v3445 = vsub.s32 %v3442, %v3444
    %v3446 = vrot.slane %v3378, %v3445
    %v3448 = vunpack.c.l.s4 1966171168
    %v3449 = vunpack.c.0.s8 %v3448
    %v3450 = vlaneseq
    %v3451 = vshrl.u32 %v3450, 7
    %v3452 = vsub.s32 %v3449, %v3451
    %v3453 = vrot.slane %v3379, %v3452
    %v3455 = vunpack.c.l.s4 1966171168
    %v3456 = vunpack.c.0.s8 %v3455
    %v3457 = vlaneseq
    %v3458 = vshrl.u32 %v3457, 7
    %v3459 = vsub.s32 %v3456, %v3458
    %v3460 = vrot.slane %v3380, %v3459
    %v3462 = vunpack.c.l.s4 1966171168
    %v3463 = vunpack.c.0.s8 %v3462
    %v3464 = vlaneseq
    %v3465 = vshrl.u32 %v3464, 7
    %v3466 = vsub.s32 %v3463, %v3465
    %v3467 = vrot.slane %v3381, %v3466
    %v3469 = vunpack.c.l.s4 1966171168
    %v3470 = vunpack.c.0.s8 %v3469
    %v3471 = vlaneseq
    %v3472 = vshrl.u32 %v3471, 7
    %v3473 = vsub.s32 %v3470, %v3472
    %v3474 = vrot.slane %v3382, %v3473
    %v3476 = vunpack.c.l.s4 1966171168
    %v3477 = vunpack.c.0.s8 %v3476
    %v3478 = vlaneseq
    %v3479 = vshrl.u32 %v3478, 7
    %v3480 = vsub.s32 %v3477, %v3479
    %v3481 = vrot.slane %v3383, %v3480
    %v3483 = vunpack.c.l.s4 1966171168
    %v3484 = vunpack.c.0.s8 %v3483
    %v3485 = vlaneseq
    %v3486 = vshrl.u32 %v3485, 7
    %v3487 = vsub.s32 %v3484, %v3486
    %v3488 = vrot.slane %v3384, %v3487
    %v3490 = vunpack.c.l.s4 1966171168
    %v3491 = vunpack.c.0.s8 %v3490
    %v3492 = vlaneseq
    %v3493 = vshrl.u32 %v3492, 7
    %v3494 = vsub.s32 %v3491, %v3493
    %v3495 = vrot.slane %v3385, %v3494
    %v3497 = vunpack.c.l.s4 1966171168
    %v3498 = vunpack.c.0.s8 %v3497
    %v3499 = vlaneseq
    %v3500 = vshrl.u32 %v3499, 7
    %v3501 = vsub.s32 %v3498, %v3500
    %v3502 = vrot.slane %v3386, %v3501
    %v3504 = vunpack.c.l.s4 1966171168
    %v3505 = vunpack.c.0.s8 %v3504
    %v3506 = vlaneseq
    %v3507 = vshrl.u32 %v3506, 7
    %v3508 = vsub.s32 %v3505, %v3507
    %v3509 = vrot.slane %v3387, %v3508
    %v3511 = vunpack.c.l.s4 1966171168
    %v3512 = vunpack.c.0.s8 %v3511
    %v3513 = vlaneseq
    %v3514 = vshrl.u32 %v3513, 7
    %v3515 = vsub.s32 %v3512, %v3514
    %v3516 = vrot.slane %v3388, %v3515
    %v3533 = vrot.slane %v3411, 4
    %v3534 = vrot.slane %v3418, 4
    %v3535 = vrot.slane %v3425, 4
    %v3536 = vrot.slane %v3432, 4
    %v3537 = vrot.slane %v3439, 4
    %v3538 = vrot.slane %v3446, 4
    %v3539 = vrot.slane %v3453, 4
    %v3540 = vrot.slane %v3460, 4
    %v3541 = vrot.slane %v3467, 4
    %v3542 = vrot.slane %v3474, 4
    %v3543 = vrot.slane %v3481, 4
    %v3544 = vrot.slane %v3488, 4
    %v3545 = vrot.slane %v3495, 4
    %v3546 = vrot.slane %v3502, 4
    %v3547 = vrot.slane %v3509, 4
    %v3548 = vrot.slane %v3516, 4
    %v3565 = vmax.f32 %v3411, %v3533
    %v3566 = vmax.f32 %v3418, %v3534
    %v3567 = vmax.f32 %v3425, %v3535
    %v3568 = vmax.f32 %v3432, %v3536
    %v3569 = vmax.f32 %v3439, %v3537
    %v3570 = vmax.f32 %v3446, %v3538
    %v3571 = vmax.f32 %v3453, %v3539
    %v3572 = vmax.f32 %v3460, %v3540
    %v3573 = vmax.f32 %v3467, %v3541
    %v3574 = vmax.f32 %v3474, %v3542
    %v3575 = vmax.f32 %v3481, %v3543
    %v3576 = vmax.f32 %v3488, %v3544
    %v3577 = vmax.f32 %v3495, %v3545
    %v3578 = vmax.f32 %v3502, %v3546
    %v3579 = vmax.f32 %v3509, %v3547
    %v3580 = vmax.f32 %v3516, %v3548
    %v3597 = vcombine.low %v3565, %v3566
    %v3599 = vunpack.c.l.s4 1983009808
    %v3600 = vunpack.c.0.s8 %v3599
    %v3601 = vlaneseq
    %v3602 = vshrl.u32 %v3601, 7
    %v3603 = vsub.s32 %v3600, %v3602
    %v3604 = vrot.slane %v3597, %v3603
    %v3605 = vcombine.low %v3567, %v3568
    %v3607 = vunpack.c.l.s4 1983009808
    %v3608 = vunpack.c.0.s8 %v3607
    %v3609 = vlaneseq
    %v3610 = vshrl.u32 %v3609, 7
    %v3611 = vsub.s32 %v3608, %v3610
    %v3612 = vrot.slane %v3605, %v3611
    %v3613 = vcombine.low %v3569, %v3570
    %v3615 = vunpack.c.l.s4 1983009808
    %v3616 = vunpack.c.0.s8 %v3615
    %v3617 = vlaneseq
    %v3618 = vshrl.u32 %v3617, 7
    %v3619 = vsub.s32 %v3616, %v3618
    %v3620 = vrot.slane %v3613, %v3619
    %v3621 = vcombine.low %v3571, %v3572
    %v3623 = vunpack.c.l.s4 1983009808
    %v3624 = vunpack.c.0.s8 %v3623
    %v3625 = vlaneseq
    %v3626 = vshrl.u32 %v3625, 7
    %v3627 = vsub.s32 %v3624, %v3626
    %v3628 = vrot.slane %v3621, %v3627
    %v3629 = vcombine.low %v3573, %v3574
    %v3631 = vunpack.c.l.s4 1983009808
    %v3632 = vunpack.c.0.s8 %v3631
    %v3633 = vlaneseq
    %v3634 = vshrl.u32 %v3633, 7
    %v3635 = vsub.s32 %v3632, %v3634
    %v3636 = vrot.slane %v3629, %v3635
    %v3637 = vcombine.low %v3575, %v3576
    %v3639 = vunpack.c.l.s4 1983009808
    %v3640 = vunpack.c.0.s8 %v3639
    %v3641 = vlaneseq
    %v3642 = vshrl.u32 %v3641, 7
    %v3643 = vsub.s32 %v3640, %v3642
    %v3644 = vrot.slane %v3637, %v3643
    %v3645 = vcombine.low %v3577, %v3578
    %v3647 = vunpack.c.l.s4 1983009808
    %v3648 = vunpack.c.0.s8 %v3647
    %v3649 = vlaneseq
    %v3650 = vshrl.u32 %v3649, 7
    %v3651 = vsub.s32 %v3648, %v3650
    %v3652 = vrot.slane %v3645, %v3651
    %v3653 = vcombine.low %v3579, %v3580
    %v3655 = vunpack.c.l.s4 1983009808
    %v3656 = vunpack.c.0.s8 %v3655
    %v3657 = vlaneseq
    %v3658 = vshrl.u32 %v3657, 7
    %v3659 = vsub.s32 %v3656, %v3658
    %v3660 = vrot.slane %v3653, %v3659
    %v3670 = vunpack.c.l.s4 1935823168
    %v3671 = vunpack.c.0.s8 %v3670
    %v3672 = vlaneseq
    %v3673 = vshrl.u32 %v3672, 7
    %v3674 = vsub.s32 %v3671, %v3673
    %v3675 = vrot.slane %v3604, %v3674
    %v3677 = vunpack.c.l.s4 1935823168
    %v3678 = vunpack.c.0.s8 %v3677
    %v3679 = vlaneseq
    %v3680 = vshrl.u32 %v3679, 7
    %v3681 = vsub.s32 %v3678, %v3680
    %v3682 = vrot.slane %v3612, %v3681
    %v3684 = vunpack.c.l.s4 1935823168
    %v3685 = vunpack.c.0.s8 %v3684
    %v3686 = vlaneseq
    %v3687 = vshrl.u32 %v3686, 7
    %v3688 = vsub.s32 %v3685, %v3687
    %v3689 = vrot.slane %v3620, %v3688
    %v3691 = vunpack.c.l.s4 1935823168
    %v3692 = vunpack.c.0.s8 %v3691
    %v3693 = vlaneseq
    %v3694 = vshrl.u32 %v3693, 7
    %v3695 = vsub.s32 %v3692, %v3694
    %v3696 = vrot.slane %v3628, %v3695
    %v3698 = vunpack.c.l.s4 1935823168
    %v3699 = vunpack.c.0.s8 %v3698
    %v3700 = vlaneseq
    %v3701 = vshrl.u32 %v3700, 7
    %v3702 = vsub.s32 %v3699, %v3701
    %v3703 = vrot.slane %v3636, %v3702
    %v3705 = vunpack.c.l.s4 1935823168
    %v3706 = vunpack.c.0.s8 %v3705
    %v3707 = vlaneseq
    %v3708 = vshrl.u32 %v3707, 7
    %v3709 = vsub.s32 %v3706, %v3708
    %v3710 = vrot.slane %v3644, %v3709
    %v3712 = vunpack.c.l.s4 1935823168
    %v3713 = vunpack.c.0.s8 %v3712
    %v3714 = vlaneseq
    %v3715 = vshrl.u32 %v3714, 7
    %v3716 = vsub.s32 %v3713, %v3715
    %v3717 = vrot.slane %v3652, %v3716
    %v3719 = vunpack.c.l.s4 1935823168
    %v3720 = vunpack.c.0.s8 %v3719
    %v3721 = vlaneseq
    %v3722 = vshrl.u32 %v3721, 7
    %v3723 = vsub.s32 %v3720, %v3722
    %v3724 = vrot.slane %v3660, %v3723
    %v3733 = vcombine.low %v3675, %v3682
    %v3734 = vcombine.high %v3675, %v3682
    %v3735 = vcombine.low %v3689, %v3696
    %v3736 = vcombine.high %v3689, %v3696
    %v3737 = vcombine.low %v3703, %v3710
    %v3738 = vcombine.high %v3703, %v3710
    %v3739 = vcombine.low %v3717, %v3724
    %v3740 = vcombine.high %v3717, %v3724
    %v3742 = vunpack.c.l.s4 1966171168
    %v3743 = vunpack.c.0.s8 %v3742
    %v3744 = vlaneseq
    %v3745 = vshrl.u32 %v3744, 7
    %v3746 = vsub.s32 %v3743, %v3745
    %v3747 = vrot.slane %v3733, %v3746
    %v3749 = vunpack.c.l.s4 1966171168
    %v3750 = vunpack.c.0.s8 %v3749
    %v3751 = vlaneseq
    %v3752 = vshrl.u32 %v3751, 7
    %v3753 = vsub.s32 %v3750, %v3752
    %v3754 = vrot.slane %v3734, %v3753
    %v3756 = vunpack.c.l.s4 1966171168
    %v3757 = vunpack.c.0.s8 %v3756
    %v3758 = vlaneseq
    %v3759 = vshrl.u32 %v3758, 7
    %v3760 = vsub.s32 %v3757, %v3759
    %v3761 = vrot.slane %v3735, %v3760
    %v3763 = vunpack.c.l.s4 1966171168
    %v3764 = vunpack.c.0.s8 %v3763
    %v3765 = vlaneseq
    %v3766 = vshrl.u32 %v3765, 7
    %v3767 = vsub.s32 %v3764, %v3766
    %v3768 = vrot.slane %v3736, %v3767
    %v3770 = vunpack.c.l.s4 1966171168
    %v3771 = vunpack.c.0.s8 %v3770
    %v3772 = vlaneseq
    %v3773 = vshrl.u32 %v3772, 7
    %v3774 = vsub.s32 %v3771, %v3773
    %v3775 = vrot.slane %v3737, %v3774
    %v3777 = vunpack.c.l.s4 1966171168
    %v3778 = vunpack.c.0.s8 %v3777
    %v3779 = vlaneseq
    %v3780 = vshrl.u32 %v3779, 7
    %v3781 = vsub.s32 %v3778, %v3780
    %v3782 = vrot.slane %v3738, %v3781
    %v3784 = vunpack.c.l.s4 1966171168
    %v3785 = vunpack.c.0.s8 %v3784
    %v3786 = vlaneseq
    %v3787 = vshrl.u32 %v3786, 7
    %v3788 = vsub.s32 %v3785, %v3787
    %v3789 = vrot.slane %v3739, %v3788
    %v3791 = vunpack.c.l.s4 1966171168
    %v3792 = vunpack.c.0.s8 %v3791
    %v3793 = vlaneseq
    %v3794 = vshrl.u32 %v3793, 7
    %v3795 = vsub.s32 %v3792, %v3794
    %v3796 = vrot.slane %v3740, %v3795
    %v3797 = vcombine.low %v3747, %v3761
    %v3798 = vcombine.high %v3747, %v3761
    %v3799 = vcombine.low %v3754, %v3768
    %v3800 = vcombine.high %v3754, %v3768
    %v3801 = vcombine.low %v3775, %v3789
    %v3802 = vcombine.high %v3775, %v3789
    %v3803 = vcombine.low %v3782, %v3796
    %v3804 = vcombine.high %v3782, %v3796
    %v3806 = vunpack.c.l.s4 1966171168
    %v3807 = vunpack.c.0.s8 %v3806
    %v3808 = vlaneseq
    %v3809 = vshrl.u32 %v3808, 7
    %v3810 = vsub.s32 %v3807, %v3809
    %v3811 = vrot.slane %v3797, %v3810
    %v3813 = vunpack.c.l.s4 1966171168
    %v3814 = vunpack.c.0.s8 %v3813
    %v3815 = vlaneseq
    %v3816 = vshrl.u32 %v3815, 7
    %v3817 = vsub.s32 %v3814, %v3816
    %v3818 = vrot.slane %v3799, %v3817
    %v3820 = vunpack.c.l.s4 1966171168
    %v3821 = vunpack.c.0.s8 %v3820
    %v3822 = vlaneseq
    %v3823 = vshrl.u32 %v3822, 7
    %v3824 = vsub.s32 %v3821, %v3823
    %v3825 = vrot.slane %v3798, %v3824
    %v3827 = vunpack.c.l.s4 1966171168
    %v3828 = vunpack.c.0.s8 %v3827
    %v3829 = vlaneseq
    %v3830 = vshrl.u32 %v3829, 7
    %v3831 = vsub.s32 %v3828, %v3830
    %v3832 = vrot.slane %v3800, %v3831
    %v3834 = vunpack.c.l.s4 1966171168
    %v3835 = vunpack.c.0.s8 %v3834
    %v3836 = vlaneseq
    %v3837 = vshrl.u32 %v3836, 7
    %v3838 = vsub.s32 %v3835, %v3837
    %v3839 = vrot.slane %v3801, %v3838
    %v3841 = vunpack.c.l.s4 1966171168
    %v3842 = vunpack.c.0.s8 %v3841
    %v3843 = vlaneseq
    %v3844 = vshrl.u32 %v3843, 7
    %v3845 = vsub.s32 %v3842, %v3844
    %v3846 = vrot.slane %v3803, %v3845
    %v3848 = vunpack.c.l.s4 1966171168
    %v3849 = vunpack.c.0.s8 %v3848
    %v3850 = vlaneseq
    %v3851 = vshrl.u32 %v3850, 7
    %v3852 = vsub.s32 %v3849, %v3851
    %v3853 = vrot.slane %v3802, %v3852
    %v3855 = vunpack.c.l.s4 1966171168
    %v3856 = vunpack.c.0.s8 %v3855
    %v3857 = vlaneseq
    %v3858 = vshrl.u32 %v3857, 7
    %v3859 = vsub.s32 %v3856, %v3858
    %v3860 = vrot.slane %v3804, %v3859
    %v3861 = vcombine.low %v3811, %v3839
    %v3862 = vcombine.high %v3811, %v3839
    %v3863 = vcombine.low %v3818, %v3846
    %v3864 = vcombine.high %v3818, %v3846
    %v3865 = vcombine.low %v3825, %v3853
    %v3866 = vcombine.high %v3825, %v3853
    %v3867 = vcombine.low %v3832, %v3860
    %v3868 = vcombine.high %v3832, %v3860
    %v3877 = vpack.c.bf16 %v3861, %v3861
    %v3878 = vpack.c.bf16 %v3865, %v3865
    %v3879 = vpack.c.bf16 %v3862, %v3862
    %v3880 = vpack.c.bf16 %v3866, %v3866
    %v3881 = vpack.c.bf16 %v3863, %v3863
    %v3882 = vpack.c.bf16 %v3867, %v3867
    %v3883 = vpack.c.bf16 %v3864, %v3864
    %v3884 = vpack.c.bf16 %v3868, %v3868
    %v3885 = vld [vmem:[#allocation4] sm:$0xf]
    %v3886 = vld [vmem:[#allocation4 + $0x4] sm:$0xf]
    %v3887 = vld [vmem:[#allocation4 + $0x8] sm:$0xf]
    %v3888 = vld [vmem:[#allocation4 + $0xc] sm:$0xf]
    %v3889 = vld [vmem:[#allocation4 + $0x10] sm:$0xf]
    %v3890 = vld [vmem:[#allocation4 + $0x14] sm:$0xf]
    %v3891 = vld [vmem:[#allocation4 + $0x18] sm:$0xf]
    %v3892 = vld [vmem:[#allocation4 + $0x1c] sm:$0xf]
    %v3893 = vld [vmem:[#allocation4 + $0x20] sm:$0xf]
    %v3894 = vld [vmem:[#allocation4 + $0x24] sm:$0xf]
    %v3895 = vld [vmem:[#allocation4 + $0x28] sm:$0xf]
    %v3896 = vld [vmem:[#allocation4 + $0x2c] sm:$0xf]
    %v3897 = vld [vmem:[#allocation4 + $0x30] sm:$0xf]
    %v3898 = vld [vmem:[#allocation4 + $0x34] sm:$0xf]
    %v3899 = vld [vmem:[#allocation4 + $0x38] sm:$0xf]
    %v3900 = vld [vmem:[#allocation4 + $0x3c] sm:$0xf]
    %v3901 = vld [vmem:[#allocation4 + $0x40] sm:$0xf]
    %v3902 = vld [vmem:[#allocation4 + $0x44] sm:$0xf]
    %v3903 = vld [vmem:[#allocation4 + $0x48] sm:$0xf]
    %v3904 = vld [vmem:[#allocation4 + $0x4c] sm:$0xf]
    %v3905 = vld [vmem:[#allocation4 + $0x50] sm:$0xf]
    %v3906 = vld [vmem:[#allocation4 + $0x54] sm:$0xf]
    %v3907 = vld [vmem:[#allocation4 + $0x58] sm:$0xf]
    %v3908 = vld [vmem:[#allocation4 + $0x5c] sm:$0xf]
    %v3909 = vld [vmem:[#allocation4 + $0x60] sm:$0xf]
    %v3910 = vld [vmem:[#allocation4 + $0x64] sm:$0xf]
    %v3911 = vld [vmem:[#allocation4 + $0x68] sm:$0xf]
    %v3912 = vld [vmem:[#allocation4 + $0x6c] sm:$0xf]
    %v3913 = vld [vmem:[#allocation4 + $0x70] sm:$0xf]
    %v3914 = vld [vmem:[#allocation4 + $0x74] sm:$0xf]
    %v3915 = vld [vmem:[#allocation4 + $0x78] sm:$0xf]
    %v3916 = vld [vmem:[#allocation4 + $0x7c] sm:$0xf]
    %v3917 = vld [vmem:[#allocation4 + $0x80] sm:$0xf]
    %v3918 = vld [vmem:[#allocation4 + $0x84] sm:$0xf]
    %v3919 = vld [vmem:[#allocation4 + $0x88] sm:$0xf]
    %v3920 = vld [vmem:[#allocation4 + $0x8c] sm:$0xf]
    %v3921 = vld [vmem:[#allocation4 + $0x90] sm:$0xf]
    %v3922 = vld [vmem:[#allocation4 + $0x94] sm:$0xf]
    %v3923 = vld [vmem:[#allocation4 + $0x98] sm:$0xf]
    %v3924 = vld [vmem:[#allocation4 + $0x9c] sm:$0xf]
    %v3925 = vld [vmem:[#allocation4 + $0xa0] sm:$0xf]
    %v3926 = vld [vmem:[#allocation4 + $0xa4] sm:$0xf]
    %v3927 = vld [vmem:[#allocation4 + $0xa8] sm:$0xf]
    %v3928 = vld [vmem:[#allocation4 + $0xac] sm:$0xf]
    %v3929 = vld [vmem:[#allocation4 + $0xb0] sm:$0xf]
    %v3930 = vld [vmem:[#allocation4 + $0xb4] sm:$0xf]
    %v3931 = vld [vmem:[#allocation4 + $0xb8] sm:$0xf]
    %v3932 = vld [vmem:[#allocation4 + $0xbc] sm:$0xf]
    %v3933 = vld [vmem:[#allocation4 + $0xc0] sm:$0xf]
    %v3934 = vld [vmem:[#allocation4 + $0xc4] sm:$0xf]
    %v3935 = vld [vmem:[#allocation4 + $0xc8] sm:$0xf]
    %v3936 = vld [vmem:[#allocation4 + $0xcc] sm:$0xf]
    %v3937 = vld [vmem:[#allocation4 + $0xd0] sm:$0xf]
    %v3938 = vld [vmem:[#allocation4 + $0xd4] sm:$0xf]
    %v3939 = vld [vmem:[#allocation4 + $0xd8] sm:$0xf]
    %v3940 = vld [vmem:[#allocation4 + $0xdc] sm:$0xf]
    %v3941 = vld [vmem:[#allocation4 + $0xe0] sm:$0xf]
    %v3942 = vld [vmem:[#allocation4 + $0xe4] sm:$0xf]
    %v3943 = vld [vmem:[#allocation4 + $0xe8] sm:$0xf]
    %v3944 = vld [vmem:[#allocation4 + $0xec] sm:$0xf]
    %v3945 = vld [vmem:[#allocation4 + $0xf0] sm:$0xf]
    %v3946 = vld [vmem:[#allocation4 + $0xf4] sm:$0xf]
    %v3947 = vld [vmem:[#allocation4 + $0xf8] sm:$0xf]
    %v3948 = vld [vmem:[#allocation4 + $0xfc] sm:$0xf]
    %v3949 = vld [vmem:[#allocation4 + $0x100] sm:$0xf]
    %v3950 = vld [vmem:[#allocation4 + $0x104] sm:$0xf]
    %v3951 = vld [vmem:[#allocation4 + $0x108] sm:$0xf]
    %v3952 = vld [vmem:[#allocation4 + $0x10c] sm:$0xf]
    %v3953 = vld [vmem:[#allocation4 + $0x110] sm:$0xf]
    %v3954 = vld [vmem:[#allocation4 + $0x114] sm:$0xf]
    %v3955 = vld [vmem:[#allocation4 + $0x118] sm:$0xf]
    %v3956 = vld [vmem:[#allocation4 + $0x11c] sm:$0xf]
    %v3957 = vld [vmem:[#allocation4 + $0x120] sm:$0xf]
    %v3958 = vld [vmem:[#allocation4 + $0x124] sm:$0xf]
    %v3959 = vld [vmem:[#allocation4 + $0x128] sm:$0xf]
    %v3960 = vld [vmem:[#allocation4 + $0x12c] sm:$0xf]
    %v3961 = vld [vmem:[#allocation4 + $0x130] sm:$0xf]
    %v3962 = vld [vmem:[#allocation4 + $0x134] sm:$0xf]
    %v3963 = vld [vmem:[#allocation4 + $0x138] sm:$0xf]
    %v3964 = vld [vmem:[#allocation4 + $0x13c] sm:$0xf]
    %v3965 = vld [vmem:[#allocation4 + $0x140] sm:$0xf]
    %v3966 = vld [vmem:[#allocation4 + $0x144] sm:$0xf]
    %v3967 = vld [vmem:[#allocation4 + $0x148] sm:$0xf]
    %v3968 = vld [vmem:[#allocation4 + $0x14c] sm:$0xf]
    %v3969 = vld [vmem:[#allocation4 + $0x150] sm:$0xf]
    %v3970 = vld [vmem:[#allocation4 + $0x154] sm:$0xf]
    %v3971 = vld [vmem:[#allocation4 + $0x158] sm:$0xf]
    %v3972 = vld [vmem:[#allocation4 + $0x15c] sm:$0xf]
    %v3973 = vld [vmem:[#allocation4 + $0x160] sm:$0xf]
    %v3974 = vld [vmem:[#allocation4 + $0x164] sm:$0xf]
    %v3975 = vld [vmem:[#allocation4 + $0x168] sm:$0xf]
    %v3976 = vld [vmem:[#allocation4 + $0x16c] sm:$0xf]
    %v3977 = vld [vmem:[#allocation4 + $0x170] sm:$0xf]
    %v3978 = vld [vmem:[#allocation4 + $0x174] sm:$0xf]
    %v3979 = vld [vmem:[#allocation4 + $0x178] sm:$0xf]
    %v3980 = vld [vmem:[#allocation4 + $0x17c] sm:$0xf]
    %v3981 = vld [vmem:[#allocation4 + $0x180] sm:$0xf]
    %v3982 = vld [vmem:[#allocation4 + $0x184] sm:$0xf]
    %v3983 = vld [vmem:[#allocation4 + $0x188] sm:$0xf]
    %v3984 = vld [vmem:[#allocation4 + $0x18c] sm:$0xf]
    %v3985 = vld [vmem:[#allocation4 + $0x190] sm:$0xf]
    %v3986 = vld [vmem:[#allocation4 + $0x194] sm:$0xf]
    %v3987 = vld [vmem:[#allocation4 + $0x198] sm:$0xf]
    %v3988 = vld [vmem:[#allocation4 + $0x19c] sm:$0xf]
    %v3989 = vld [vmem:[#allocation4 + $0x1a0] sm:$0xf]
    %v3990 = vld [vmem:[#allocation4 + $0x1a4] sm:$0xf]
    %v3991 = vld [vmem:[#allocation4 + $0x1a8] sm:$0xf]
    %v3992 = vld [vmem:[#allocation4 + $0x1ac] sm:$0xf]
    %v3993 = vld [vmem:[#allocation4 + $0x1b0] sm:$0xf]
    %v3994 = vld [vmem:[#allocation4 + $0x1b4] sm:$0xf]
    %v3995 = vld [vmem:[#allocation4 + $0x1b8] sm:$0xf]
    %v3996 = vld [vmem:[#allocation4 + $0x1bc] sm:$0xf]
    %v3997 = vld [vmem:[#allocation4 + $0x1c0] sm:$0xf]
    %v3998 = vld [vmem:[#allocation4 + $0x1c4] sm:$0xf]
    %v3999 = vld [vmem:[#allocation4 + $0x1c8] sm:$0xf]
    %v4000 = vld [vmem:[#allocation4 + $0x1cc] sm:$0xf]
    %v4001 = vld [vmem:[#allocation4 + $0x1d0] sm:$0xf]
    %v4002 = vld [vmem:[#allocation4 + $0x1d4] sm:$0xf]
    %v4003 = vld [vmem:[#allocation4 + $0x1d8] sm:$0xf]
    %v4004 = vld [vmem:[#allocation4 + $0x1dc] sm:$0xf]
    %v4005 = vld [vmem:[#allocation4 + $0x1e0] sm:$0xf]
    %v4006 = vld [vmem:[#allocation4 + $0x1e4] sm:$0xf]
    %v4007 = vld [vmem:[#allocation4 + $0x1e8] sm:$0xf]
    %v4008 = vld [vmem:[#allocation4 + $0x1ec] sm:$0xf]
    %v4009 = vld [vmem:[#allocation4 + $0x1f0] sm:$0xf]
    %v4010 = vld [vmem:[#allocation4 + $0x1f4] sm:$0xf]
    %v4011 = vld [vmem:[#allocation4 + $0x1f8] sm:$0xf]
    %v4012 = vld [vmem:[#allocation4 + $0x1fc] sm:$0xf]
    %v4013 = vld [vmem:[%s6] sm:$0x1]
    %v4015 = vlaneseq
    %v4016 = vshrl.u32 %v4015, 7
    %v4017 = vsub.s32 0, %v4016
    %v4018 = vrot.slane %v4013, %v4017
    %v4148 = vunpack.c.l.b16 %v3885
    %v4149 = vunpack.c.l.b16 %v3886
    %v4150 = vunpack.c.l.b16 %v3887
    %v4151 = vunpack.c.l.b16 %v3888
    %v4152 = vunpack.c.l.b16 %v3889
    %v4153 = vunpack.c.l.b16 %v3890
    %v4154 = vunpack.c.l.b16 %v3891
    %v4155 = vunpack.c.l.b16 %v3892
    %v4156 = vunpack.c.l.b16 %v3893
    %v4157 = vunpack.c.l.b16 %v3894
    %v4158 = vunpack.c.l.b16 %v3895
    %v4159 = vunpack.c.l.b16 %v3896
    %v4160 = vunpack.c.l.b16 %v3897
    %v4161 = vunpack.c.l.b16 %v3898
    %v4162 = vunpack.c.l.b16 %v3899
    %v4163 = vunpack.c.l.b16 %v3900
    %v4164 = vunpack.c.l.b16 %v3901
    %v4165 = vunpack.c.l.b16 %v3902
    %v4166 = vunpack.c.l.b16 %v3903
    %v4167 = vunpack.c.l.b16 %v3904
    %v4168 = vunpack.c.l.b16 %v3905
    %v4169 = vunpack.c.l.b16 %v3906
    %v4170 = vunpack.c.l.b16 %v3907
    %v4171 = vunpack.c.l.b16 %v3908
    %v4172 = vunpack.c.l.b16 %v3909
    %v4173 = vunpack.c.l.b16 %v3910
    %v4174 = vunpack.c.l.b16 %v3911
    %v4175 = vunpack.c.l.b16 %v3912
    %v4176 = vunpack.c.l.b16 %v3913
    %v4177 = vunpack.c.l.b16 %v3914
    %v4178 = vunpack.c.l.b16 %v3915
    %v4179 = vunpack.c.l.b16 %v3916
    %v4180 = vunpack.c.l.b16 %v3917
    %v4181 = vunpack.c.l.b16 %v3918
    %v4182 = vunpack.c.l.b16 %v3919
    %v4183 = vunpack.c.l.b16 %v3920
    %v4184 = vunpack.c.l.b16 %v3921
    %v4185 = vunpack.c.l.b16 %v3922
    %v4186 = vunpack.c.l.b16 %v3923
    %v4187 = vunpack.c.l.b16 %v3924
    %v4188 = vunpack.c.l.b16 %v3925
    %v4189 = vunpack.c.l.b16 %v3926
    %v4190 = vunpack.c.l.b16 %v3927
    %v4191 = vunpack.c.l.b16 %v3928
    %v4192 = vunpack.c.l.b16 %v3929
    %v4193 = vunpack.c.l.b16 %v3930
    %v4194 = vunpack.c.l.b16 %v3931
    %v4195 = vunpack.c.l.b16 %v3932
    %v4196 = vunpack.c.l.b16 %v3933
    %v4197 = vunpack.c.l.b16 %v3934
    %v4198 = vunpack.c.l.b16 %v3935
    %v4199 = vunpack.c.l.b16 %v3936
    %v4200 = vunpack.c.l.b16 %v3937
    %v4201 = vunpack.c.l.b16 %v3938
    %v4202 = vunpack.c.l.b16 %v3939
    %v4203 = vunpack.c.l.b16 %v3940
    %v4204 = vunpack.c.l.b16 %v3941
    %v4205 = vunpack.c.l.b16 %v3942
    %v4206 = vunpack.c.l.b16 %v3943
    %v4207 = vunpack.c.l.b16 %v3944
    %v4208 = vunpack.c.l.b16 %v3945
    %v4209 = vunpack.c.l.b16 %v3946
    %v4210 = vunpack.c.l.b16 %v3947
    %v4211 = vunpack.c.l.b16 %v3948
    %v4212 = vunpack.c.l.b16 %v3949
    %v4213 = vunpack.c.l.b16 %v3950
    %v4214 = vunpack.c.l.b16 %v3951
    %v4215 = vunpack.c.l.b16 %v3952
    %v4216 = vunpack.c.l.b16 %v3953
    %v4217 = vunpack.c.l.b16 %v3954
    %v4218 = vunpack.c.l.b16 %v3955
    %v4219 = vunpack.c.l.b16 %v3956
    %v4220 = vunpack.c.l.b16 %v3957
    %v4221 = vunpack.c.l.b16 %v3958
    %v4222 = vunpack.c.l.b16 %v3959
    %v4223 = vunpack.c.l.b16 %v3960
    %v4224 = vunpack.c.l.b16 %v3961
    %v4225 = vunpack.c.l.b16 %v3962
    %v4226 = vunpack.c.l.b16 %v3963
    %v4227 = vunpack.c.l.b16 %v3964
    %v4228 = vunpack.c.l.b16 %v3965
    %v4229 = vunpack.c.l.b16 %v3966
    %v4230 = vunpack.c.l.b16 %v3967
    %v4231 = vunpack.c.l.b16 %v3968
    %v4232 = vunpack.c.l.b16 %v3969
    %v4233 = vunpack.c.l.b16 %v3970
    %v4234 = vunpack.c.l.b16 %v3971
    %v4235 = vunpack.c.l.b16 %v3972
    %v4236 = vunpack.c.l.b16 %v3973
    %v4237 = vunpack.c.l.b16 %v3974
    %v4238 = vunpack.c.l.b16 %v3975
    %v4239 = vunpack.c.l.b16 %v3976
    %v4240 = vunpack.c.l.b16 %v3977
    %v4241 = vunpack.c.l.b16 %v3978
    %v4242 = vunpack.c.l.b16 %v3979
    %v4243 = vunpack.c.l.b16 %v3980
    %v4244 = vunpack.c.l.b16 %v3981
    %v4245 = vunpack.c.l.b16 %v3982
    %v4246 = vunpack.c.l.b16 %v3983
    %v4247 = vunpack.c.l.b16 %v3984
    %v4248 = vunpack.c.l.b16 %v3985
    %v4249 = vunpack.c.l.b16 %v3986
    %v4250 = vunpack.c.l.b16 %v3987
    %v4251 = vunpack.c.l.b16 %v3988
    %v4252 = vunpack.c.l.b16 %v3989
    %v4253 = vunpack.c.l.b16 %v3990
    %v4254 = vunpack.c.l.b16 %v3991
    %v4255 = vunpack.c.l.b16 %v3992
    %v4256 = vunpack.c.l.b16 %v3993
    %v4257 = vunpack.c.l.b16 %v3994
    %v4258 = vunpack.c.l.b16 %v3995
    %v4259 = vunpack.c.l.b16 %v3996
    %v4260 = vunpack.c.l.b16 %v3997
    %v4261 = vunpack.c.l.b16 %v3998
    %v4262 = vunpack.c.l.b16 %v3999
    %v4263 = vunpack.c.l.b16 %v4000
    %v4264 = vunpack.c.l.b16 %v4001
    %v4265 = vunpack.c.l.b16 %v4002
    %v4266 = vunpack.c.l.b16 %v4003
    %v4267 = vunpack.c.l.b16 %v4004
    %v4268 = vunpack.c.l.b16 %v4005
    %v4269 = vunpack.c.l.b16 %v4006
    %v4270 = vunpack.c.l.b16 %v4007
    %v4271 = vunpack.c.l.b16 %v4008
    %v4272 = vunpack.c.l.b16 %v4009
    %v4273 = vunpack.c.l.b16 %v4010
    %v4274 = vunpack.c.l.b16 %v4011
    %v4275 = vunpack.c.l.b16 %v4012
    %v4276 = vpack.c.b16 %v4149, %v4148
    %v4277 = vpack.c.b16 %v4151, %v4150
    %v4278 = vpack.c.b16 %v4153, %v4152
    %v4279 = vpack.c.b16 %v4155, %v4154
    %v4280 = vpack.c.b16 %v4157, %v4156
    %v4281 = vpack.c.b16 %v4159, %v4158
    %v4282 = vpack.c.b16 %v4161, %v4160
    %v4283 = vpack.c.b16 %v4163, %v4162
    %v4284 = vpack.c.b16 %v4165, %v4164
    %v4285 = vpack.c.b16 %v4167, %v4166
    %v4286 = vpack.c.b16 %v4169, %v4168
    %v4287 = vpack.c.b16 %v4171, %v4170
    %v4288 = vpack.c.b16 %v4173, %v4172
    %v4289 = vpack.c.b16 %v4175, %v4174
    %v4290 = vpack.c.b16 %v4177, %v4176
    %v4291 = vpack.c.b16 %v4179, %v4178
    %v4292 = vpack.c.b16 %v4181, %v4180
    %v4293 = vpack.c.b16 %v4183, %v4182
    %v4294 = vpack.c.b16 %v4185, %v4184
    %v4295 = vpack.c.b16 %v4187, %v4186
    %v4296 = vpack.c.b16 %v4189, %v4188
    %v4297 = vpack.c.b16 %v4191, %v4190
    %v4298 = vpack.c.b16 %v4193, %v4192
    %v4299 = vpack.c.b16 %v4195, %v4194
    %v4300 = vpack.c.b16 %v4197, %v4196
    %v4301 = vpack.c.b16 %v4199, %v4198
    %v4302 = vpack.c.b16 %v4201, %v4200
    %v4303 = vpack.c.b16 %v4203, %v4202
    %v4304 = vpack.c.b16 %v4205, %v4204
    %v4305 = vpack.c.b16 %v4207, %v4206
    %v4306 = vpack.c.b16 %v4209, %v4208
    %v4307 = vpack.c.b16 %v4211, %v4210
    %v4308 = vpack.c.b16 %v4213, %v4212
    %v4309 = vpack.c.b16 %v4215, %v4214
    %v4310 = vpack.c.b16 %v4217, %v4216
    %v4311 = vpack.c.b16 %v4219, %v4218
    %v4312 = vpack.c.b16 %v4221, %v4220
    %v4313 = vpack.c.b16 %v4223, %v4222
    %v4314 = vpack.c.b16 %v4225, %v4224
    %v4315 = vpack.c.b16 %v4227, %v4226
    %v4316 = vpack.c.b16 %v4229, %v4228
    %v4317 = vpack.c.b16 %v4231, %v4230
    %v4318 = vpack.c.b16 %v4233, %v4232
    %v4319 = vpack.c.b16 %v4235, %v4234
    %v4320 = vpack.c.b16 %v4237, %v4236
    %v4321 = vpack.c.b16 %v4239, %v4238
    %v4322 = vpack.c.b16 %v4241, %v4240
    %v4323 = vpack.c.b16 %v4243, %v4242
    %v4324 = vpack.c.b16 %v4245, %v4244
    %v4325 = vpack.c.b16 %v4247, %v4246
    %v4326 = vpack.c.b16 %v4249, %v4248
    %v4327 = vpack.c.b16 %v4251, %v4250
    %v4328 = vpack.c.b16 %v4253, %v4252
    %v4329 = vpack.c.b16 %v4255, %v4254
    %v4330 = vpack.c.b16 %v4257, %v4256
    %v4331 = vpack.c.b16 %v4259, %v4258
    %v4332 = vpack.c.b16 %v4261, %v4260
    %v4333 = vpack.c.b16 %v4263, %v4262
    %v4334 = vpack.c.b16 %v4265, %v4264
    %v4335 = vpack.c.b16 %v4267, %v4266
    %v4336 = vpack.c.b16 %v4269, %v4268
    %v4337 = vpack.c.b16 %v4271, %v4270
    %v4338 = vpack.c.b16 %v4273, %v4272
    %v4339 = vpack.c.b16 %v4275, %v4274
    %4404 = vmatprep.subr.bf16.mxu0 0
    %4405 = vmatpush1.bf16.msra.mxu0 %v4276
    %4406 = vmatprep.subr.bf16.mxu0 0
    %4407 = vmatpush1.bf16.msra.mxu0 %v4277
    %4408 = vmatprep.subr.bf16.mxu0 0
    %4409 = vmatpush1.bf16.msra.mxu0 %v4278
    %4410 = vmatprep.subr.bf16.mxu0 0
    %4411 = vmatpush1.bf16.msra.mxu0 %v4279
    %4412 = vmatprep.subr.bf16.mxu0 0
    %4413 = vmatpush1.bf16.msra.mxu0 %v4280
    %4414 = vmatprep.subr.bf16.mxu0 0
    %4415 = vmatpush1.bf16.msra.mxu0 %v4281
    %4416 = vmatprep.subr.bf16.mxu0 0
    %4417 = vmatpush1.bf16.msra.mxu0 %v4282
    %4418 = vmatprep.subr.bf16.mxu0 0
    %4419 = vmatpush1.bf16.msra.mxu0 %v4283
    %4420 = vmatprep.subr.bf16.mxu0 0
    %4421 = vmatpush1.bf16.msra.mxu0 %v4284
    %4422 = vmatprep.subr.bf16.mxu0 0
    %4423 = vmatpush1.bf16.msra.mxu0 %v4285
    %4424 = vmatprep.subr.bf16.mxu0 0
    %4425 = vmatpush1.bf16.msra.mxu0 %v4286
    %4426 = vmatprep.subr.bf16.mxu0 0
    %4427 = vmatpush1.bf16.msra.mxu0 %v4287
    %4428 = vmatprep.subr.bf16.mxu0 0
    %4429 = vmatpush1.bf16.msra.mxu0 %v4288
    %4430 = vmatprep.subr.bf16.mxu0 0
    %4431 = vmatpush1.bf16.msra.mxu0 %v4289
    %4432 = vmatprep.subr.bf16.mxu0 0
    %4433 = vmatpush1.bf16.msra.mxu0 %v4290
    %4434 = vmatprep.subr.bf16.mxu0 0
    %4435 = vmatpush1.bf16.msra.mxu0 %v4291
    %4436 = vmatprep.mubr.bf16.mxu0 %v3878
    %4437 = vmatmul.mubr.bf16.gmra.mrb[0].mxu0 %v3877
    %v4438 = vpop.f32.mrb[0].mxu0
    %v4439 = vadd.f32 %v4018, %v4438
    %v4440 = vpop.f32.mrb[0].mxu0
    %v4441 = vpop.f32.mrb[0].mxu0
    %v4442 = vpop.f32.mrb[0].mxu0
    %4443 = vdwg.mxu0
    %4444 = vmatprep.subr.bf16.mxu0 0
    %4445 = vmatpush1.bf16.msra.mxu0 %v4292
    %4446 = vmatprep.subr.bf16.mxu0 0
    %4447 = vmatpush1.bf16.msra.mxu0 %v4293
    %4448 = vmatprep.subr.bf16.mxu0 0
    %4449 = vmatpush1.bf16.msra.mxu0 %v4294
    %4450 = vmatprep.subr.bf16.mxu0 0
    %4451 = vmatpush1.bf16.msra.mxu0 %v4295
    %4452 = vmatprep.subr.bf16.mxu0 0
    %4453 = vmatpush1.bf16.msra.mxu0 %v4296
    %4454 = vmatprep.subr.bf16.mxu0 0
    %4455 = vmatpush1.bf16.msra.mxu0 %v4297
    %4456 = vmatprep.subr.bf16.mxu0 0
    %4457 = vmatpush1.bf16.msra.mxu0 %v4298
    %4458 = vmatprep.subr.bf16.mxu0 0
    %4459 = vmatpush1.bf16.msra.mxu0 %v4299
    %4460 = vmatprep.subr.bf16.mxu0 0
    %4461 = vmatpush1.bf16.msra.mxu0 %v4300
    %4462 = vmatprep.subr.bf16.mxu0 0
    %4463 = vmatpush1.bf16.msra.mxu0 %v4301
    %4464 = vmatprep.subr.bf16.mxu0 0
    %4465 = vmatpush1.bf16.msra.mxu0 %v4302
    %4466 = vmatprep.subr.bf16.mxu0 0
    %4467 = vmatpush1.bf16.msra.mxu0 %v4303
    %4468 = vmatprep.subr.bf16.mxu0 0
    %4469 = vmatpush1.bf16.msra.mxu0 %v4304
    %4470 = vmatprep.subr.bf16.mxu0 0
    %4471 = vmatpush1.bf16.msra.mxu0 %v4305
    %4472 = vmatprep.subr.bf16.mxu0 0
    %4473 = vmatpush1.bf16.msra.mxu0 %v4306
    %4474 = vmatprep.subr.bf16.mxu0 0
    %4475 = vmatpush1.bf16.msra.mxu0 %v4307
    %4476 = vmatprep.mubr.bf16.mxu0 %v3880
    %4477 = vmatmul.mubr.bf16.gmra.mrb[0].mxu0 %v3879
    %v4478 = vpop.f32.mrb[0].mxu0
    %v4479 = vadd.f32 %v4439, %v4478
    %v4480 = vpop.f32.mrb[0].mxu0
    %v4481 = vpop.f32.mrb[0].mxu0
    %v4482 = vpop.f32.mrb[0].mxu0
    %4483 = vdwg.mxu0
    %4484 = vmatprep.subr.bf16.mxu0 0
    %4485 = vmatpush1.bf16.msra.mxu0 %v4308
    %4486 = vmatprep.subr.bf16.mxu0 0
    %4487 = vmatpush1.bf16.msra.mxu0 %v4309
    %4488 = vmatprep.subr.bf16.mxu0 0
    %4489 = vmatpush1.bf16.msra.mxu0 %v4310
    %4490 = vmatprep.subr.bf16.mxu0 0
    %4491 = vmatpush1.bf16.msra.mxu0 %v4311
    %4492 = vmatprep.subr.bf16.mxu0 0
    %4493 = vmatpush1.bf16.msra.mxu0 %v4312
    %4494 = vmatprep.subr.bf16.mxu0 0
    %4495 = vmatpush1.bf16.msra.mxu0 %v4313
    %4496 = vmatprep.subr.bf16.mxu0 0
    %4497 = vmatpush1.bf16.msra.mxu0 %v4314
    %4498 = vmatprep.subr.bf16.mxu0 0
    %4499 = vmatpush1.bf16.msra.mxu0 %v4315
    %4500 = vmatprep.subr.bf16.mxu0 0
    %4501 = vmatpush1.bf16.msra.mxu0 %v4316
    %4502 = vmatprep.subr.bf16.mxu0 0
    %4503 = vmatpush1.bf16.msra.mxu0 %v4317
    %4504 = vmatprep.subr.bf16.mxu0 0
    %4505 = vmatpush1.bf16.msra.mxu0 %v4318
    %4506 = vmatprep.subr.bf16.mxu0 0
    %4507 = vmatpush1.bf16.msra.mxu0 %v4319
    %4508 = vmatprep.subr.bf16.mxu0 0
    %4509 = vmatpush1.bf16.msra.mxu0 %v4320
    %4510 = vmatprep.subr.bf16.mxu0 0
    %4511 = vmatpush1.bf16.msra.mxu0 %v4321
    %4512 = vmatprep.subr.bf16.mxu0 0
    %4513 = vmatpush1.bf16.msra.mxu0 %v4322
    %4514 = vmatprep.subr.bf16.mxu0 0
    %4515 = vmatpush1.bf16.msra.mxu0 %v4323
    %4516 = vmatprep.mubr.bf16.mxu0 %v3882
    %4517 = vmatmul.mubr.bf16.gmra.mrb[0].mxu0 %v3881
    %v4518 = vpop.f32.mrb[0].mxu0
    %v4519 = vadd.f32 %v4479, %v4518
    %v4520 = vpop.f32.mrb[0].mxu0
    %v4521 = vpop.f32.mrb[0].mxu0
    %v4522 = vpop.f32.mrb[0].mxu0
    %4523 = vdwg.mxu0
    %4524 = vmatprep.subr.bf16.mxu0 0
    %4525 = vmatpush1.bf16.msra.mxu0 %v4324
    %4526 = vmatprep.subr.bf16.mxu0 0
    %4527 = vmatpush1.bf16.msra.mxu0 %v4325
    %4528 = vmatprep.subr.bf16.mxu0 0
    %4529 = vmatpush1.bf16.msra.mxu0 %v4326
    %4530 = vmatprep.subr.bf16.mxu0 0
    %4531 = vmatpush1.bf16.msra.mxu0 %v4327
    %4532 = vmatprep.subr.bf16.mxu0 0
    %4533 = vmatpush1.bf16.msra.mxu0 %v4328
    %4534 = vmatprep.subr.bf16.mxu0 0
    %4535 = vmatpush1.bf16.msra.mxu0 %v4329
    %4536 = vmatprep.subr.bf16.mxu0 0
    %4537 = vmatpush1.bf16.msra.mxu0 %v4330
    %4538 = vmatprep.subr.bf16.mxu0 0
    %4539 = vmatpush1.bf16.msra.mxu0 %v4331
    %4540 = vmatprep.subr.bf16.mxu0 0
    %4541 = vmatpush1.bf16.msra.mxu0 %v4332
    %4542 = vmatprep.subr.bf16.mxu0 0
    %4543 = vmatpush1.bf16.msra.mxu0 %v4333
    %4544 = vmatprep.subr.bf16.mxu0 0
    %4545 = vmatpush1.bf16.msra.mxu0 %v4334
    %4546 = vmatprep.subr.bf16.mxu0 0
    %4547 = vmatpush1.bf16.msra.mxu0 %v4335
    %4548 = vmatprep.subr.bf16.mxu0 0
    %4549 = vmatpush1.bf16.msra.mxu0 %v4336
    %4550 = vmatprep.subr.bf16.mxu0 0
    %4551 = vmatpush1.bf16.msra.mxu0 %v4337
    %4552 = vmatprep.subr.bf16.mxu0 0
    %4553 = vmatpush1.bf16.msra.mxu0 %v4338
    %4554 = vmatprep.subr.bf16.mxu0 0
    %4555 = vmatpush1.bf16.msra.mxu0 %v4339
    %4556 = vmatprep.mubr.bf16.mxu0 %v3884
    %4557 = vmatmul.mubr.bf16.gmra.mrb[0].mxu0 %v3883
    %v4558 = vpop.f32.mrb[0].mxu0
    %v4559 = vadd.f32 %v4519, %v4558
    %v4560 = vpop.f32.mrb[0].mxu0
    %v4561 = vpop.f32.mrb[0].mxu0
    %v4562 = vpop.f32.mrb[0].mxu0
    %4563 = vdwg.mxu0
    %4564 = vst [vmem:[%s7] sm:$0xff] %v4559
    // Predicated region
    $region38: #{cnn_forward.1} parent=1 // pred_check
      _
    $region39: #{cnn_forward.1} parent=1 // pred_check_branch
      %4566 = sbr.rel (0) target = $region41
    $region40: #{cnn_forward.1} parent=1 // pred_region
      _
    $region41: #{cnn_forward.1} parent=1 // pred_fallthru
      _
    // Predicated region
    $region42: #{cnn_forward.1} parent=1 // pred_check
      _
    $region43: #{cnn_forward.1} parent=1 // pred_check_branch
      %4568 = sbr.rel (0) target = $region45
    $region44: #{cnn_forward.1} parent=1 // pred_region
      _
    $region45: #{cnn_forward.1} parent=1 // pred_fallthru
      _
    %4569 = vsyncpa [#allocation3], 1
    %4570 = vsyncpa [#allocation5], 1

</llo_original>
